<compile_context>
chip_gen: v7x
topology: tpu7x:2x2x1
jax: 0.10.0
libtpu: 0.0.40
codegen_flags: <defaults>
</compile_context>

<pallas_src>
import functools
import math

import jax
import jax.numpy as jnp
import numpy as np
from jax.experimental import pallas as pl
from jax.experimental.pallas import tpu as pltpu


def _transformer_block_kernel(
    # data
    x_ref, segq_ref, segkv_ref, rope_ref, y_ref, ada_ref, small_ref,
    # fused weights
    wqkv_ref, wykv_ref, wo_ref, adaw_ref, w13_ref, w2_ref,
    # output
    o_ref,
    # scratch
    ctx_scr,
    *, n_heads, rms_eps, ln_eps,
):
    f32 = jnp.float32
    bf16 = jnp.bfloat16

    S, dim = x_ref.shape
    Ly = y_ref.shape[0]
    hd = dim // n_heads
    hidden = w2_ref.shape[0]
    n_items_pad = ada_ref.shape[0]

    def mm(a, w):  # bf16 x bf16 matmul, f32 accumulation (native MXU path)
        return jnp.dot(a.astype(bf16), w.astype(bf16), preferred_element_type=f32)

    def rms_norm(v, w):
        return v * jax.lax.rsqrt(jnp.mean(v * v, axis=-1, keepdims=True) + rms_eps) * w

    def layer_norm(v, w, b):
        mu = jnp.mean(v, axis=-1, keepdims=True)
        var = jnp.mean(jnp.square(v - mu), axis=-1, keepdims=True)
        return (v - mu) * jax.lax.rsqrt(var + ln_eps) * w + b

    x = x_ref[...]                                   # (S, D) f32

    # ------- packed small parameters: one (16, D) f32 table -------
    sp = small_ref[...]
    an1_w, an2_w = sp[0:1], sp[1:2]
    fn1_w, fn2_w = sp[2:3], sp[3:4]
    y_norm_w = sp[4:5]
    qn_w, qn_b = sp[5:6], sp[6:7]
    kn_w, kn_b = sp[7:8], sp[8:9]
    kyn_w, kyn_b = sp[9:10], sp[10:11]
    gate_lane = jnp.tanh(sp[11:12])                  # per-lane tanh(gate[head])
    adab = sp[12:16]                                 # (4, D): adaLN bias chunks

    # ------- segment masks -> additive biases (built once, reused per head) ----
    seg_q = segq_ref[...]                            # (S, 1) i32
    seg_kv = segkv_ref[...]                          # (1, S + Ly) i32
    neg = jnp.float32(-1e30)
    bias_xx = jnp.where(seg_q == seg_kv[:, :S], 0.0, neg)   # (S, S)
    bias_xy = jnp.where(seg_q == seg_kv[:, S:], 0.0, neg)   # (S, Ly)

    # ------- adaLN modulation: SiLU -> one-hot gather (MXU) -> Linear ----------
    ada = ada_ref[...]
    ada = ada * jax.nn.sigmoid(ada)                  # SiLU in f32
    onehot = (jax.lax.broadcasted_iota(jnp.int32, (S, n_items_pad), 1) == seg_q)
    ada_tok = jnp.dot(onehot.astype(bf16), ada.astype(bf16),
                      preferred_element_type=f32)    # (S, ada_dim) per-token gather
    mod = mm(ada_tok, adaw_ref[...])                 # (S, 4*D)
    scale_msa = 1.0 + mod[:, 0 * dim:1 * dim] + adab[0:1]
    gate_msa = jnp.tanh(mod[:, 1 * dim:2 * dim] + adab[1:2])
    scale_mlp = 1.0 + mod[:, 2 * dim:3 * dim] + adab[2:3]
    gate_mlp = jnp.tanh(mod[:, 3 * dim:4 * dim] + adab[3:4])

    # ------- attention branch -------
    h_att = rms_norm(x, an1_w) * scale_msa           # (S, D)

    qkv = mm(h_att, wqkv_ref[...])                   # (S, 3D): fused q|k|v
    xq = layer_norm(qkv[:, 0:dim], qn_w, qn_b)
    xk = layer_norm(qkv[:, dim:2 * dim], kn_w, kn_b)
    xv = qkv[:, 2 * dim:]

    # RoPE: interleaved pair swap via XLU lane rolls + sign-folded sin tables.
    rope_tab = rope_ref[...]                         # (3S, D): [cos; sin_a; sin_b]
    cos = rope_tab[0:S]
    sin_a = rope_tab[S:2 * S]                        # -sin on even lanes, 0 on odd
    sin_b = rope_tab[2 * S:]                         # +sin on odd lanes, 0 on even

    def rope(v):
        nxt = pltpu.roll(v, dim - 1, 1)              # out[j] = v[j+1]  (mod D)
        prv = pltpu.roll(v, 1, 1)                    # out[j] = v[j-1]  (mod D)
        return v * cos + nxt * sin_a + prv * sin_b

    sm_scale = math.sqrt(1.0 / hd)
    xq = rope(xq) * sm_scale                         # fold softmax scale into q once
    xk = rope(xk)

    # cross-attention keys/values from RMSNorm'd y (fused wk_y|wv_y)
    y_n = rms_norm(y_ref[...], y_norm_w)             # (Ly, D)
    ykv = mm(y_n, wykv_ref[...])                     # (Ly, 2D)
    yk = layer_norm(ykv[:, 0:dim], kyn_w, kyn_b)
    yv = ykv[:, dim:]

    # head-batched tensors (H, T, hd) built by stacking lane slices
    def heads(t):
        return jnp.stack([t[:, h * hd:(h + 1) * hd] for h in range(n_heads)],
                         axis=0).astype(bf16)

    qh = heads(xq)                                   # (H, S, hd)
    kh, vh = heads(xk), heads(xv)
    ykh, yvh = heads(yk), heads(yv)                  # (H, Ly, hd)

    def attend(k3, v3, bias):                        # -> (H, S, hd) f32
        s = jax.lax.dot_general(qh, k3, (((2,), (2,)), ((0,), (0,))),
                                preferred_element_type=f32)     # (H, S, T)
        s = s + bias[None]
        m = jnp.max(s, axis=-1, keepdims=True)
        p = jnp.exp(s - m)
        p = p * pl.reciprocal(jnp.sum(p, axis=-1, keepdims=True), approx=True)
        return jax.lax.dot_general(p.astype(bf16), v3, (((2,), (1,)), ((0,), (0,))),
                                   preferred_element_type=f32)

    ctx_x = attend(kh, vh, bias_xx)                  # self-attention over x
    ctx_y = attend(ykh, yvh, bias_xy)                # cross-attention over y

    # assemble per-head contexts into a lane-dense (S, D) buffer -> single wo matmul
    for h in range(n_heads):
        lo, hi = h * hd, (h + 1) * hd
        ctx_scr[:, lo:hi] = ctx_x[h] + gate_lane[:, lo:hi] * ctx_y[h]
    attn_out = mm(ctx_scr[...], wo_ref[...])         # (S, D)

    x = x + gate_msa * rms_norm(attn_out, an2_w)

    # ------- feed-forward branch (SwiGLU, fused w1|w3) -------
    h_ffn = rms_norm(x, fn1_w) * scale_mlp
    a13 = mm(h_ffn, w13_ref[...])                    # (S, 2*hidden)
    a1 = a13[:, 0:hidden]
    a3 = a13[:, hidden:]
    # TODO(synk): on v6e/v7x the SwiGLU gate could run in bf16; kept f32 for v5e.
    ffn = mm((a1 * jax.nn.sigmoid(a1)) * a3, w2_ref[...])
    x = x + gate_mlp * rms_norm(ffn, fn2_w)

    o_ref[...] = x.astype(o_ref.dtype)


def transformer_block(x, x_src_ids, y, y_src_ids, adaln_input, cos_full, sin_full,
                      params, *, n_heads, rms_eps=1e-6, ln_eps=1e-5):
    S, dim = x.shape
    Ly, y_dim = y.shape
    head_dim = dim // n_heads
    n_items, ada_dim = adaln_input.shape
    assert cos_full.shape == (S, dim) and sin_full.shape == (S, dim)
    assert y_dim == dim, "packed small-param table assumes y_dim == dim"
    # TODO(synk): sequence-parallel all_to_all / GQA head-repeat not implemented
    # (world size == 1, n_kv_heads == n_heads).
    assert params["wk"].shape[1] == n_heads * head_dim, "demo supports MHA only"

    f32, bf16 = jnp.float32, jnp.bfloat16

    # ---- packed small-parameter table (16, dim) f32 ----
    gate_lane = jnp.repeat(params["gate"].astype(f32), head_dim)
    small = jnp.concatenate([
        params["attn_norm1_w"].reshape(1, dim),
        params["attn_norm2_w"].reshape(1, dim),
        params["ffn_norm1_w"].reshape(1, dim),
        params["ffn_norm2_w"].reshape(1, dim),
        params["y_norm_w"].reshape(1, dim),
        params["q_norm_w"].reshape(1, dim),
        params["q_norm_b"].reshape(1, dim),
        params["k_norm_w"].reshape(1, dim),
        params["k_norm_b"].reshape(1, dim),
        params["ky_norm_w"].reshape(1, dim),
        params["ky_norm_b"].reshape(1, dim),
        gate_lane.reshape(1, dim),
        params["ada_b"].reshape(4, dim),
    ], axis=0).astype(f32)

    # ---- fused projection weights (bf16) ----
    w_qkv = jnp.concatenate([params["wq"], params["wk"], params["wv"]],
                            axis=1).astype(bf16)
    w_ykv = jnp.concatenate([params["wk_y"], params["wv_y"]], axis=1).astype(bf16)
    w_13 = jnp.concatenate([params["w1"], params["w3"]], axis=1).astype(bf16)

    # ---- RoPE tables with the pair-swap sign folded in (roll-based rotation) ----
    parity = (jnp.arange(dim) % 2)[None, :]
    sin_a = jnp.where(parity == 0, -sin_full, 0.0).astype(f32)  # multiplies v[j+1]
    sin_b = jnp.where(parity == 1, sin_full, 0.0).astype(f32)   # multiplies v[j-1]
    rope_tab = jnp.concatenate([cos_full.astype(f32), sin_a, sin_b], axis=0)

    # ---- pad item axis to a full sublane tile so the one-hot gather has K=8 ----
    n_items_pad = max(8, ((n_items + 7) // 8) * 8)
    ada_pad = jnp.pad(adaln_input.astype(f32),
                      ((0, n_items_pad - n_items), (0, 0)))

    seg_kv = jnp.concatenate(
        [x_src_ids.reshape(-1), y_src_ids.reshape(-1)]).reshape(1, S + Ly)

    inputs = [
        x.astype(f32),
        x_src_ids.reshape(S, 1).astype(jnp.int32),
        seg_kv.astype(jnp.int32),
        rope_tab,
        y.astype(f32),
        ada_pad,
        small,
        w_qkv,
        w_ykv,
        params["wo"].astype(bf16),
        params["ada_w"].astype(bf16),
        w_13,
        params["w2"].astype(bf16),
    ]

    kernel = functools.partial(_transformer_block_kernel, n_heads=n_heads,
                               rms_eps=rms_eps, ln_eps=ln_eps)

    # Single grid step: all blocks equal the full (small) arrays, so the
    # (8,128) tiling rule is trivially satisfied and weights are DMA'd once.
    in_specs = [pl.BlockSpec(a.shape, lambda i: (0, 0)) for a in inputs]
    return pl.pallas_call(
        kernel,
        out_shape=jax.ShapeDtypeStruct((S, dim), jnp.float32),
        grid=(1,),
        in_specs=in_specs,
        out_specs=pl.BlockSpec((S, dim), lambda i: (0, 0)),
        scratch_shapes=[pltpu.VMEM((S, dim), jnp.float32)],
        compiler_params=pltpu.CompilerParams(
            dimension_semantics=("arbitrary",),
            vmem_limit_bytes=32 * 1024 * 1024,
        ),
    )(*inputs)


def _reference(x, x_src_ids, y, y_src_ids, adaln_input, cos_half, sin_half,
               params, *, n_heads, rms_eps=1e-6, ln_eps=1e-5):
    """Pure-JAX reference mirroring the PyTorch forward (bf16 matmul operands,
    f32 accumulation, f32 norms/softmax), sp world size == 1."""
    f32, bf16 = jnp.float32, jnp.bfloat16
    S, dim = x.shape
    hd = dim // n_heads

    def mm(a, w):
        return jnp.dot(a.astype(bf16), w.astype(bf16), preferred_element_type=f32)

    def rms(v, w):
        return v * jax.lax.rsqrt(jnp.mean(v * v, -1, keepdims=True) + rms_eps) * w

    def ln(v, w, b):
        mu = jnp.mean(v, -1, keepdims=True)
        var = jnp.mean(jnp.square(v - mu), -1, keepdims=True)
        return (v - mu) * jax.lax.rsqrt(var + ln_eps) * w + b

    # adaLN
    ada = adaln_input * jax.nn.sigmoid(adaln_input)
    mod = mm(ada, params["ada_w"]) + params["ada_b"]
    scale_msa, gate_msa, scale_mlp, gate_mlp = jnp.split(mod, 4, axis=1)
    gate_msa, gate_mlp = jnp.tanh(gate_msa), jnp.tanh(gate_mlp)
    scale_msa, scale_mlp = 1.0 + scale_msa, 1.0 + scale_mlp
    sm, gm = scale_msa[x_src_ids], gate_msa[x_src_ids]
    sp, gp = scale_mlp[x_src_ids], gate_mlp[x_src_ids]

    # attention branch
    h = rms(x, params["attn_norm1_w"]) * sm
    q = ln(mm(h, params["wq"]), params["q_norm_w"], params["q_norm_b"])
    k = ln(mm(h, params["wk"]), params["k_norm_w"], params["k_norm_b"])
    v = mm(h, params["wv"])

    cos_f = jnp.tile(cos_half, (1, n_heads))
    sin_f = jnp.tile(sin_half, (1, n_heads))

    def rope(t):  # interleaved-pair rotary (matches torch.view_as_complex path)
        te, to = t[:, 0::2], t[:, 1::2]
        re = te * cos_f - to * sin_f
        ro = te * sin_f + to * cos_f
        return jnp.stack([re, ro], axis=-1).reshape(t.shape)

    q, k = rope(q), rope(k)
    qh = q.reshape(S, n_heads, hd)
    kh = k.reshape(S, n_heads, hd)
    vh = v.reshape(S, n_heads, hd)

    y_n = rms(y, params["y_norm_w"])
    ykh = ln(mm(y_n, params["wk_y"]), params["ky_norm_w"], params["ky_norm_b"]
             ).reshape(-1, n_heads, hd)
    yvh = mm(y_n, params["wv_y"]).reshape(-1, n_heads, hd)

    scale = math.sqrt(1.0 / hd)
    neg = jnp.float32(-1e30)

    def attend(kk, vv, kv_seg):
        s = jnp.einsum("qhd,khd->hqk", qh.astype(bf16), kk.astype(bf16),
                       preferred_element_type=f32) * scale
        mask = (x_src_ids[:, None] == kv_seg[None, :])[None]
        s = jnp.where(mask, s, neg)
        p = jnp.exp(s - jnp.max(s, -1, keepdims=True))
        p = p / jnp.sum(p, -1, keepdims=True)
        return jnp.einsum("hqk,khd->qhd", p.astype(bf16), vv.astype(bf16),
                          preferred_element_type=f32)

    ctx = attend(kh, vh, x_src_ids)
    ctx_y = attend(ykh, yvh, y_src_ids)
    ctx = ctx + jnp.tanh(params["gate"])[None, :, None] * ctx_y
    attn_out = mm(ctx.reshape(S, dim), params["wo"])
    x = x + gm * rms(attn_out, params["attn_norm2_w"])

    # ffn branch
    hf = rms(x, params["ffn_norm1_w"]) * sp
    a1 = mm(hf, params["w1"])
    a3 = mm(hf, params["w3"])
    ffn = mm((a1 * jax.nn.sigmoid(a1)) * a3, params["w2"])
    return x + gp * rms(ffn, params["ffn_norm2_w"])


if __name__ == "__main__":
    # --- small but TPU-friendly config (lane-dense dim) ---
    dim = 128
    n_heads = 4
    n_kv_heads = 4            # MHA in the demo
    y_dim = 128
    multiple_of = 128
    norm_eps = 1e-6
    ln_eps = 1e-5
    head_dim = dim // n_heads

    hidden_dim = int(2 * (4 * dim) / 3)
    hidden_dim = multiple_of * ((hidden_dim + multiple_of - 1) // multiple_of)  # 384

    x_item_lens = [10, 6]     # two variable-length items packed along S
    y_item_lens = [5, 3]
    n_items = len(x_item_lens)
    S = sum(x_item_lens)      # 16
    Ly = sum(y_item_lens)     # 8
    ada_dim = min(dim, 1024)  # 128

    key = jax.random.PRNGKey(0)
    ks = jax.random.split(key, 40)
    _ki = iter(range(40))

    def nrm(shape, scale=0.02):
        return scale * jax.random.normal(ks[next(_ki)], shape, dtype=jnp.float32)

    bf16 = jnp.bfloat16
    params = {
        # Linear weights stored (in_features, out_features); bf16 for DMA/MXU.
        "wq": nrm((dim, n_heads * head_dim)).astype(bf16),
        "wk": nrm((dim, n_kv_heads * head_dim)).astype(bf16),
        "wv": nrm((dim, n_kv_heads * head_dim)).astype(bf16),
        "wk_y": nrm((y_dim, n_kv_heads * head_dim)).astype(bf16),
        "wv_y": nrm((y_dim, n_kv_heads * head_dim)).astype(bf16),
        "wo": nrm((n_heads * head_dim, dim)).astype(bf16),
        "gate": 0.5 * jax.random.normal(ks[next(_ki)], (n_heads,), dtype=jnp.float32),
        "q_norm_w": 1.0 + nrm((n_heads * head_dim,), 0.05),
        "q_norm_b": nrm((n_heads * head_dim,)),
        "k_norm_w": 1.0 + nrm((n_kv_heads * head_dim,), 0.05),
        "k_norm_b": nrm((n_kv_heads * head_dim,)),
        "ky_norm_w": 1.0 + nrm((n_kv_heads * head_dim,), 0.05),
        "ky_norm_b": nrm((n_kv_heads * head_dim,)),
        "attn_norm1_w": 1.0 + nrm((dim,), 0.05),
        "attn_norm2_w": 1.0 + nrm((dim,), 0.05),
        "ffn_norm1_w": 1.0 + nrm((dim,), 0.05),
        "ffn_norm2_w": 1.0 + nrm((dim,), 0.05),
        "y_norm_w": 1.0 + nrm((y_dim,), 0.05),
        "ada_w": nrm((ada_dim, 4 * dim)).astype(bf16),
        "ada_b": nrm((4 * dim,)),
        "w1": nrm((dim, hidden_dim)).astype(bf16),
        "w2": nrm((hidden_dim, dim)).astype(bf16),
        "w3": nrm((dim, hidden_dim)).astype(bf16),
    }

    x = jax.random.normal(ks[next(_ki)], (S, dim), dtype=jnp.float32)
    y = jax.random.normal(ks[next(_ki)], (Ly, y_dim), dtype=jnp.float32)
    adaln_input = jax.random.normal(ks[next(_ki)], (n_items, ada_dim), dtype=jnp.float32)

    x_src_ids = jnp.asarray(np.repeat(np.arange(n_items), x_item_lens), dtype=jnp.int32)
    y_src_ids = jnp.asarray(np.repeat(np.arange(n_items), y_item_lens), dtype=jnp.int32)

    # RoPE tables (freqs_cis is a module input); positions restart per item.
    pos = np.concatenate([np.arange(l) for l in x_item_lens]).astype(np.float32)
    inv_freq = 1.0 / (10000.0 ** (np.arange(0, head_dim, 2, dtype=np.float32) / head_dim))
    ang = pos[:, None] * inv_freq[None, :]                       # (S, hd/2)
    cos_half = jnp.asarray(np.cos(ang), dtype=jnp.float32)
    sin_half = jnp.asarray(np.sin(ang), dtype=jnp.float32)
    cos_full = jnp.asarray(np.tile(np.repeat(np.cos(ang), 2, axis=1), (1, n_heads)),
                           dtype=jnp.float32)                    # (S, dim)
    sin_full = jnp.asarray(np.tile(np.repeat(np.sin(ang), 2, axis=1), (1, n_heads)),
                           dtype=jnp.float32)

    out = transformer_block(x, x_src_ids, y, y_src_ids, adaln_input,
                            cos_full, sin_full, params,
                            n_heads=n_heads, rms_eps=norm_eps, ln_eps=ln_eps)
    out = jax.block_until_ready(out)

    ref = _reference(x, x_src_ids, y, y_src_ids, adaln_input, cos_half, sin_half,
                     params, n_heads=n_heads, rms_eps=norm_eps, ln_eps=ln_eps)
    ref = jax.block_until_ready(ref)

    assert out.shape == (S, dim)
    assert not bool(jnp.any(jnp.isnan(out))), "NaN in kernel output"
    assert float(jnp.max(jnp.abs(out - x))) > 1e-3, "block produced no update"
    max_diff = float(jnp.max(jnp.abs(out - ref)))
    assert jnp.allclose(out, ref, atol=5e-3, rtol=5e-3), f"max abs diff {max_diff}"

    print("KERNEL_OK")
</pallas_src>

<mosaic_0001>
module attributes {stable_mosaic.version = 11 : i64} {
  func.func @_transformer_block_kernel(%arg0: i32, %arg1: memref<16x128xf32, #tpu.memory_space<vmem>>, %arg2: memref<16x1xi32, #tpu.memory_space<vmem>>, %arg3: memref<1x24xi32, #tpu.memory_space<vmem>>, %arg4: memref<48x128xf32, #tpu.memory_space<vmem>>, %arg5: memref<8x128xf32, #tpu.memory_space<vmem>>, %arg6: memref<8x128xf32, #tpu.memory_space<vmem>>, %arg7: memref<16x128xf32, #tpu.memory_space<vmem>>, %arg8: memref<128x384xbf16, #tpu.memory_space<vmem>>, %arg9: memref<128x256xbf16, #tpu.memory_space<vmem>>, %arg10: memref<128x128xbf16, #tpu.memory_space<vmem>>, %arg11: memref<128x512xbf16, #tpu.memory_space<vmem>>, %arg12: memref<128x768xbf16, #tpu.memory_space<vmem>>, %arg13: memref<384x128xbf16, #tpu.memory_space<vmem>>, %arg14: memref<16x128xf32, #tpu.memory_space<vmem>>, %arg15: memref<16x128xf32, #tpu.memory_space<vmem>>) attributes {dimension_semantics = [#tpu.dimension_semantics<arbitrary>], iteration_bounds = array<i64: 1>, scalar_prefetch = 0 : i64, scratch_operands = 1 : i64, tpu.core_type = #tpu.core_type<tc>, window_params = [{pipeline_mode = #tpu.pipeline_mode<synchronous>, transform_indices = @transform_0, window_bounds = array<i64: 16, 128>}, {pipeline_mode = #tpu.pipeline_mode<synchronous>, transform_indices = @transform_1, window_bounds = array<i64: 16, 1>}, {pipeline_mode = #tpu.pipeline_mode<synchronous>, transform_indices = @transform_2, window_bounds = array<i64: 1, 24>}, {pipeline_mode = #tpu.pipeline_mode<synchronous>, transform_indices = @transform_3, window_bounds = array<i64: 48, 128>}, {pipeline_mode = #tpu.pipeline_mode<synchronous>, transform_indices = @transform_4, window_bounds = array<i64: 8, 128>}, {pipeline_mode = #tpu.pipeline_mode<synchronous>, transform_indices = @transform_5, window_bounds = array<i64: 8, 128>}, {pipeline_mode = #tpu.pipeline_mode<synchronous>, transform_indices = @transform_6, window_bounds = array<i64: 16, 128>}, {pipeline_mode = #tpu.pipeline_mode<synchronous>, transform_indices = @transform_7, window_bounds = array<i64: 128, 384>}, {pipeline_mode = #tpu.pipeline_mode<synchronous>, transform_indices = @transform_8, window_bounds = array<i64: 128, 256>}, {pipeline_mode = #tpu.pipeline_mode<synchronous>, transform_indices = @transform_9, window_bounds = array<i64: 128, 128>}, {pipeline_mode = #tpu.pipeline_mode<synchronous>, transform_indices = @transform_10, window_bounds = array<i64: 128, 512>}, {pipeline_mode = #tpu.pipeline_mode<synchronous>, transform_indices = @transform_11, window_bounds = array<i64: 128, 768>}, {pipeline_mode = #tpu.pipeline_mode<synchronous>, transform_indices = @transform_12, window_bounds = array<i64: 384, 128>}, {pipeline_mode = #tpu.pipeline_mode<synchronous>, transform_indices = @transform_13, window_bounds = array<i64: 16, 128>}]} {
    %c0 = arith.constant 0 : index
    %c0_0 = arith.constant 0 : index
    %0 = vector.load %arg1[%c0, %c0_0] : memref<16x128xf32, #tpu.memory_space<vmem>>, vector<16x128xf32>
    %c0_1 = arith.constant 0 : index
    %c0_2 = arith.constant 0 : index
    %1 = vector.load %arg7[%c0_1, %c0_2] : memref<16x128xf32, #tpu.memory_space<vmem>>, vector<16x128xf32>
    %2 = vector.extract_strided_slice %1 {offsets = [0, 0], sizes = [1, 128], strides = [1, 1]} : vector<16x128xf32> to vector<1x128xf32>
    %3 = vector.extract_strided_slice %1 {offsets = [1, 0], sizes = [1, 128], strides = [1, 1]} : vector<16x128xf32> to vector<1x128xf32>
    %4 = vector.extract_strided_slice %1 {offsets = [2, 0], sizes = [1, 128], strides = [1, 1]} : vector<16x128xf32> to vector<1x128xf32>
    %5 = vector.extract_strided_slice %1 {offsets = [3, 0], sizes = [1, 128], strides = [1, 1]} : vector<16x128xf32> to vector<1x128xf32>
    %6 = vector.extract_strided_slice %1 {offsets = [4, 0], sizes = [1, 128], strides = [1, 1]} : vector<16x128xf32> to vector<1x128xf32>
    %7 = vector.extract_strided_slice %1 {offsets = [5, 0], sizes = [1, 128], strides = [1, 1]} : vector<16x128xf32> to vector<1x128xf32>
    %8 = vector.extract_strided_slice %1 {offsets = [6, 0], sizes = [1, 128], strides = [1, 1]} : vector<16x128xf32> to vector<1x128xf32>
    %9 = vector.extract_strided_slice %1 {offsets = [7, 0], sizes = [1, 128], strides = [1, 1]} : vector<16x128xf32> to vector<1x128xf32>
    %10 = vector.extract_strided_slice %1 {offsets = [8, 0], sizes = [1, 128], strides = [1, 1]} : vector<16x128xf32> to vector<1x128xf32>
    %11 = vector.extract_strided_slice %1 {offsets = [9, 0], sizes = [1, 128], strides = [1, 1]} : vector<16x128xf32> to vector<1x128xf32>
    %12 = vector.extract_strided_slice %1 {offsets = [10, 0], sizes = [1, 128], strides = [1, 1]} : vector<16x128xf32> to vector<1x128xf32>
    %13 = vector.extract_strided_slice %1 {offsets = [11, 0], sizes = [1, 128], strides = [1, 1]} : vector<16x128xf32> to vector<1x128xf32>
    %14 = math.tanh %13 : vector<1x128xf32>
    %15 = vector.extract_strided_slice %1 {offsets = [12, 0], sizes = [4, 128], strides = [1, 1]} : vector<16x128xf32> to vector<4x128xf32>
    %c0_3 = arith.constant 0 : index
    %c0_4 = arith.constant 0 : index
    %16 = vector.load %arg2[%c0_3, %c0_4] : memref<16x1xi32, #tpu.memory_space<vmem>>, vector<16x1xi32>
    %c0_5 = arith.constant 0 : index
    %c0_6 = arith.constant 0 : index
    %17 = vector.load %arg3[%c0_5, %c0_6] : memref<1x24xi32, #tpu.memory_space<vmem>>, vector<1x24xi32>
    %18 = vector.extract_strided_slice %17 {offsets = [0, 0], sizes = [1, 16], strides = [1, 1]} : vector<1x24xi32> to vector<1x16xi32>
    %19 = vector.broadcast %16 : vector<16x1xi32> to vector<16x16xi32>
    %20 = vector.broadcast %18 : vector<1x16xi32> to vector<16x16xi32>
    %21 = arith.cmpi eq, %19, %20 : vector<16x16xi32>
    %cst = arith.constant 0.000000e+00 : f32
    %cst_7 = arith.constant -1.000000e+30 : f32
    %22 = vector.broadcast %cst : f32 to vector<16x16xf32>
    %23 = vector.broadcast %cst_7 : f32 to vector<16x16xf32>
    %24 = arith.select %21, %22, %23 : vector<16x16xi1>, vector<16x16xf32>
    %25 = vector.extract_strided_slice %17 {offsets = [0, 16], sizes = [1, 8], strides = [1, 1]} : vector<1x24xi32> to vector<1x8xi32>
    %26 = vector.broadcast %16 : vector<16x1xi32> to vector<16x8xi32>
    %27 = vector.broadcast %25 : vector<1x8xi32> to vector<16x8xi32>
    %28 = arith.cmpi eq, %26, %27 : vector<16x8xi32>
    %cst_8 = arith.constant 0.000000e+00 : f32
    %cst_9 = arith.constant -1.000000e+30 : f32
    %29 = vector.broadcast %cst_8 : f32 to vector<16x8xf32>
    %30 = vector.broadcast %cst_9 : f32 to vector<16x8xf32>
    %31 = arith.select %28, %29, %30 : vector<16x8xi1>, vector<16x8xf32>
    %c0_10 = arith.constant 0 : index
    %c0_11 = arith.constant 0 : index
    %32 = vector.load %arg6[%c0_10, %c0_11] : memref<8x128xf32, #tpu.memory_space<vmem>>, vector<8x128xf32>
    %33 = arith.negf %32 : vector<8x128xf32>
    %34 = math.exp %33 : vector<8x128xf32>
    %cst_12 = arith.constant 1.000000e+00 : f32
    %35 = vector.broadcast %cst_12 : f32 to vector<8x128xf32>
    %36 = arith.addf %35, %34 : vector<8x128xf32>
    %37 = arith.divf %35, %36 : vector<8x128xf32>
    %38 = arith.mulf %32, %37 : vector<8x128xf32>
    %39 = tpu.iota {dimensions = array<i32: 1>} : vector<16x8xi32>
    %40 = vector.broadcast %16 : vector<16x1xi32> to vector<16x8xi32>
    %41 = arith.cmpi eq, %39, %40 : vector<16x8xi32>
    %42 = arith.extui %41 : vector<16x8xi1> to vector<16x8xi32>
    %43 = arith.sitofp %42 : vector<16x8xi32> to vector<16x8xf32>
    %44 = arith.truncf %43 : vector<16x8xf32> to vector<16x8xbf16>
    %45 = arith.truncf %38 : vector<8x128xf32> to vector<8x128xbf16>
    %cst_13 = arith.constant dense<0.000000e+00> : vector<16x128xf32>
    %46 = tpu.matmul %44, %45, %cst_13 {dimension_numbers = #tpu.dot_dimension_numbers<[1], [0], [0], [1], [0, 0, 1, 1], [], []>} : vector<16x8xbf16>, vector<8x128xbf16>, vector<16x128xf32> -> vector<16x128xf32>
    %c0_14 = arith.constant 0 : index
    %c0_15 = arith.constant 0 : index
    %47 = vector.load %arg11[%c0_14, %c0_15] : memref<128x512xbf16, #tpu.memory_space<vmem>>, vector<128x512xbf16>
    %48 = arith.truncf %46 : vector<16x128xf32> to vector<16x128xbf16>
    %cst_16 = arith.constant dense<0.000000e+00> : vector<16x512xf32>
    %49 = tpu.matmul %48, %47, %cst_16 {dimension_numbers = #tpu.dot_dimension_numbers<[1], [0], [0], [1], [0, 0, 1, 1], [], []>} : vector<16x128xbf16>, vector<128x512xbf16>, vector<16x512xf32> -> vector<16x512xf32>
    %50 = vector.extract_strided_slice %49 {offsets = [0, 0], sizes = [16, 128], strides = [1, 1]} : vector<16x512xf32> to vector<16x128xf32>
    %cst_17 = arith.constant 1.000000e+00 : f32
    %51 = vector.broadcast %cst_17 : f32 to vector<16x128xf32>
    %52 = arith.addf %51, %50 : vector<16x128xf32>
    %53 = vector.extract_strided_slice %15 {offsets = [0, 0], sizes = [1, 128], strides = [1, 1]} : vector<4x128xf32> to vector<1x128xf32>
    %54 = vector.broadcast %53 : vector<1x128xf32> to vector<16x128xf32>
    %55 = arith.addf %52, %54 : vector<16x128xf32>
    %56 = vector.extract_strided_slice %49 {offsets = [0, 128], sizes = [16, 128], strides = [1, 1]} : vector<16x512xf32> to vector<16x128xf32>
    %57 = vector.extract_strided_slice %15 {offsets = [1, 0], sizes = [1, 128], strides = [1, 1]} : vector<4x128xf32> to vector<1x128xf32>
    %58 = vector.broadcast %57 : vector<1x128xf32> to vector<16x128xf32>
    %59 = arith.addf %56, %58 : vector<16x128xf32>
    %60 = math.tanh %59 : vector<16x128xf32>
    %61 = vector.extract_strided_slice %49 {offsets = [0, 256], sizes = [16, 128], strides = [1, 1]} : vector<16x512xf32> to vector<16x128xf32>
    %cst_18 = arith.constant 1.000000e+00 : f32
    %62 = vector.broadcast %cst_18 : f32 to vector<16x128xf32>
    %63 = arith.addf %62, %61 : vector<16x128xf32>
    %64 = vector.extract_strided_slice %15 {offsets = [2, 0], sizes = [1, 128], strides = [1, 1]} : vector<4x128xf32> to vector<1x128xf32>
    %65 = vector.broadcast %64 : vector<1x128xf32> to vector<16x128xf32>
    %66 = arith.addf %63, %65 : vector<16x128xf32>
    %67 = vector.extract_strided_slice %49 {offsets = [0, 384], sizes = [16, 128], strides = [1, 1]} : vector<16x512xf32> to vector<16x128xf32>
    %68 = vector.extract_strided_slice %15 {offsets = [3, 0], sizes = [1, 128], strides = [1, 1]} : vector<4x128xf32> to vector<1x128xf32>
    %69 = vector.broadcast %68 : vector<1x128xf32> to vector<16x128xf32>
    %70 = arith.addf %67, %69 : vector<16x128xf32>
    %71 = math.tanh %70 : vector<16x128xf32>
    %72 = arith.mulf %0, %0 : vector<16x128xf32>
    %cst_19 = arith.constant dense<0.000000e+00> : vector<16xf32>
    %73 = vector.multi_reduction <add>, %72, %cst_19 [1] : vector<16x128xf32> to vector<16xf32>
    %74 = vector.shape_cast %73 : vector<16xf32> to vector<16x1xf32>
    %cst_20 = arith.constant 1.280000e+02 : f32
    %75 = vector.broadcast %cst_20 : f32 to vector<16x1xf32>
    %76 = arith.divf %74, %75 : vector<16x1xf32>
    %cst_21 = arith.constant 9.99999997E-7 : f32
    %77 = vector.broadcast %cst_21 : f32 to vector<16x1xf32>
    %78 = arith.addf %76, %77 : vector<16x1xf32>
    %79 = math.rsqrt %78 : vector<16x1xf32>
    %80 = vector.broadcast %79 : vector<16x1xf32> to vector<16x128xf32>
    %81 = arith.mulf %0, %80 : vector<16x128xf32>
    %82 = vector.broadcast %2 : vector<1x128xf32> to vector<16x128xf32>
    %83 = arith.mulf %81, %82 : vector<16x128xf32>
    %84 = arith.mulf %83, %55 : vector<16x128xf32>
    %c0_22 = arith.constant 0 : index
    %c0_23 = arith.constant 0 : index
    %85 = vector.load %arg8[%c0_22, %c0_23] : memref<128x384xbf16, #tpu.memory_space<vmem>>, vector<128x384xbf16>
    %86 = arith.truncf %84 : vector<16x128xf32> to vector<16x128xbf16>
    %cst_24 = arith.constant dense<0.000000e+00> : vector<16x384xf32>
    %87 = tpu.matmul %86, %85, %cst_24 {dimension_numbers = #tpu.dot_dimension_numbers<[1], [0], [0], [1], [0, 0, 1, 1], [], []>} : vector<16x128xbf16>, vector<128x384xbf16>, vector<16x384xf32> -> vector<16x384xf32>
    %88 = vector.extract_strided_slice %87 {offsets = [0, 0], sizes = [16, 128], strides = [1, 1]} : vector<16x384xf32> to vector<16x128xf32>
    %cst_25 = arith.constant dense<0.000000e+00> : vector<16xf32>
    %89 = vector.multi_reduction <add>, %88, %cst_25 [1] : vector<16x128xf32> to vector<16xf32>
    %90 = vector.shape_cast %89 : vector<16xf32> to vector<16x1xf32>
    %cst_26 = arith.constant 1.280000e+02 : f32
    %91 = vector.broadcast %cst_26 : f32 to vector<16x1xf32>
    %92 = arith.divf %90, %91 : vector<16x1xf32>
    %93 = vector.broadcast %92 : vector<16x1xf32> to vector<16x128xf32>
    %94 = arith.subf %88, %93 : vector<16x128xf32>
    %95 = arith.mulf %94, %94 : vector<16x128xf32>
    %cst_27 = arith.constant dense<0.000000e+00> : vector<16xf32>
    %96 = vector.multi_reduction <add>, %95, %cst_27 [1] : vector<16x128xf32> to vector<16xf32>
    %97 = vector.shape_cast %96 : vector<16xf32> to vector<16x1xf32>
    %cst_28 = arith.constant 1.280000e+02 : f32
    %98 = vector.broadcast %cst_28 : f32 to vector<16x1xf32>
    %99 = arith.divf %97, %98 : vector<16x1xf32>
    %100 = vector.broadcast %92 : vector<16x1xf32> to vector<16x128xf32>
    %101 = arith.subf %88, %100 : vector<16x128xf32>
    %cst_29 = arith.constant 9.99999974E-6 : f32
    %102 = vector.broadcast %cst_29 : f32 to vector<16x1xf32>
    %103 = arith.addf %99, %102 : vector<16x1xf32>
    %104 = math.rsqrt %103 : vector<16x1xf32>
    %105 = vector.broadcast %104 : vector<16x1xf32> to vector<16x128xf32>
    %106 = arith.mulf %101, %105 : vector<16x128xf32>
    %107 = vector.broadcast %7 : vector<1x128xf32> to vector<16x128xf32>
    %108 = arith.mulf %106, %107 : vector<16x128xf32>
    %109 = vector.broadcast %8 : vector<1x128xf32> to vector<16x128xf32>
    %110 = arith.addf %108, %109 : vector<16x128xf32>
    %111 = vector.extract_strided_slice %87 {offsets = [0, 128], sizes = [16, 128], strides = [1, 1]} : vector<16x384xf32> to vector<16x128xf32>
    %cst_30 = arith.constant dense<0.000000e+00> : vector<16xf32>
    %112 = vector.multi_reduction <add>, %111, %cst_30 [1] : vector<16x128xf32> to vector<16xf32>
    %113 = vector.shape_cast %112 : vector<16xf32> to vector<16x1xf32>
    %cst_31 = arith.constant 1.280000e+02 : f32
    %114 = vector.broadcast %cst_31 : f32 to vector<16x1xf32>
    %115 = arith.divf %113, %114 : vector<16x1xf32>
    %116 = vector.broadcast %115 : vector<16x1xf32> to vector<16x128xf32>
    %117 = arith.subf %111, %116 : vector<16x128xf32>
    %118 = arith.mulf %117, %117 : vector<16x128xf32>
    %cst_32 = arith.constant dense<0.000000e+00> : vector<16xf32>
    %119 = vector.multi_reduction <add>, %118, %cst_32 [1] : vector<16x128xf32> to vector<16xf32>
    %120 = vector.shape_cast %119 : vector<16xf32> to vector<16x1xf32>
    %cst_33 = arith.constant 1.280000e+02 : f32
    %121 = vector.broadcast %cst_33 : f32 to vector<16x1xf32>
    %122 = arith.divf %120, %121 : vector<16x1xf32>
    %123 = vector.broadcast %115 : vector<16x1xf32> to vector<16x128xf32>
    %124 = arith.subf %111, %123 : vector<16x128xf32>
    %cst_34 = arith.constant 9.99999974E-6 : f32
    %125 = vector.broadcast %cst_34 : f32 to vector<16x1xf32>
    %126 = arith.addf %122, %125 : vector<16x1xf32>
    %127 = math.rsqrt %126 : vector<16x1xf32>
    %128 = vector.broadcast %127 : vector<16x1xf32> to vector<16x128xf32>
    %129 = arith.mulf %124, %128 : vector<16x128xf32>
    %130 = vector.broadcast %9 : vector<1x128xf32> to vector<16x128xf32>
    %131 = arith.mulf %129, %130 : vector<16x128xf32>
    %132 = vector.broadcast %10 : vector<1x128xf32> to vector<16x128xf32>
    %133 = arith.addf %131, %132 : vector<16x128xf32>
    %134 = vector.extract_strided_slice %87 {offsets = [0, 256], sizes = [16, 128], strides = [1, 1]} : vector<16x384xf32> to vector<16x128xf32>
    %c0_35 = arith.constant 0 : index
    %c0_36 = arith.constant 0 : index
    %135 = vector.load %arg4[%c0_35, %c0_36] : memref<48x128xf32, #tpu.memory_space<vmem>>, vector<48x128xf32>
    %136 = vector.extract_strided_slice %135 {offsets = [0, 0], sizes = [16, 128], strides = [1, 1]} : vector<48x128xf32> to vector<16x128xf32>
    %137 = vector.extract_strided_slice %135 {offsets = [16, 0], sizes = [16, 128], strides = [1, 1]} : vector<48x128xf32> to vector<16x128xf32>
    %138 = vector.extract_strided_slice %135 {offsets = [32, 0], sizes = [16, 128], strides = [1, 1]} : vector<48x128xf32> to vector<16x128xf32>
    %c127_i32 = arith.constant 127 : i32
    %139 = tpu.dynamic_rotate %110 by %c127_i32 dim 1 : vector<16x128xf32>, i32 -> vector<16x128xf32>
    %c1_i32 = arith.constant 1 : i32
    %140 = tpu.dynamic_rotate %110 by %c1_i32 dim 1 : vector<16x128xf32>, i32 -> vector<16x128xf32>
    %141 = arith.mulf %110, %136 : vector<16x128xf32>
    %142 = arith.mulf %139, %137 : vector<16x128xf32>
    %143 = arith.addf %141, %142 : vector<16x128xf32>
    %144 = arith.mulf %140, %138 : vector<16x128xf32>
    %145 = arith.addf %143, %144 : vector<16x128xf32>
    %cst_37 = arith.constant 0.176776692 : f32
    %146 = vector.broadcast %cst_37 : f32 to vector<16x128xf32>
    %147 = arith.mulf %145, %146 : vector<16x128xf32>
    %c127_i32_38 = arith.constant 127 : i32
    %148 = tpu.dynamic_rotate %133 by %c127_i32_38 dim 1 : vector<16x128xf32>, i32 -> vector<16x128xf32>
    %c1_i32_39 = arith.constant 1 : i32
    %149 = tpu.dynamic_rotate %133 by %c1_i32_39 dim 1 : vector<16x128xf32>, i32 -> vector<16x128xf32>
    %150 = arith.mulf %133, %136 : vector<16x128xf32>
    %151 = arith.mulf %148, %137 : vector<16x128xf32>
    %152 = arith.addf %150, %151 : vector<16x128xf32>
    %153 = arith.mulf %149, %138 : vector<16x128xf32>
    %154 = arith.addf %152, %153 : vector<16x128xf32>
    %c0_40 = arith.constant 0 : index
    %c0_41 = arith.constant 0 : index
    %155 = vector.load %arg5[%c0_40, %c0_41] : memref<8x128xf32, #tpu.memory_space<vmem>>, vector<8x128xf32>
    %156 = arith.mulf %155, %155 : vector<8x128xf32>
    %cst_42 = arith.constant dense<0.000000e+00> : vector<8xf32>
    %157 = vector.multi_reduction <add>, %156, %cst_42 [1] : vector<8x128xf32> to vector<8xf32>
    %158 = vector.shape_cast %157 : vector<8xf32> to vector<8x1xf32>
    %cst_43 = arith.constant 1.280000e+02 : f32
    %159 = vector.broadcast %cst_43 : f32 to vector<8x1xf32>
    %160 = arith.divf %158, %159 : vector<8x1xf32>
    %cst_44 = arith.constant 9.99999997E-7 : f32
    %161 = vector.broadcast %cst_44 : f32 to vector<8x1xf32>
    %162 = arith.addf %160, %161 : vector<8x1xf32>
    %163 = math.rsqrt %162 : vector<8x1xf32>
    %164 = vector.broadcast %163 : vector<8x1xf32> to vector<8x128xf32>
    %165 = arith.mulf %155, %164 : vector<8x128xf32>
    %166 = vector.broadcast %6 : vector<1x128xf32> to vector<8x128xf32>
    %167 = arith.mulf %165, %166 : vector<8x128xf32>
    %c0_45 = arith.constant 0 : index
    %c0_46 = arith.constant 0 : index
    %168 = vector.load %arg9[%c0_45, %c0_46] : memref<128x256xbf16, #tpu.memory_space<vmem>>, vector<128x256xbf16>
    %169 = arith.truncf %167 : vector<8x128xf32> to vector<8x128xbf16>
    %cst_47 = arith.constant dense<0.000000e+00> : vector<8x256xf32>
    %170 = tpu.matmul %169, %168, %cst_47 {dimension_numbers = #tpu.dot_dimension_numbers<[1], [0], [0], [1], [0, 0, 1, 1], [], []>} : vector<8x128xbf16>, vector<128x256xbf16>, vector<8x256xf32> -> vector<8x256xf32>
    %171 = vector.extract_strided_slice %170 {offsets = [0, 0], sizes = [8, 128], strides = [1, 1]} : vector<8x256xf32> to vector<8x128xf32>
    %cst_48 = arith.constant dense<0.000000e+00> : vector<8xf32>
    %172 = vector.multi_reduction <add>, %171, %cst_48 [1] : vector<8x128xf32> to vector<8xf32>
    %173 = vector.shape_cast %172 : vector<8xf32> to vector<8x1xf32>
    %cst_49 = arith.constant 1.280000e+02 : f32
    %174 = vector.broadcast %cst_49 : f32 to vector<8x1xf32>
    %175 = arith.divf %173, %174 : vector<8x1xf32>
    %176 = vector.broadcast %175 : vector<8x1xf32> to vector<8x128xf32>
    %177 = arith.subf %171, %176 : vector<8x128xf32>
    %178 = arith.mulf %177, %177 : vector<8x128xf32>
    %cst_50 = arith.constant dense<0.000000e+00> : vector<8xf32>
    %179 = vector.multi_reduction <add>, %178, %cst_50 [1] : vector<8x128xf32> to vector<8xf32>
    %180 = vector.shape_cast %179 : vector<8xf32> to vector<8x1xf32>
    %cst_51 = arith.constant 1.280000e+02 : f32
    %181 = vector.broadcast %cst_51 : f32 to vector<8x1xf32>
    %182 = arith.divf %180, %181 : vector<8x1xf32>
    %183 = vector.broadcast %175 : vector<8x1xf32> to vector<8x128xf32>
    %184 = arith.subf %171, %183 : vector<8x128xf32>
    %cst_52 = arith.constant 9.99999974E-6 : f32
    %185 = vector.broadcast %cst_52 : f32 to vector<8x1xf32>
    %186 = arith.addf %182, %185 : vector<8x1xf32>
    %187 = math.rsqrt %186 : vector<8x1xf32>
    %188 = vector.broadcast %187 : vector<8x1xf32> to vector<8x128xf32>
    %189 = arith.mulf %184, %188 : vector<8x128xf32>
    %190 = vector.broadcast %11 : vector<1x128xf32> to vector<8x128xf32>
    %191 = arith.mulf %189, %190 : vector<8x128xf32>
    %192 = vector.broadcast %12 : vector<1x128xf32> to vector<8x128xf32>
    %193 = arith.addf %191, %192 : vector<8x128xf32>
    %194 = vector.extract_strided_slice %170 {offsets = [0, 128], sizes = [8, 128], strides = [1, 1]} : vector<8x256xf32> to vector<8x128xf32>
    %195 = vector.extract_strided_slice %147 {offsets = [0, 0], sizes = [16, 32], strides = [1, 1]} : vector<16x128xf32> to vector<16x32xf32>
    %196 = vector.extract_strided_slice %147 {offsets = [0, 32], sizes = [16, 32], strides = [1, 1]} : vector<16x128xf32> to vector<16x32xf32>
    %197 = vector.extract_strided_slice %147 {offsets = [0, 64], sizes = [16, 32], strides = [1, 1]} : vector<16x128xf32> to vector<16x32xf32>
    %198 = vector.extract_strided_slice %147 {offsets = [0, 96], sizes = [16, 32], strides = [1, 1]} : vector<16x128xf32> to vector<16x32xf32>
    %199 = vector.shape_cast %195 : vector<16x32xf32> to vector<1x16x32xf32>
    %200 = vector.shape_cast %196 : vector<16x32xf32> to vector<1x16x32xf32>
    %201 = vector.shape_cast %197 : vector<16x32xf32> to vector<1x16x32xf32>
    %202 = vector.shape_cast %198 : vector<16x32xf32> to vector<1x16x32xf32>
    %203 = tpu.concatenate %199, %200, %201, %202 in 0 : vector<1x16x32xf32>, vector<1x16x32xf32>, vector<1x16x32xf32>, vector<1x16x32xf32> -> vector<4x16x32xf32>
    %204 = arith.truncf %203 : vector<4x16x32xf32> to vector<4x16x32xbf16>
    %205 = vector.extract_strided_slice %154 {offsets = [0, 0], sizes = [16, 32], strides = [1, 1]} : vector<16x128xf32> to vector<16x32xf32>
    %206 = vector.extract_strided_slice %154 {offsets = [0, 32], sizes = [16, 32], strides = [1, 1]} : vector<16x128xf32> to vector<16x32xf32>
    %207 = vector.extract_strided_slice %154 {offsets = [0, 64], sizes = [16, 32], strides = [1, 1]} : vector<16x128xf32> to vector<16x32xf32>
    %208 = vector.extract_strided_slice %154 {offsets = [0, 96], sizes = [16, 32], strides = [1, 1]} : vector<16x128xf32> to vector<16x32xf32>
    %209 = vector.shape_cast %205 : vector<16x32xf32> to vector<1x16x32xf32>
    %210 = vector.shape_cast %206 : vector<16x32xf32> to vector<1x16x32xf32>
    %211 = vector.shape_cast %207 : vector<16x32xf32> to vector<1x16x32xf32>
    %212 = vector.shape_cast %208 : vector<16x32xf32> to vector<1x16x32xf32>
    %213 = tpu.concatenate %209, %210, %211, %212 in 0 : vector<1x16x32xf32>, vector<1x16x32xf32>, vector<1x16x32xf32>, vector<1x16x32xf32> -> vector<4x16x32xf32>
    %214 = arith.truncf %213 : vector<4x16x32xf32> to vector<4x16x32xbf16>
    %215 = vector.extract_strided_slice %134 {offsets = [0, 0], sizes = [16, 32], strides = [1, 1]} : vector<16x128xf32> to vector<16x32xf32>
    %216 = vector.extract_strided_slice %134 {offsets = [0, 32], sizes = [16, 32], strides = [1, 1]} : vector<16x128xf32> to vector<16x32xf32>
    %217 = vector.extract_strided_slice %134 {offsets = [0, 64], sizes = [16, 32], strides = [1, 1]} : vector<16x128xf32> to vector<16x32xf32>
    %218 = vector.extract_strided_slice %134 {offsets = [0, 96], sizes = [16, 32], strides = [1, 1]} : vector<16x128xf32> to vector<16x32xf32>
    %219 = vector.shape_cast %215 : vector<16x32xf32> to vector<1x16x32xf32>
    %220 = vector.shape_cast %216 : vector<16x32xf32> to vector<1x16x32xf32>
    %221 = vector.shape_cast %217 : vector<16x32xf32> to vector<1x16x32xf32>
    %222 = vector.shape_cast %218 : vector<16x32xf32> to vector<1x16x32xf32>
    %223 = tpu.concatenate %219, %220, %221, %222 in 0 : vector<1x16x32xf32>, vector<1x16x32xf32>, vector<1x16x32xf32>, vector<1x16x32xf32> -> vector<4x16x32xf32>
    %224 = arith.truncf %223 : vector<4x16x32xf32> to vector<4x16x32xbf16>
    %225 = vector.extract_strided_slice %193 {offsets = [0, 0], sizes = [8, 32], strides = [1, 1]} : vector<8x128xf32> to vector<8x32xf32>
    %226 = vector.extract_strided_slice %193 {offsets = [0, 32], sizes = [8, 32], strides = [1, 1]} : vector<8x128xf32> to vector<8x32xf32>
    %227 = vector.extract_strided_slice %193 {offsets = [0, 64], sizes = [8, 32], strides = [1, 1]} : vector<8x128xf32> to vector<8x32xf32>
    %228 = vector.extract_strided_slice %193 {offsets = [0, 96], sizes = [8, 32], strides = [1, 1]} : vector<8x128xf32> to vector<8x32xf32>
    %229 = vector.shape_cast %225 : vector<8x32xf32> to vector<1x8x32xf32>
    %230 = vector.shape_cast %226 : vector<8x32xf32> to vector<1x8x32xf32>
    %231 = vector.shape_cast %227 : vector<8x32xf32> to vector<1x8x32xf32>
    %232 = vector.shape_cast %228 : vector<8x32xf32> to vector<1x8x32xf32>
    %233 = tpu.concatenate %229, %230, %231, %232 in 0 : vector<1x8x32xf32>, vector<1x8x32xf32>, vector<1x8x32xf32>, vector<1x8x32xf32> -> vector<4x8x32xf32>
    %234 = arith.truncf %233 : vector<4x8x32xf32> to vector<4x8x32xbf16>
    %235 = vector.extract_strided_slice %194 {offsets = [0, 0], sizes = [8, 32], strides = [1, 1]} : vector<8x128xf32> to vector<8x32xf32>
    %236 = vector.extract_strided_slice %194 {offsets = [0, 32], sizes = [8, 32], strides = [1, 1]} : vector<8x128xf32> to vector<8x32xf32>
    %237 = vector.extract_strided_slice %194 {offsets = [0, 64], sizes = [8, 32], strides = [1, 1]} : vector<8x128xf32> to vector<8x32xf32>
    %238 = vector.extract_strided_slice %194 {offsets = [0, 96], sizes = [8, 32], strides = [1, 1]} : vector<8x128xf32> to vector<8x32xf32>
    %239 = vector.shape_cast %235 : vector<8x32xf32> to vector<1x8x32xf32>
    %240 = vector.shape_cast %236 : vector<8x32xf32> to vector<1x8x32xf32>
    %241 = vector.shape_cast %237 : vector<8x32xf32> to vector<1x8x32xf32>
    %242 = vector.shape_cast %238 : vector<8x32xf32> to vector<1x8x32xf32>
    %243 = tpu.concatenate %239, %240, %241, %242 in 0 : vector<1x8x32xf32>, vector<1x8x32xf32>, vector<1x8x32xf32>, vector<1x8x32xf32> -> vector<4x8x32xf32>
    %244 = arith.truncf %243 : vector<4x8x32xf32> to vector<4x8x32xbf16>
    %cst_53 = arith.constant dense<0.000000e+00> : vector<4x16x16xf32>
    %245 = tpu.matmul %204, %214, %cst_53 {dimension_numbers = #tpu.dot_dimension_numbers<[2], [2], [1], [1], [0, 0, 0, 1, 1, 1], [0], [0]>} : vector<4x16x32xbf16>, vector<4x16x32xbf16>, vector<4x16x16xf32> -> vector<4x16x16xf32>
    %246 = vector.shape_cast %24 : vector<16x16xf32> to vector<1x16x16xf32>
    %247 = vector.broadcast %246 : vector<1x16x16xf32> to vector<4x16x16xf32>
    %248 = arith.addf %245, %247 : vector<4x16x16xf32>
    %cst_54 = arith.constant dense<0xFF800000> : vector<4x16xf32>
    %249 = vector.multi_reduction <maximumf>, %248, %cst_54 [2] : vector<4x16x16xf32> to vector<4x16xf32>
    %250 = vector.shape_cast %249 : vector<4x16xf32> to vector<4x16x1xf32>
    %251 = vector.broadcast %250 : vector<4x16x1xf32> to vector<4x16x16xf32>
    %252 = arith.subf %248, %251 : vector<4x16x16xf32>
    %253 = math.exp %252 : vector<4x16x16xf32>
    %cst_55 = arith.constant dense<0.000000e+00> : vector<4x16xf32>
    %254 = vector.multi_reduction <add>, %253, %cst_55 [2] : vector<4x16x16xf32> to vector<4x16xf32>
    %255 = vector.shape_cast %254 : vector<4x16xf32> to vector<4x16x1xf32>
    %256 = tpu.reciprocal %255 {approx = true} : vector<4x16x1xf32> -> vector<4x16x1xf32>
    %257 = vector.broadcast %256 : vector<4x16x1xf32> to vector<4x16x16xf32>
    %258 = arith.mulf %253, %257 : vector<4x16x16xf32>
    %259 = arith.truncf %258 : vector<4x16x16xf32> to vector<4x16x16xbf16>
    %cst_56 = arith.constant dense<0.000000e+00> : vector<4x16x32xf32>
    %260 = tpu.matmul %259, %224, %cst_56 {dimension_numbers = #tpu.dot_dimension_numbers<[2], [1], [1], [2], [0, 0, 0, 1, 1, 2], [0], [0]>} : vector<4x16x16xbf16>, vector<4x16x32xbf16>, vector<4x16x32xf32> -> vector<4x16x32xf32>
    %cst_57 = arith.constant dense<0.000000e+00> : vector<4x16x8xf32>
    %261 = tpu.matmul %204, %234, %cst_57 {dimension_numbers = #tpu.dot_dimension_numbers<[2], [2], [1], [1], [0, 0, 0, 1, 1, 1], [0], [0]>} : vector<4x16x32xbf16>, vector<4x8x32xbf16>, vector<4x16x8xf32> -> vector<4x16x8xf32>
    %262 = vector.shape_cast %31 : vector<16x8xf32> to vector<1x16x8xf32>
    %263 = vector.broadcast %262 : vector<1x16x8xf32> to vector<4x16x8xf32>
    %264 = arith.addf %261, %263 : vector<4x16x8xf32>
    %cst_58 = arith.constant dense<0xFF800000> : vector<4x16xf32>
    %265 = vector.multi_reduction <maximumf>, %264, %cst_58 [2] : vector<4x16x8xf32> to vector<4x16xf32>
    %266 = vector.shape_cast %265 : vector<4x16xf32> to vector<4x16x1xf32>
    %267 = vector.broadcast %266 : vector<4x16x1xf32> to vector<4x16x8xf32>
    %268 = arith.subf %264, %267 : vector<4x16x8xf32>
    %269 = math.exp %268 : vector<4x16x8xf32>
    %cst_59 = arith.constant dense<0.000000e+00> : vector<4x16xf32>
    %270 = vector.multi_reduction <add>, %269, %cst_59 [2] : vector<4x16x8xf32> to vector<4x16xf32>
    %271 = vector.shape_cast %270 : vector<4x16xf32> to vector<4x16x1xf32>
    %272 = tpu.reciprocal %271 {approx = true} : vector<4x16x1xf32> -> vector<4x16x1xf32>
    %273 = vector.broadcast %272 : vector<4x16x1xf32> to vector<4x16x8xf32>
    %274 = arith.mulf %269, %273 : vector<4x16x8xf32>
    %275 = arith.truncf %274 : vector<4x16x8xf32> to vector<4x16x8xbf16>
    %cst_60 = arith.constant dense<0.000000e+00> : vector<4x16x32xf32>
    %276 = tpu.matmul %275, %244, %cst_60 {dimension_numbers = #tpu.dot_dimension_numbers<[2], [1], [1], [2], [0, 0, 0, 1, 1, 2], [0], [0]>} : vector<4x16x8xbf16>, vector<4x8x32xbf16>, vector<4x16x32xf32> -> vector<4x16x32xf32>
    %277 = vector.extract_strided_slice %260 {offsets = [0, 0, 0], sizes = [1, 16, 32], strides = [1, 1, 1]} : vector<4x16x32xf32> to vector<1x16x32xf32>
    %278 = vector.shape_cast %277 : vector<1x16x32xf32> to vector<16x32xf32>
    %279 = vector.extract_strided_slice %14 {offsets = [0, 0], sizes = [1, 32], strides = [1, 1]} : vector<1x128xf32> to vector<1x32xf32>
    %280 = vector.extract_strided_slice %276 {offsets = [0, 0, 0], sizes = [1, 16, 32], strides = [1, 1, 1]} : vector<4x16x32xf32> to vector<1x16x32xf32>
    %281 = vector.shape_cast %280 : vector<1x16x32xf32> to vector<16x32xf32>
    %282 = vector.broadcast %279 : vector<1x32xf32> to vector<16x32xf32>
    %283 = arith.mulf %282, %281 : vector<16x32xf32>
    %284 = arith.addf %278, %283 : vector<16x32xf32>
    %c0_61 = arith.constant 0 : index
    %c0_62 = arith.constant 0 : index
    %285 = vector.load %arg15[%c0_61, %c0_62] : memref<16x128xf32, #tpu.memory_space<vmem>>, vector<16x32xf32>
    tpu.vector_store %arg15[%c0_61, %c0_62], %284 {strides = array<i32>} : memref<16x128xf32, #tpu.memory_space<vmem>>, vector<16x32xf32>,
    %286 = vector.extract_strided_slice %260 {offsets = [1, 0, 0], sizes = [1, 16, 32], strides = [1, 1, 1]} : vector<4x16x32xf32> to vector<1x16x32xf32>
    %287 = vector.shape_cast %286 : vector<1x16x32xf32> to vector<16x32xf32>
    %288 = vector.extract_strided_slice %14 {offsets = [0, 32], sizes = [1, 32], strides = [1, 1]} : vector<1x128xf32> to vector<1x32xf32>
    %289 = vector.extract_strided_slice %276 {offsets = [1, 0, 0], sizes = [1, 16, 32], strides = [1, 1, 1]} : vector<4x16x32xf32> to vector<1x16x32xf32>
    %290 = vector.shape_cast %289 : vector<1x16x32xf32> to vector<16x32xf32>
    %291 = vector.broadcast %288 : vector<1x32xf32> to vector<16x32xf32>
    %292 = arith.mulf %291, %290 : vector<16x32xf32>
    %293 = arith.addf %287, %292 : vector<16x32xf32>
    %c0_63 = arith.constant 0 : index
    %c32 = arith.constant 32 : index
    %294 = vector.load %arg15[%c0_63, %c32] : memref<16x128xf32, #tpu.memory_space<vmem>>, vector<16x32xf32>
    tpu.vector_store %arg15[%c0_63, %c32], %293 {strides = array<i32>} : memref<16x128xf32, #tpu.memory_space<vmem>>, vector<16x32xf32>,
    %295 = vector.extract_strided_slice %260 {offsets = [2, 0, 0], sizes = [1, 16, 32], strides = [1, 1, 1]} : vector<4x16x32xf32> to vector<1x16x32xf32>
    %296 = vector.shape_cast %295 : vector<1x16x32xf32> to vector<16x32xf32>
    %297 = vector.extract_strided_slice %14 {offsets = [0, 64], sizes = [1, 32], strides = [1, 1]} : vector<1x128xf32> to vector<1x32xf32>
    %298 = vector.extract_strided_slice %276 {offsets = [2, 0, 0], sizes = [1, 16, 32], strides = [1, 1, 1]} : vector<4x16x32xf32> to vector<1x16x32xf32>
    %299 = vector.shape_cast %298 : vector<1x16x32xf32> to vector<16x32xf32>
    %300 = vector.broadcast %297 : vector<1x32xf32> to vector<16x32xf32>
    %301 = arith.mulf %300, %299 : vector<16x32xf32>
    %302 = arith.addf %296, %301 : vector<16x32xf32>
    %c0_64 = arith.constant 0 : index
    %c64 = arith.constant 64 : index
    %303 = vector.load %arg15[%c0_64, %c64] : memref<16x128xf32, #tpu.memory_space<vmem>>, vector<16x32xf32>
    tpu.vector_store %arg15[%c0_64, %c64], %302 {strides = array<i32>} : memref<16x128xf32, #tpu.memory_space<vmem>>, vector<16x32xf32>,
    %304 = vector.extract_strided_slice %260 {offsets = [3, 0, 0], sizes = [1, 16, 32], strides = [1, 1, 1]} : vector<4x16x32xf32> to vector<1x16x32xf32>
    %305 = vector.shape_cast %304 : vector<1x16x32xf32> to vector<16x32xf32>
    %306 = vector.extract_strided_slice %14 {offsets = [0, 96], sizes = [1, 32], strides = [1, 1]} : vector<1x128xf32> to vector<1x32xf32>
    %307 = vector.extract_strided_slice %276 {offsets = [3, 0, 0], sizes = [1, 16, 32], strides = [1, 1, 1]} : vector<4x16x32xf32> to vector<1x16x32xf32>
    %308 = vector.shape_cast %307 : vector<1x16x32xf32> to vector<16x32xf32>
    %309 = vector.broadcast %306 : vector<1x32xf32> to vector<16x32xf32>
    %310 = arith.mulf %309, %308 : vector<16x32xf32>
    %311 = arith.addf %305, %310 : vector<16x32xf32>
    %c0_65 = arith.constant 0 : index
    %c96 = arith.constant 96 : index
    %312 = vector.load %arg15[%c0_65, %c96] : memref<16x128xf32, #tpu.memory_space<vmem>>, vector<16x32xf32>
    tpu.vector_store %arg15[%c0_65, %c96], %311 {strides = array<i32>} : memref<16x128xf32, #tpu.memory_space<vmem>>, vector<16x32xf32>,
    %c0_66 = arith.constant 0 : index
    %c0_67 = arith.constant 0 : index
    %313 = vector.load %arg15[%c0_66, %c0_67] : memref<16x128xf32, #tpu.memory_space<vmem>>, vector<16x128xf32>
    %c0_68 = arith.constant 0 : index
    %c0_69 = arith.constant 0 : index
    %314 = vector.load %arg10[%c0_68, %c0_69] : memref<128x128xbf16, #tpu.memory_space<vmem>>, vector<128x128xbf16>
    %315 = arith.truncf %313 : vector<16x128xf32> to vector<16x128xbf16>
    %cst_70 = arith.constant dense<0.000000e+00> : vector<16x128xf32>
    %316 = tpu.matmul %315, %314, %cst_70 {dimension_numbers = #tpu.dot_dimension_numbers<[1], [0], [0], [1], [0, 0, 1, 1], [], []>} : vector<16x128xbf16>, vector<128x128xbf16>, vector<16x128xf32> -> vector<16x128xf32>
    %317 = arith.mulf %316, %316 : vector<16x128xf32>
    %cst_71 = arith.constant dense<0.000000e+00> : vector<16xf32>
    %318 = vector.multi_reduction <add>, %317, %cst_71 [1] : vector<16x128xf32> to vector<16xf32>
    %319 = vector.shape_cast %318 : vector<16xf32> to vector<16x1xf32>
    %cst_72 = arith.constant 1.280000e+02 : f32
    %320 = vector.broadcast %cst_72 : f32 to vector<16x1xf32>
    %321 = arith.divf %319, %320 : vector<16x1xf32>
    %cst_73 = arith.constant 9.99999997E-7 : f32
    %322 = vector.broadcast %cst_73 : f32 to vector<16x1xf32>
    %323 = arith.addf %321, %322 : vector<16x1xf32>
    %324 = math.rsqrt %323 : vector<16x1xf32>
    %325 = vector.broadcast %324 : vector<16x1xf32> to vector<16x128xf32>
    %326 = arith.mulf %316, %325 : vector<16x128xf32>
    %327 = vector.broadcast %3 : vector<1x128xf32> to vector<16x128xf32>
    %328 = arith.mulf %326, %327 : vector<16x128xf32>
    %329 = arith.mulf %60, %328 : vector<16x128xf32>
    %330 = arith.addf %0, %329 : vector<16x128xf32>
    %331 = arith.mulf %330, %330 : vector<16x128xf32>
    %cst_74 = arith.constant dense<0.000000e+00> : vector<16xf32>
    %332 = vector.multi_reduction <add>, %331, %cst_74 [1] : vector<16x128xf32> to vector<16xf32>
    %333 = vector.shape_cast %332 : vector<16xf32> to vector<16x1xf32>
    %cst_75 = arith.constant 1.280000e+02 : f32
    %334 = vector.broadcast %cst_75 : f32 to vector<16x1xf32>
    %335 = arith.divf %333, %334 : vector<16x1xf32>
    %cst_76 = arith.constant 9.99999997E-7 : f32
    %336 = vector.broadcast %cst_76 : f32 to vector<16x1xf32>
    %337 = arith.addf %335, %336 : vector<16x1xf32>
    %338 = math.rsqrt %337 : vector<16x1xf32>
    %339 = vector.broadcast %338 : vector<16x1xf32> to vector<16x128xf32>
    %340 = arith.mulf %330, %339 : vector<16x128xf32>
    %341 = vector.broadcast %4 : vector<1x128xf32> to vector<16x128xf32>
    %342 = arith.mulf %340, %341 : vector<16x128xf32>
    %343 = arith.mulf %342, %66 : vector<16x128xf32>
    %c0_77 = arith.constant 0 : index
    %c0_78 = arith.constant 0 : index
    %344 = vector.load %arg12[%c0_77, %c0_78] : memref<128x768xbf16, #tpu.memory_space<vmem>>, vector<128x768xbf16>
    %345 = arith.truncf %343 : vector<16x128xf32> to vector<16x128xbf16>
    %cst_79 = arith.constant dense<0.000000e+00> : vector<16x768xf32>
    %346 = tpu.matmul %345, %344, %cst_79 {dimension_numbers = #tpu.dot_dimension_numbers<[1], [0], [0], [1], [0, 0, 1, 1], [], []>} : vector<16x128xbf16>, vector<128x768xbf16>, vector<16x768xf32> -> vector<16x768xf32>
    %347 = vector.extract_strided_slice %346 {offsets = [0, 0], sizes = [16, 384], strides = [1, 1]} : vector<16x768xf32> to vector<16x384xf32>
    %348 = vector.extract_strided_slice %346 {offsets = [0, 384], sizes = [16, 384], strides = [1, 1]} : vector<16x768xf32> to vector<16x384xf32>
    %349 = arith.negf %347 : vector<16x384xf32>
    %350 = math.exp %349 : vector<16x384xf32>
    %cst_80 = arith.constant 1.000000e+00 : f32
    %351 = vector.broadcast %cst_80 : f32 to vector<16x384xf32>
    %352 = arith.addf %351, %350 : vector<16x384xf32>
    %353 = arith.divf %351, %352 : vector<16x384xf32>
    %354 = arith.mulf %347, %353 : vector<16x384xf32>
    %355 = arith.mulf %354, %348 : vector<16x384xf32>
    %c0_81 = arith.constant 0 : index
    %c0_82 = arith.constant 0 : index
    %356 = vector.load %arg13[%c0_81, %c0_82] : memref<384x128xbf16, #tpu.memory_space<vmem>>, vector<384x128xbf16>
    %357 = arith.truncf %355 : vector<16x384xf32> to vector<16x384xbf16>
    %cst_83 = arith.constant dense<0.000000e+00> : vector<16x128xf32>
    %358 = tpu.matmul %357, %356, %cst_83 {dimension_numbers = #tpu.dot_dimension_numbers<[1], [0], [0], [1], [0, 0, 1, 1], [], []>} : vector<16x384xbf16>, vector<384x128xbf16>, vector<16x128xf32> -> vector<16x128xf32>
    %359 = arith.mulf %358, %358 : vector<16x128xf32>
    %cst_84 = arith.constant dense<0.000000e+00> : vector<16xf32>
    %360 = vector.multi_reduction <add>, %359, %cst_84 [1] : vector<16x128xf32> to vector<16xf32>
    %361 = vector.shape_cast %360 : vector<16xf32> to vector<16x1xf32>
    %cst_85 = arith.constant 1.280000e+02 : f32
    %362 = vector.broadcast %cst_85 : f32 to vector<16x1xf32>
    %363 = arith.divf %361, %362 : vector<16x1xf32>
    %cst_86 = arith.constant 9.99999997E-7 : f32
    %364 = vector.broadcast %cst_86 : f32 to vector<16x1xf32>
    %365 = arith.addf %363, %364 : vector<16x1xf32>
    %366 = math.rsqrt %365 : vector<16x1xf32>
    %367 = vector.broadcast %366 : vector<16x1xf32> to vector<16x128xf32>
    %368 = arith.mulf %358, %367 : vector<16x128xf32>
    %369 = vector.broadcast %5 : vector<1x128xf32> to vector<16x128xf32>
    %370 = arith.mulf %368, %369 : vector<16x128xf32>
    %371 = arith.mulf %71, %370 : vector<16x128xf32>
    %372 = arith.addf %330, %371 : vector<16x128xf32>
    %c0_87 = arith.constant 0 : index
    %c0_88 = arith.constant 0 : index
    %373 = vector.load %arg14[%c0_87, %c0_88] : memref<16x128xf32, #tpu.memory_space<vmem>>, vector<16x128xf32>
    tpu.vector_store %arg14[%c0_87, %c0_88], %372 {strides = array<i32>} : memref<16x128xf32, #tpu.memory_space<vmem>>, vector<16x128xf32>,
    return
  }
  func.func @transform_0(%arg0: i32) -> (i32, i32) {
    %c0_i32 = arith.constant 0 : i32
    %c0_i32_0 = arith.constant 0 : i32
    %c0_i32_1 = arith.constant 0 : i32
    return %c0_i32, %c0_i32_0 : i32, i32
  }
  func.func @transform_1(%arg0: i32) -> (i32, i32) {
    %c0_i32 = arith.constant 0 : i32
    %c0_i32_0 = arith.constant 0 : i32
    %c0_i32_1 = arith.constant 0 : i32
    return %c0_i32, %c0_i32_0 : i32, i32
  }
  func.func @transform_2(%arg0: i32) -> (i32, i32) {
    %c0_i32 = arith.constant 0 : i32
    %c0_i32_0 = arith.constant 0 : i32
    %c0_i32_1 = arith.constant 0 : i32
    return %c0_i32, %c0_i32_0 : i32, i32
  }
  func.func @transform_3(%arg0: i32) -> (i32, i32) {
    %c0_i32 = arith.constant 0 : i32
    %c0_i32_0 = arith.constant 0 : i32
    %c0_i32_1 = arith.constant 0 : i32
    return %c0_i32, %c0_i32_0 : i32, i32
  }
  func.func @transform_4(%arg0: i32) -> (i32, i32) {
    %c0_i32 = arith.constant 0 : i32
    %c0_i32_0 = arith.constant 0 : i32
    %c0_i32_1 = arith.constant 0 : i32
    return %c0_i32, %c0_i32_0 : i32, i32
  }
  func.func @transform_5(%arg0: i32) -> (i32, i32) {
    %c0_i32 = arith.constant 0 : i32
    %c0_i32_0 = arith.constant 0 : i32
    %c0_i32_1 = arith.constant 0 : i32
    return %c0_i32, %c0_i32_0 : i32, i32
  }
  func.func @transform_6(%arg0: i32) -> (i32, i32) {
    %c0_i32 = arith.constant 0 : i32
    %c0_i32_0 = arith.constant 0 : i32
    %c0_i32_1 = arith.constant 0 : i32
    return %c0_i32, %c0_i32_0 : i32, i32
  }
  func.func @transform_7(%arg0: i32) -> (i32, i32) {
    %c0_i32 = arith.constant 0 : i32
    %c0_i32_0 = arith.constant 0 : i32
    %c0_i32_1 = arith.constant 0 : i32
    return %c0_i32, %c0_i32_0 : i32, i32
  }
  func.func @transform_8(%arg0: i32) -> (i32, i32) {
    %c0_i32 = arith.constant 0 : i32
    %c0_i32_0 = arith.constant 0 : i32
    %c0_i32_1 = arith.constant 0 : i32
    return %c0_i32, %c0_i32_0 : i32, i32
  }
  func.func @transform_9(%arg0: i32) -> (i32, i32) {
    %c0_i32 = arith.constant 0 : i32
    %c0_i32_0 = arith.constant 0 : i32
    %c0_i32_1 = arith.constant 0 : i32
    return %c0_i32, %c0_i32_0 : i32, i32
  }
  func.func @transform_10(%arg0: i32) -> (i32, i32) {
    %c0_i32 = arith.constant 0 : i32
    %c0_i32_0 = arith.constant 0 : i32
    %c0_i32_1 = arith.constant 0 : i32
    return %c0_i32, %c0_i32_0 : i32, i32
  }
  func.func @transform_11(%arg0: i32) -> (i32, i32) {
    %c0_i32 = arith.constant 0 : i32
    %c0_i32_0 = arith.constant 0 : i32
    %c0_i32_1 = arith.constant 0 : i32
    return %c0_i32, %c0_i32_0 : i32, i32
  }
  func.func @transform_12(%arg0: i32) -> (i32, i32) {
    %c0_i32 = arith.constant 0 : i32
    %c0_i32_0 = arith.constant 0 : i32
    %c0_i32_1 = arith.constant 0 : i32
    return %c0_i32, %c0_i32_0 : i32, i32
  }
  func.func @transform_13(%arg0: i32) -> (i32, i32) {
    %c0_i32 = arith.constant 0 : i32
    %c0_i32_0 = arith.constant 0 : i32
    %c0_i32_1 = arith.constant 0 : i32
    return %c0_i32, %c0_i32_0 : i32, i32
  }
}

</mosaic_0001>

<llo_original>
// kernel: tpu_custom_call.1
$region0: #{tpu_custom_call.1}
  #allocation0 [shape = 'u32[]', space=smem, size = 0x4, offset = 0x4, fixed_abs, tag = 'smem constant byte address 0x4 - core index']
  #allocation1 [shape = 'u32[144,128]{1,0:T(1,128)}', space=vmem, size = 0x12000, scoped, tag = 'internal scratch']
  #allocation2 [shape = 'f32[16,128]{1,0:T(8,128)}', space=vmem, size = 0x2000, scoped, tag = 'scratch operand']
  %s0 = inlined_call_operand.vmem [shape: f32[16,128], index: 0, kind: input, shape index: {}]
  %s1 = inlined_call_operand.vmem [shape: s32[16,1], index: 1, kind: input, shape index: {}]
  %s2 = inlined_call_operand.hbm [shape: s32[1,24], index: 2, kind: input, shape index: {}]
  %s3 = inlined_call_operand.hbm [shape: f32[48,128], index: 3, kind: input, shape index: {}]
  %s4 = inlined_call_operand.hbm [shape: f32[8,128], index: 4, kind: input, shape index: {}]
  %s5 = inlined_call_operand.hbm [shape: f32[8,128], index: 5, kind: input, shape index: {}]
  %s6 = inlined_call_operand.vmem [shape: f32[16,128], index: 6, kind: input, shape index: {}]
  %s7 = inlined_call_operand.hbm [shape: bf16[128,384], index: 7, kind: input, shape index: {}]
  %s8 = inlined_call_operand.hbm [shape: bf16[128,256], index: 8, kind: input, shape index: {}]
  %s9 = inlined_call_operand.hbm [shape: bf16[128,128], index: 9, kind: input, shape index: {}]
  %s10 = inlined_call_operand.hbm [shape: bf16[128,512], index: 10, kind: input, shape index: {}]
  %s11 = inlined_call_operand.hbm [shape: bf16[128,768], index: 11, kind: input, shape index: {}]
  %s12 = inlined_call_operand.hbm [shape: bf16[384,128], index: 12, kind: input, shape index: {}]
  %s13 = inlined_call_operand.hbm [shape: f32[16,128], index: 13, kind: output, shape index: {}]
  %s14 = sld [smem:[#allocation0]]
  $region102: #{tpu_custom_call.1} parent=0
    _
  %s16 = ssub.s32 1, %s14
  %s17 = scalar_select 0, %s16, %s14
  $region1: #{tpu_custom_call.1} parent=0
    #allocation3 [shape = 'u8[512]{0}', space=vmem, size = 0x400, scoped, tag = 'input window, operand 2, single buffered']
    #allocation4 [shape = 's32[1]{0}', space=sflag, size = 0x4, scoped, tag = 'scoped memory for tpu_custom_call.1']
    #allocation5 [shape = 's32[1]{0}', space=sflag, size = 0x4, scoped, tag = 'scoped memory for tpu_custom_call.1']
    #allocation6 [shape = 'u8[24576]{0}', space=vmem, size = 0x6000, scoped, tag = 'input window, operand 3, single buffered']
    #allocation7 [shape = 's32[1]{0}', space=sflag, size = 0x4, scoped, tag = 'scoped memory for tpu_custom_call.1']
    #allocation8 [shape = 'u8[4096]{0}', space=vmem, size = 0x1000, scoped, tag = 'input window, operand 4, single buffered']
    #allocation9 [shape = 'u8[4096]{0}', space=vmem, size = 0x1000, scoped, tag = 'input window, operand 5, single buffered']
    #allocation10 [shape = 's32[1]{0}', space=sflag, size = 0x4, scoped, tag = 'scoped memory for tpu_custom_call.1']
    #allocation11 [shape = 'u8[98304]{0}', space=vmem, size = 0x18000, scoped, tag = 'input window, operand 7, single buffered']
    #allocation12 [shape = 'u8[65536]{0}', space=vmem, size = 0x10000, scoped, tag = 'input window, operand 8, single buffered']
    #allocation13 [shape = 's32[1]{0}', space=sflag, size = 0x4, scoped, tag = 'scoped memory for tpu_custom_call.1']
    #allocation14 [shape = 'u8[32768]{0}', space=vmem, size = 0x8000, scoped, tag = 'input window, operand 9, single buffered']
    #allocation15 [shape = 'u8[131072]{0}', space=vmem, size = 0x20000, scoped, tag = 'input window, operand 10, single buffered']
    #allocation16 [shape = 's32[1]{0}', space=sflag, size = 0x4, scoped, tag = 'scoped memory for tpu_custom_call.1']
    #allocation17 [shape = 'u8[196608]{0}', space=vmem, size = 0x30000, scoped, tag = 'input window, operand 11, single buffered']
    #allocation18 [shape = 'u8[98304]{0}', space=vmem, size = 0x18000, scoped, tag = 'input window, operand 12, single buffered']
    #allocation19 [shape = 's32[1]{0}', space=sflag, size = 0x4, scoped, tag = 'scoped memory for tpu_custom_call.1']
    #allocation20 [shape = 'u8[8192]{0}', space=vmem, size = 0x2000, scoped, tag = 'output window, operand 0, single buffered']
    %18 = vsyncpa [#allocation4], 0
    %19 = vsyncpa [#allocation7], 0
    %20 = vsyncpa [#allocation10], 0
    %21 = vsyncpa [#allocation13], 0
    %22 = vsyncpa [#allocation16], 0
    %23 = vsyncpa [#allocation19], 0
    %24 = vsyncpa [#allocation5], 0
    // Predicated region
    $region2: #{tpu_custom_call.1} parent=1 // pred_check
      _
    $region3: #{tpu_custom_call.1} parent=1 // pred_check_branch
      %26 = sbr.rel (0) target = $region5
    $region4: #{tpu_custom_call.1} parent=1 // pred_region
      _
    $region5: #{tpu_custom_call.1} parent=1 // pred_fallthru
      _
    // Predicated region
    $region6: #{tpu_custom_call.1} parent=1 // pred_check
      _
    $region7: #{tpu_custom_call.1} parent=1 // pred_check_branch
      %28 = sbr.rel (0) target = $region9
    $region8: #{tpu_custom_call.1} parent=1 // pred_region
      _
    $region9: #{tpu_custom_call.1} parent=1 // pred_fallthru
      _
    // Predicated region
    $region10: #{tpu_custom_call.1} parent=1 // pred_check
      _
    $region11: #{tpu_custom_call.1} parent=1 // pred_check_branch
      %30 = sbr.rel (0) target = $region13
    $region12: #{tpu_custom_call.1} parent=1 // pred_region
      %s32 = ssub.s32 16, 16
      %33 = vsyncadd [#allocation4], %s32
      %s35 = sshll.u32 [#allocation3], 4
      %s36 = int_to_ptr.vmem [resolvable:$true] %s35
      %38 = dma.hbm_to_vmem [thread:$0]  %s2, 16, %s36, [#allocation4]
    $region13: #{tpu_custom_call.1} parent=1 // pred_fallthru
      _
    // Predicated region
    $region14: #{tpu_custom_call.1} parent=1 // pred_check
      _
    $region15: #{tpu_custom_call.1} parent=1 // pred_check_branch
      %40 = sbr.rel (0) target = $region17
    $region16: #{tpu_custom_call.1} parent=1 // pred_region
      %s42 = ssub.s32 768, 768
      %43 = vsyncadd [#allocation7], %s42
      %s44 = sshll.u32 [#allocation6], 4
      %s45 = int_to_ptr.vmem [resolvable:$true] %s44
      %50 = dma.hbm_to_vmem [thread:$0]  %s3, 768, %s45, [#allocation7], 128, 128, 8
    $region17: #{tpu_custom_call.1} parent=1 // pred_fallthru
      _
    // Predicated region
    $region18: #{tpu_custom_call.1} parent=1 // pred_check
      _
    $region19: #{tpu_custom_call.1} parent=1 // pred_check_branch
      %52 = sbr.rel (0) target = $region21
    $region20: #{tpu_custom_call.1} parent=1 // pred_region
      %s54 = ssub.s32 128, 128
      %55 = vsyncadd [#allocation7], %s54
      %s57 = sshll.u32 [#allocation8], 4
      %s58 = int_to_ptr.vmem [resolvable:$true] %s57
      %60 = dma.hbm_to_vmem [thread:$0]  %s4, 128, %s58, [#allocation7]
    $region21: #{tpu_custom_call.1} parent=1 // pred_fallthru
      _
    // Predicated region
    $region22: #{tpu_custom_call.1} parent=1 // pred_check
      _
    $region23: #{tpu_custom_call.1} parent=1 // pred_check_branch
      %62 = sbr.rel (0) target = $region25
    $region24: #{tpu_custom_call.1} parent=1 // pred_region
      %s64 = ssub.s32 128, 128
      %65 = vsyncadd [#allocation10], %s64
      %s67 = sshll.u32 [#allocation9], 4
      %s68 = int_to_ptr.vmem [resolvable:$true] %s67
      %70 = dma.hbm_to_vmem [thread:$0]  %s5, 128, %s68, [#allocation10]
    $region25: #{tpu_custom_call.1} parent=1 // pred_fallthru
      _
    // Predicated region
    $region26: #{tpu_custom_call.1} parent=1 // pred_check
      _
    $region27: #{tpu_custom_call.1} parent=1 // pred_check_branch
      %72 = sbr.rel (0) target = $region29
    $region28: #{tpu_custom_call.1} parent=1 // pred_region
      _
    $region29: #{tpu_custom_call.1} parent=1 // pred_fallthru
      _
    // Predicated region
    $region30: #{tpu_custom_call.1} parent=1 // pred_check
      _
    $region31: #{tpu_custom_call.1} parent=1 // pred_check_branch
      %74 = sbr.rel (0) target = $region33
    $region32: #{tpu_custom_call.1} parent=1 // pred_region
      %s76 = ssub.s32 3072, 3072
      %77 = vsyncadd [#allocation10], %s76
      %s78 = sshll.u32 [#allocation11], 4
      %s79 = int_to_ptr.vmem [resolvable:$true] %s78
      %84 = dma.hbm_to_vmem [thread:$0]  %s7, 3072, %s79, [#allocation10], 192, 192, 12
    $region33: #{tpu_custom_call.1} parent=1 // pred_fallthru
      _
    // Predicated region
    $region34: #{tpu_custom_call.1} parent=1 // pred_check
      _
    $region35: #{tpu_custom_call.1} parent=1 // pred_check_branch
      %86 = sbr.rel (0) target = $region37
    $region36: #{tpu_custom_call.1} parent=1 // pred_region
      %s88 = ssub.s32 2048, 2048
      %89 = vsyncadd [#allocation13], %s88
      %s90 = sshll.u32 [#allocation12], 4
      %s91 = int_to_ptr.vmem [resolvable:$true] %s90
      %96 = dma.hbm_to_vmem [thread:$0]  %s8, 2048, %s91, [#allocation13], 128, 128, 8
    $region37: #{tpu_custom_call.1} parent=1 // pred_fallthru
      _
    // Predicated region
    $region38: #{tpu_custom_call.1} parent=1 // pred_check
      _
    $region39: #{tpu_custom_call.1} parent=1 // pred_check_branch
      %98 = sbr.rel (0) target = $region41
    $region40: #{tpu_custom_call.1} parent=1 // pred_region
      %s100 = ssub.s32 1024, 1024
      %101 = vsyncadd [#allocation13], %s100
      %s102 = sshll.u32 [#allocation14], 4
      %s103 = int_to_ptr.vmem [resolvable:$true] %s102
      %108 = dma.hbm_to_vmem [thread:$0]  %s9, 1024, %s103, [#allocation13], 64, 64, 4
    $region41: #{tpu_custom_call.1} parent=1 // pred_fallthru
      _
    // Predicated region
    $region42: #{tpu_custom_call.1} parent=1 // pred_check
      _
    $region43: #{tpu_custom_call.1} parent=1 // pred_check_branch
      %110 = sbr.rel (0) target = $region45
    $region44: #{tpu_custom_call.1} parent=1 // pred_region
      %s112 = ssub.s32 4096, 4096
      %113 = vsyncadd [#allocation16], %s112
      %s114 = sshll.u32 [#allocation15], 4
      %s115 = int_to_ptr.vmem [resolvable:$true] %s114
      %120 = dma.hbm_to_vmem [thread:$0]  %s10, 4096, %s115, [#allocation16], 256, 256, 16
    $region45: #{tpu_custom_call.1} parent=1 // pred_fallthru
      _
    // Predicated region
    $region46: #{tpu_custom_call.1} parent=1 // pred_check
      _
    $region47: #{tpu_custom_call.1} parent=1 // pred_check_branch
      %122 = sbr.rel (0) target = $region49
    $region48: #{tpu_custom_call.1} parent=1 // pred_region
      %s124 = ssub.s32 6144, 6144
      %125 = vsyncadd [#allocation16], %s124
      %s126 = sshll.u32 [#allocation17], 4
      %s127 = int_to_ptr.vmem [resolvable:$true] %s126
      %132 = dma.hbm_to_vmem [thread:$0]  %s11, 6144, %s127, [#allocation16], 384, 384, 24
    $region49: #{tpu_custom_call.1} parent=1 // pred_fallthru
      _
    // Predicated region
    $region50: #{tpu_custom_call.1} parent=1 // pred_check
      _
    $region51: #{tpu_custom_call.1} parent=1 // pred_check_branch
      %134 = sbr.rel (0) target = $region53
    $region52: #{tpu_custom_call.1} parent=1 // pred_region
      %s136 = ssub.s32 3072, 3072
      %137 = vsyncadd [#allocation19], %s136
      %s138 = sshll.u32 [#allocation18], 4
      %s139 = int_to_ptr.vmem [resolvable:$true] %s138
      %144 = dma.hbm_to_vmem [thread:$0]  %s12, 3072, %s139, [#allocation19], 64, 64, 4
    $region53: #{tpu_custom_call.1} parent=1 // pred_fallthru
      _
    // Predicated region
    $region54: #{tpu_custom_call.1} parent=1 // pred_check
      _
    $region55: #{tpu_custom_call.1} parent=1 // pred_check_branch
      %146 = sbr.rel (0) target = $region57
    $region56: #{tpu_custom_call.1} parent=1 // pred_region
      %147 = dma.done [#allocation4], 16
    $region57: #{tpu_custom_call.1} parent=1 // pred_fallthru
      _
    // Predicated region
    $region58: #{tpu_custom_call.1} parent=1 // pred_check
      _
    $region59: #{tpu_custom_call.1} parent=1 // pred_check_branch
      %149 = sbr.rel (0) target = $region61
    $region60: #{tpu_custom_call.1} parent=1 // pred_region
      %150 = dma.done [#allocation7], 768
    $region61: #{tpu_custom_call.1} parent=1 // pred_fallthru
      _
    // Predicated region
    $region62: #{tpu_custom_call.1} parent=1 // pred_check
      _
    $region63: #{tpu_custom_call.1} parent=1 // pred_check_branch
      %152 = sbr.rel (0) target = $region65
    $region64: #{tpu_custom_call.1} parent=1 // pred_region
      %153 = dma.done [#allocation7], 128
    $region65: #{tpu_custom_call.1} parent=1 // pred_fallthru
      _
    // Predicated region
    $region66: #{tpu_custom_call.1} parent=1 // pred_check
      _
    $region67: #{tpu_custom_call.1} parent=1 // pred_check_branch
      %155 = sbr.rel (0) target = $region69
    $region68: #{tpu_custom_call.1} parent=1 // pred_region
      %156 = dma.done [#allocation10], 128
    $region69: #{tpu_custom_call.1} parent=1 // pred_fallthru
      _
    // Predicated region
    $region70: #{tpu_custom_call.1} parent=1 // pred_check
      _
    $region71: #{tpu_custom_call.1} parent=1 // pred_check_branch
      %158 = sbr.rel (0) target = $region73
    $region72: #{tpu_custom_call.1} parent=1 // pred_region
      %159 = dma.done [#allocation10], 3072
    $region73: #{tpu_custom_call.1} parent=1 // pred_fallthru
      _
    // Predicated region
    $region74: #{tpu_custom_call.1} parent=1 // pred_check
      _
    $region75: #{tpu_custom_call.1} parent=1 // pred_check_branch
      %161 = sbr.rel (0) target = $region77
    $region76: #{tpu_custom_call.1} parent=1 // pred_region
      %162 = dma.done [#allocation13], 2048
    $region77: #{tpu_custom_call.1} parent=1 // pred_fallthru
      _
    // Predicated region
    $region78: #{tpu_custom_call.1} parent=1 // pred_check
      _
    $region79: #{tpu_custom_call.1} parent=1 // pred_check_branch
      %164 = sbr.rel (0) target = $region81
    $region80: #{tpu_custom_call.1} parent=1 // pred_region
      %165 = dma.done [#allocation13], 1024
    $region81: #{tpu_custom_call.1} parent=1 // pred_fallthru
      _
    // Predicated region
    $region82: #{tpu_custom_call.1} parent=1 // pred_check
      _
    $region83: #{tpu_custom_call.1} parent=1 // pred_check_branch
      %167 = sbr.rel (0) target = $region85
    $region84: #{tpu_custom_call.1} parent=1 // pred_region
      %168 = dma.done [#allocation16], 4096
    $region85: #{tpu_custom_call.1} parent=1 // pred_fallthru
      _
    // Predicated region
    $region86: #{tpu_custom_call.1} parent=1 // pred_check
      _
    $region87: #{tpu_custom_call.1} parent=1 // pred_check_branch
      %170 = sbr.rel (0) target = $region89
    $region88: #{tpu_custom_call.1} parent=1 // pred_region
      %171 = dma.done [#allocation16], 6144
    $region89: #{tpu_custom_call.1} parent=1 // pred_fallthru
      _
    // Predicated region
    $region90: #{tpu_custom_call.1} parent=1 // pred_check
      _
    $region91: #{tpu_custom_call.1} parent=1 // pred_check_branch
      %173 = sbr.rel (0) target = $region93
    $region92: #{tpu_custom_call.1} parent=1 // pred_region
      %174 = dma.done [#allocation19], 3072
    $region93: #{tpu_custom_call.1} parent=1 // pred_fallthru
      _
    %v176 = vld [vmem:[%s0] sm:$0xff]
    %v177 = vld [vmem:[%s0 + $0x8] sm:$0xff]
    %v178 = vld [vmem:[%s6] sm:$0xff]
    %v179 = vld [vmem:[%s6 + $0x8] sm:$0xff]
    %v180 = vtanh.pop %v179
    %v181 = vld [vmem:[%s1] sm:$0xff]
    %v182 = vld [vmem:[%s1 + $0x8] sm:$0xff]
    %v183 = vld [vmem:[#allocation3] sm:$0x1]
    %184 = vset.pattern.permute.xlu0 0
    %185 = vperm.xlu0 %184, %v181
    %v186 = vpop.permute.xlu0 %185
    %187 = vset.pattern.permute.xlu0 0
    %188 = vperm.xlu0 %187, %v182
    %v189 = vpop.permute.xlu0 %188
    %v190 = vlaneseq
    %v191 = vshrl.u32 %v190, 7
    %v192 = vsub.s32 0, %v191
    %v193 = vrot.slane %v183, %v192
    %vm194 = vcmp.eq.s32.totalorder %v186, %v193
    %vm195 = vcmp.eq.s32.totalorder %v189, %v193
    %v196 = vsel %vm194, 0.0, -1e+30
    %v197 = vsel %vm195, 0.0, -1e+30
    %v198 = vld [vmem:[#allocation9] sm:$0xff]
    %v199 = vxor.u32 %v198, 2147483648
    %v200 = vmul.f32 %v199, 1.442695
    %v201 = vpow.pop %v200
    %v202 = vadd.f32 %v201, 1.0
    %v203 = vrcp.pop %v202
    %v204 = vmul.f32 1.0, %v203
    %v205 = vmul.f32 %v198, %v204
    %v206 = vlaneseq
    %v207 = vand.u32 %v206, 127
    %vm208 = vcmp.eq.s32.totalorder %v207, %v186
    %vm209 = vcmp.eq.s32.totalorder %v207, %v189
    %v210 = vsel %vm208, 1, 0
    %v211 = vsel %vm209, 1, 0
    %v212 = vcvt.s32.f32 %v210
    %v213 = vcvt.s32.f32 %v211
    %v214 = vpack.c.bf16 %v213, %v212
    %v215 = vpack.c.bf16 %v205, %v205
    %vm216 = vcmask 64512
    %v218 = vsel %vm216, %v214, 0
    %vm220 = vcmask 1043456
    %v222 = vsel %vm220, %v215, 0
    %224 = vmatprep.subr.bf16.mxu0 0
    %225 = vmatpush1.bf16.msra.mxu0 %v222
    %226 = vmatprep.subr.bf16.mxu0 0
    %227 = vmatpush1.bf16.msra.mxu0 0
    %228 = vmatprep.subr.bf16.mxu0 0
    %229 = vmatpush1.bf16.msra.mxu0 0
    %230 = vmatprep.subr.bf16.mxu0 0
    %231 = vmatpush1.bf16.msra.mxu0 0
    %232 = vmatprep.subr.bf16.mxu0 0
    %233 = vmatpush1.bf16.msra.mxu0 0
    %234 = vmatprep.subr.bf16.mxu0 0
    %235 = vmatpush1.bf16.msra.mxu0 0
    %236 = vmatprep.subr.bf16.mxu0 0
    %237 = vmatpush1.bf16.msra.mxu0 0
    %238 = vmatprep.subr.bf16.mxu0 0
    %239 = vmatpush1.bf16.msra.mxu0 0
    %240 = vmatprep.subr.bf16.mxu0 0
    %241 = vmatpush1.bf16.msra.mxu0 0
    %242 = vmatprep.subr.bf16.mxu0 0
    %243 = vmatpush1.bf16.msra.mxu0 0
    %244 = vmatprep.subr.bf16.mxu0 0
    %245 = vmatpush1.bf16.msra.mxu0 0
    %246 = vmatprep.subr.bf16.mxu0 0
    %247 = vmatpush1.bf16.msra.mxu0 0
    %248 = vmatprep.subr.bf16.mxu0 0
    %249 = vmatpush1.bf16.msra.mxu0 0
    %250 = vmatprep.subr.bf16.mxu0 0
    %251 = vmatpush1.bf16.msra.mxu0 0
    %252 = vmatprep.subr.bf16.mxu0 0
    %253 = vmatpush1.bf16.msra.mxu0 0
    %254 = vmatprep.subr.bf16.mxu0 0
    %255 = vmatpush1.bf16.msra.mxu0 0
    %256 = vmatprep.mubr.bf16.mxu0 0
    %257 = vmatmul.mubr.bf16.gmra.mrb[0].mxu0 %v218
    %v258 = vpop.f32.mrb[0].mxu0
    %v259 = vadd.f32 0.0, %v258
    %v260 = vpop.f32.mrb[0].mxu0
    %v261 = vpop.f32.mrb[0].mxu0
    %v262 = vadd.f32 0.0, %v261
    %v263 = vpop.f32.mrb[0].mxu0
    %264 = vdwg.mxu0
    %v265 = vld [vmem:[#allocation15] sm:$0xff]
    %v266 = vld [vmem:[#allocation15 + $0x8] sm:$0xff]
    %v267 = vld [vmem:[#allocation15 + $0x10] sm:$0xff]
    %v268 = vld [vmem:[#allocation15 + $0x18] sm:$0xff]
    %v269 = vld [vmem:[#allocation15 + $0x20] sm:$0xff]
    %v270 = vld [vmem:[#allocation15 + $0x28] sm:$0xff]
    %v271 = vld [vmem:[#allocation15 + $0x30] sm:$0xff]
    %v272 = vld [vmem:[#allocation15 + $0x38] sm:$0xff]
    %v273 = vld [vmem:[#allocation15 + $0x40] sm:$0xff]
    %v274 = vld [vmem:[#allocation15 + $0x48] sm:$0xff]
    %v275 = vld [vmem:[#allocation15 + $0x50] sm:$0xff]
    %v276 = vld [vmem:[#allocation15 + $0x58] sm:$0xff]
    %v277 = vld [vmem:[#allocation15 + $0x60] sm:$0xff]
    %v278 = vld [vmem:[#allocation15 + $0x68] sm:$0xff]
    %v279 = vld [vmem:[#allocation15 + $0x70] sm:$0xff]
    %v280 = vld [vmem:[#allocation15 + $0x78] sm:$0xff]
    %v281 = vld [vmem:[#allocation15 + $0x80] sm:$0xff]
    %v282 = vld [vmem:[#allocation15 + $0x88] sm:$0xff]
    %v283 = vld [vmem:[#allocation15 + $0x90] sm:$0xff]
    %v284 = vld [vmem:[#allocation15 + $0x98] sm:$0xff]
    %v285 = vld [vmem:[#allocation15 + $0xa0] sm:$0xff]
    %v286 = vld [vmem:[#allocation15 + $0xa8] sm:$0xff]
    %v287 = vld [vmem:[#allocation15 + $0xb0] sm:$0xff]
    %v288 = vld [vmem:[#allocation15 + $0xb8] sm:$0xff]
    %v289 = vld [vmem:[#allocation15 + $0xc0] sm:$0xff]
    %v290 = vld [vmem:[#allocation15 + $0xc8] sm:$0xff]
    %v291 = vld [vmem:[#allocation15 + $0xd0] sm:$0xff]
    %v292 = vld [vmem:[#allocation15 + $0xd8] sm:$0xff]
    %v293 = vld [vmem:[#allocation15 + $0xe0] sm:$0xff]
    %v294 = vld [vmem:[#allocation15 + $0xe8] sm:$0xff]
    %v295 = vld [vmem:[#allocation15 + $0xf0] sm:$0xff]
    %v296 = vld [vmem:[#allocation15 + $0xf8] sm:$0xff]
    %v297 = vpack.c.bf16 %v262, %v259
    %v330 = vunpack.c.l.b16 %v265
    %v331 = vunpack.c.h.b16 %v265
    %v332 = vunpack.c.l.b16 %v266
    %v333 = vunpack.c.h.b16 %v266
    %v334 = vunpack.c.l.b16 %v267
    %v335 = vunpack.c.h.b16 %v267
    %v336 = vunpack.c.l.b16 %v268
    %v337 = vunpack.c.h.b16 %v268
    %v338 = vunpack.c.l.b16 %v269
    %v339 = vunpack.c.h.b16 %v269
    %v340 = vunpack.c.l.b16 %v270
    %v341 = vunpack.c.h.b16 %v270
    %v342 = vunpack.c.l.b16 %v271
    %v343 = vunpack.c.h.b16 %v271
    %v344 = vunpack.c.l.b16 %v272
    %v345 = vunpack.c.h.b16 %v272
    %v346 = vunpack.c.l.b16 %v273
    %v347 = vunpack.c.h.b16 %v273
    %v348 = vunpack.c.l.b16 %v274
    %v349 = vunpack.c.h.b16 %v274
    %v350 = vunpack.c.l.b16 %v275
    %v351 = vunpack.c.h.b16 %v275
    %v352 = vunpack.c.l.b16 %v276
    %v353 = vunpack.c.h.b16 %v276
    %v354 = vunpack.c.l.b16 %v277
    %v355 = vunpack.c.h.b16 %v277
    %v356 = vunpack.c.l.b16 %v278
    %v357 = vunpack.c.h.b16 %v278
    %v358 = vunpack.c.l.b16 %v279
    %v359 = vunpack.c.h.b16 %v279
    %v360 = vunpack.c.l.b16 %v280
    %v361 = vunpack.c.h.b16 %v280
    %v362 = vunpack.c.l.b16 %v281
    %v363 = vunpack.c.h.b16 %v281
    %v364 = vunpack.c.l.b16 %v282
    %v365 = vunpack.c.h.b16 %v282
    %v366 = vunpack.c.l.b16 %v283
    %v367 = vunpack.c.h.b16 %v283
    %v368 = vunpack.c.l.b16 %v284
    %v369 = vunpack.c.h.b16 %v284
    %v370 = vunpack.c.l.b16 %v285
    %v371 = vunpack.c.h.b16 %v285
    %v372 = vunpack.c.l.b16 %v286
    %v373 = vunpack.c.h.b16 %v286
    %v374 = vunpack.c.l.b16 %v287
    %v375 = vunpack.c.h.b16 %v287
    %v376 = vunpack.c.l.b16 %v288
    %v377 = vunpack.c.h.b16 %v288
    %v378 = vunpack.c.l.b16 %v289
    %v379 = vunpack.c.h.b16 %v289
    %v380 = vunpack.c.l.b16 %v290
    %v381 = vunpack.c.h.b16 %v290
    %v382 = vunpack.c.l.b16 %v291
    %v383 = vunpack.c.h.b16 %v291
    %v384 = vunpack.c.l.b16 %v292
    %v385 = vunpack.c.h.b16 %v292
    %v386 = vunpack.c.l.b16 %v293
    %v387 = vunpack.c.h.b16 %v293
    %v388 = vunpack.c.l.b16 %v294
    %v389 = vunpack.c.h.b16 %v294
    %v390 = vunpack.c.l.b16 %v295
    %v391 = vunpack.c.h.b16 %v295
    %v392 = vunpack.c.l.b16 %v296
    %v393 = vunpack.c.h.b16 %v296
    %v394 = vpack.c.b16 %v334, %v330
    %v395 = vpack.c.b16 %v335, %v331
    %v396 = vpack.c.b16 %v336, %v332
    %v397 = vpack.c.b16 %v337, %v333
    %v398 = vpack.c.b16 %v342, %v338
    %v399 = vpack.c.b16 %v343, %v339
    %v400 = vpack.c.b16 %v344, %v340
    %v401 = vpack.c.b16 %v345, %v341
    %v402 = vpack.c.b16 %v350, %v346
    %v403 = vpack.c.b16 %v351, %v347
    %v404 = vpack.c.b16 %v352, %v348
    %v405 = vpack.c.b16 %v353, %v349
    %v406 = vpack.c.b16 %v358, %v354
    %v407 = vpack.c.b16 %v359, %v355
    %v408 = vpack.c.b16 %v360, %v356
    %v409 = vpack.c.b16 %v361, %v357
    %v410 = vpack.c.b16 %v366, %v362
    %v411 = vpack.c.b16 %v367, %v363
    %v412 = vpack.c.b16 %v368, %v364
    %v413 = vpack.c.b16 %v369, %v365
    %v414 = vpack.c.b16 %v374, %v370
    %v415 = vpack.c.b16 %v375, %v371
    %v416 = vpack.c.b16 %v376, %v372
    %v417 = vpack.c.b16 %v377, %v373
    %v418 = vpack.c.b16 %v382, %v378
    %v419 = vpack.c.b16 %v383, %v379
    %v420 = vpack.c.b16 %v384, %v380
    %v421 = vpack.c.b16 %v385, %v381
    %v422 = vpack.c.b16 %v390, %v386
    %v423 = vpack.c.b16 %v391, %v387
    %v424 = vpack.c.b16 %v392, %v388
    %v425 = vpack.c.b16 %v393, %v389
    %458 = vmatprep.subr.bf16.mxu0 %v395
    %459 = vmatpush1.bf16.msra.mxu0 %v394
    %460 = vmatprep.subr.bf16.mxu0 %v399
    %461 = vmatpush1.bf16.msra.mxu0 %v398
    %462 = vmatprep.subr.bf16.mxu0 %v403
    %463 = vmatpush1.bf16.msra.mxu0 %v402
    %464 = vmatprep.subr.bf16.mxu0 %v407
    %465 = vmatpush1.bf16.msra.mxu0 %v406
    %466 = vmatprep.subr.bf16.mxu0 %v411
    %467 = vmatpush1.bf16.msra.mxu0 %v410
    %468 = vmatprep.subr.bf16.mxu0 %v415
    %469 = vmatpush1.bf16.msra.mxu0 %v414
    %470 = vmatprep.subr.bf16.mxu0 %v419
    %471 = vmatpush1.bf16.msra.mxu0 %v418
    %472 = vmatprep.subr.bf16.mxu0 %v423
    %473 = vmatpush1.bf16.msra.mxu0 %v422
    %474 = vmatprep.subr.bf16.mxu0 0
    %475 = vmatpush1.bf16.msra.mxu0 0
    %476 = vmatprep.subr.bf16.mxu0 0
    %477 = vmatpush1.bf16.msra.mxu0 0
    %478 = vmatprep.subr.bf16.mxu0 0
    %479 = vmatpush1.bf16.msra.mxu0 0
    %480 = vmatprep.subr.bf16.mxu0 0
    %481 = vmatpush1.bf16.msra.mxu0 0
    %482 = vmatprep.subr.bf16.mxu0 0
    %483 = vmatpush1.bf16.msra.mxu0 0
    %484 = vmatprep.subr.bf16.mxu0 0
    %485 = vmatpush1.bf16.msra.mxu0 0
    %486 = vmatprep.subr.bf16.mxu0 0
    %487 = vmatpush1.bf16.msra.mxu0 0
    %488 = vmatprep.subr.bf16.mxu0 0
    %489 = vmatpush1.bf16.msra.mxu0 0
    %490 = vmatprep.mubr.bf16.mxu0 0
    %491 = vmatmul.mubr.bf16.gmra.mrb[0].mxu0 %v297
    %v492 = vpop.f32.mrb[0].mxu0
    %v493 = vadd.f32 0.0, %v492
    %v494 = vpop.f32.mrb[0].mxu0
    %v495 = vadd.f32 0.0, %v494
    %v496 = vpop.f32.mrb[0].mxu0
    %v497 = vadd.f32 0.0, %v496
    %v498 = vpop.f32.mrb[0].mxu0
    %v499 = vadd.f32 0.0, %v498
    %500 = vdwg.mxu0
    %501 = vmatprep.subr.bf16.mxu0 %v397
    %502 = vmatpush1.bf16.msra.mxu0 %v396
    %503 = vmatprep.subr.bf16.mxu0 %v401
    %504 = vmatpush1.bf16.msra.mxu0 %v400
    %505 = vmatprep.subr.bf16.mxu0 %v405
    %506 = vmatpush1.bf16.msra.mxu0 %v404
    %507 = vmatprep.subr.bf16.mxu0 %v409
    %508 = vmatpush1.bf16.msra.mxu0 %v408
    %509 = vmatprep.subr.bf16.mxu0 %v413
    %510 = vmatpush1.bf16.msra.mxu0 %v412
    %511 = vmatprep.subr.bf16.mxu0 %v417
    %512 = vmatpush1.bf16.msra.mxu0 %v416
    %513 = vmatprep.subr.bf16.mxu0 %v421
    %514 = vmatpush1.bf16.msra.mxu0 %v420
    %515 = vmatprep.subr.bf16.mxu0 %v425
    %516 = vmatpush1.bf16.msra.mxu0 %v424
    %517 = vmatprep.subr.bf16.mxu0 0
    %518 = vmatpush1.bf16.msra.mxu0 0
    %519 = vmatprep.subr.bf16.mxu0 0
    %520 = vmatpush1.bf16.msra.mxu0 0
    %521 = vmatprep.subr.bf16.mxu0 0
    %522 = vmatpush1.bf16.msra.mxu0 0
    %523 = vmatprep.subr.bf16.mxu0 0
    %524 = vmatpush1.bf16.msra.mxu0 0
    %525 = vmatprep.subr.bf16.mxu0 0
    %526 = vmatpush1.bf16.msra.mxu0 0
    %527 = vmatprep.subr.bf16.mxu0 0
    %528 = vmatpush1.bf16.msra.mxu0 0
    %529 = vmatprep.subr.bf16.mxu0 0
    %530 = vmatpush1.bf16.msra.mxu0 0
    %531 = vmatprep.subr.bf16.mxu0 0
    %532 = vmatpush1.bf16.msra.mxu0 0
    %533 = vmatprep.mubr.bf16.mxu0 0
    %534 = vmatmul.mubr.bf16.gmra.mrb[0].mxu0 %v297
    %v535 = vpop.f32.mrb[0].mxu0
    %v536 = vadd.f32 0.0, %v535
    %v537 = vpop.f32.mrb[0].mxu0
    %v538 = vadd.f32 0.0, %v537
    %v539 = vpop.f32.mrb[0].mxu0
    %v540 = vadd.f32 0.0, %v539
    %v541 = vpop.f32.mrb[0].mxu0
    %v542 = vadd.f32 0.0, %v541
    %543 = vdwg.mxu0
    %v544 = vadd.f32 %v493, 1.0
    %v545 = vadd.f32 %v497, 1.0
    %v546 = vlaneseq
    %v547 = vshrl.u32 %v546, 7
    %v548 = vsub.s32 4, %v547
    %v549 = vrot.slane %v179, %v548
    %v550 = vadd.f32 %v544, %v549
    %v551 = vadd.f32 %v545, %v549
    %v552 = vlaneseq
    %v553 = vshrl.u32 %v552, 7
    %v554 = vsub.s32 5, %v553
    %v555 = vrot.slane %v179, %v554
    %v556 = vadd.f32 %v495, %v555
    %v557 = vadd.f32 %v499, %v555
    %v558 = vtanh.pop %v556
    %v559 = vtanh.pop %v557
    %v560 = vadd.f32 %v536, 1.0
    %v561 = vadd.f32 %v540, 1.0
    %v562 = vlaneseq
    %v563 = vshrl.u32 %v562, 7
    %v564 = vsub.s32 6, %v563
    %v565 = vrot.slane %v179, %v564
    %v566 = vadd.f32 %v560, %v565
    %v567 = vadd.f32 %v561, %v565
    %v568 = vlaneseq
    %v569 = vshrl.u32 %v568, 7
    %v570 = vsub.s32 7, %v569
    %v571 = vrot.slane %v179, %v570
    %v572 = vadd.f32 %v538, %v571
    %v573 = vadd.f32 %v542, %v571
    %v574 = vtanh.pop %v572
    %v575 = vtanh.pop %v573
    %v576 = vmul.f32 %v176, %v176
    %v577 = vmul.f32 %v177, %v177
    %578 = vadd.xlane.f32.xlu0 %v576
    %v579 = vpop.xlane.xlu0 %578
    %580 = vadd.xlane.f32.xlu0 %v577
    %v581 = vpop.xlane.xlu0 %580
    %v582 = vrcp.pop 128.0
    %v583 = vmul.f32 %v579, %v582
    %v584 = vmul.f32 %v581, %v582
    %v585 = vadd.f32 %v583, 1e-06
    %v586 = vadd.f32 %v584, 1e-06
    %v587 = vrsqrt.pop %v585
    %v588 = vrsqrt.pop %v586
    %v589 = vmul.f32 %v176, %v587
    %v590 = vmul.f32 %v177, %v588
    %v591 = vlaneseq
    %v592 = vshrl.u32 %v591, 7
    %v593 = vsub.s32 0, %v592
    %v594 = vrot.slane %v178, %v593
    %v595 = vmul.f32 %v589, %v594
    %v596 = vmul.f32 %v590, %v594
    %v597 = vmul.f32 %v595, %v550
    %v598 = vmul.f32 %v596, %v551
    %v599 = vld [vmem:[#allocation11] sm:$0xff]
    %v600 = vld [vmem:[#allocation11 + $0x8] sm:$0xf]
    %v601 = vld [vmem:[#allocation11 + $0xc] sm:$0xff]
    %v602 = vld [vmem:[#allocation11 + $0x14] sm:$0xf]
    %v603 = vld [vmem:[#allocation11 + $0x18] sm:$0xff]
    %v604 = vld [vmem:[#allocation11 + $0x20] sm:$0xf]
    %v605 = vld [vmem:[#allocation11 + $0x24] sm:$0xff]
    %v606 = vld [vmem:[#allocation11 + $0x2c] sm:$0xf]
    %v607 = vld [vmem:[#allocation11 + $0x30] sm:$0xff]
    %v608 = vld [vmem:[#allocation11 + $0x38] sm:$0xf]
    %v609 = vld [vmem:[#allocation11 + $0x3c] sm:$0xff]
    %v610 = vld [vmem:[#allocation11 + $0x44] sm:$0xf]
    %v611 = vld [vmem:[#allocation11 + $0x48] sm:$0xff]
    %v612 = vld [vmem:[#allocation11 + $0x50] sm:$0xf]
    %v613 = vld [vmem:[#allocation11 + $0x54] sm:$0xff]
    %v614 = vld [vmem:[#allocation11 + $0x5c] sm:$0xf]
    %v615 = vld [vmem:[#allocation11 + $0x60] sm:$0xff]
    %v616 = vld [vmem:[#allocation11 + $0x68] sm:$0xf]
    %v617 = vld [vmem:[#allocation11 + $0x6c] sm:$0xff]
    %v618 = vld [vmem:[#allocation11 + $0x74] sm:$0xf]
    %v619 = vld [vmem:[#allocation11 + $0x78] sm:$0xff]
    %v620 = vld [vmem:[#allocation11 + $0x80] sm:$0xf]
    %v621 = vld [vmem:[#allocation11 + $0x84] sm:$0xff]
    %v622 = vld [vmem:[#allocation11 + $0x8c] sm:$0xf]
    %v623 = vld [vmem:[#allocation11 + $0x90] sm:$0xff]
    %v624 = vld [vmem:[#allocation11 + $0x98] sm:$0xf]
    %v625 = vld [vmem:[#allocation11 + $0x9c] sm:$0xff]
    %v626 = vld [vmem:[#allocation11 + $0xa4] sm:$0xf]
    %v627 = vld [vmem:[#allocation11 + $0xa8] sm:$0xff]
    %v628 = vld [vmem:[#allocation11 + $0xb0] sm:$0xf]
    %v629 = vld [vmem:[#allocation11 + $0xb4] sm:$0xff]
    %v630 = vld [vmem:[#allocation11 + $0xbc] sm:$0xf]
    %v631 = vpack.c.bf16 %v598, %v597
    %v664 = vunpack.c.l.b16 %v599
    %v665 = vunpack.c.h.b16 %v599
    %v666 = vunpack.c.l.b16 %v600
    %v667 = vunpack.c.l.b16 %v601
    %v668 = vunpack.c.h.b16 %v601
    %v669 = vunpack.c.l.b16 %v602
    %v670 = vunpack.c.l.b16 %v603
    %v671 = vunpack.c.h.b16 %v603
    %v672 = vunpack.c.l.b16 %v604
    %v673 = vunpack.c.l.b16 %v605
    %v674 = vunpack.c.h.b16 %v605
    %v675 = vunpack.c.l.b16 %v606
    %v676 = vunpack.c.l.b16 %v607
    %v677 = vunpack.c.h.b16 %v607
    %v678 = vunpack.c.l.b16 %v608
    %v679 = vunpack.c.l.b16 %v609
    %v680 = vunpack.c.h.b16 %v609
    %v681 = vunpack.c.l.b16 %v610
    %v682 = vunpack.c.l.b16 %v611
    %v683 = vunpack.c.h.b16 %v611
    %v684 = vunpack.c.l.b16 %v612
    %v685 = vunpack.c.l.b16 %v613
    %v686 = vunpack.c.h.b16 %v613
    %v687 = vunpack.c.l.b16 %v614
    %v688 = vunpack.c.l.b16 %v615
    %v689 = vunpack.c.h.b16 %v615
    %v690 = vunpack.c.l.b16 %v616
    %v691 = vunpack.c.l.b16 %v617
    %v692 = vunpack.c.h.b16 %v617
    %v693 = vunpack.c.l.b16 %v618
    %v694 = vunpack.c.l.b16 %v619
    %v695 = vunpack.c.h.b16 %v619
    %v696 = vunpack.c.l.b16 %v620
    %v697 = vunpack.c.l.b16 %v621
    %v698 = vunpack.c.h.b16 %v621
    %v699 = vunpack.c.l.b16 %v622
    %v700 = vunpack.c.l.b16 %v623
    %v701 = vunpack.c.h.b16 %v623
    %v702 = vunpack.c.l.b16 %v624
    %v703 = vunpack.c.l.b16 %v625
    %v704 = vunpack.c.h.b16 %v625
    %v705 = vunpack.c.l.b16 %v626
    %v706 = vunpack.c.l.b16 %v627
    %v707 = vunpack.c.h.b16 %v627
    %v708 = vunpack.c.l.b16 %v628
    %v709 = vunpack.c.l.b16 %v629
    %v710 = vunpack.c.h.b16 %v629
    %v711 = vunpack.c.l.b16 %v630
    %v712 = vpack.c.b16 %v667, %v664
    %v713 = vpack.c.b16 %v668, %v665
    %v714 = vpack.c.b16 %v669, %v666
    %v715 = vpack.c.b16 %v673, %v670
    %v716 = vpack.c.b16 %v674, %v671
    %v717 = vpack.c.b16 %v675, %v672
    %v718 = vpack.c.b16 %v679, %v676
    %v719 = vpack.c.b16 %v680, %v677
    %v720 = vpack.c.b16 %v681, %v678
    %v721 = vpack.c.b16 %v685, %v682
    %v722 = vpack.c.b16 %v686, %v683
    %v723 = vpack.c.b16 %v687, %v684
    %v724 = vpack.c.b16 %v691, %v688
    %v725 = vpack.c.b16 %v692, %v689
    %v726 = vpack.c.b16 %v693, %v690
    %v727 = vpack.c.b16 %v697, %v694
    %v728 = vpack.c.b16 %v698, %v695
    %v729 = vpack.c.b16 %v699, %v696
    %v730 = vpack.c.b16 %v703, %v700
    %v731 = vpack.c.b16 %v704, %v701
    %v732 = vpack.c.b16 %v705, %v702
    %v733 = vpack.c.b16 %v709, %v706
    %v734 = vpack.c.b16 %v710, %v707
    %v735 = vpack.c.b16 %v711, %v708
    %760 = vmatprep.subr.bf16.mxu0 %v713
    %761 = vmatpush1.bf16.msra.mxu0 %v712
    %762 = vmatprep.subr.bf16.mxu0 %v716
    %763 = vmatpush1.bf16.msra.mxu0 %v715
    %764 = vmatprep.subr.bf16.mxu0 %v719
    %765 = vmatpush1.bf16.msra.mxu0 %v718
    %766 = vmatprep.subr.bf16.mxu0 %v722
    %767 = vmatpush1.bf16.msra.mxu0 %v721
    %768 = vmatprep.subr.bf16.mxu0 %v725
    %769 = vmatpush1.bf16.msra.mxu0 %v724
    %770 = vmatprep.subr.bf16.mxu0 %v728
    %771 = vmatpush1.bf16.msra.mxu0 %v727
    %772 = vmatprep.subr.bf16.mxu0 %v731
    %773 = vmatpush1.bf16.msra.mxu0 %v730
    %774 = vmatprep.subr.bf16.mxu0 %v734
    %775 = vmatpush1.bf16.msra.mxu0 %v733
    %776 = vmatprep.subr.bf16.mxu0 0
    %777 = vmatpush1.bf16.msra.mxu0 0
    %778 = vmatprep.subr.bf16.mxu0 0
    %779 = vmatpush1.bf16.msra.mxu0 0
    %780 = vmatprep.subr.bf16.mxu0 0
    %781 = vmatpush1.bf16.msra.mxu0 0
    %782 = vmatprep.subr.bf16.mxu0 0
    %783 = vmatpush1.bf16.msra.mxu0 0
    %784 = vmatprep.subr.bf16.mxu0 0
    %785 = vmatpush1.bf16.msra.mxu0 0
    %786 = vmatprep.subr.bf16.mxu0 0
    %787 = vmatpush1.bf16.msra.mxu0 0
    %788 = vmatprep.subr.bf16.mxu0 0
    %789 = vmatpush1.bf16.msra.mxu0 0
    %790 = vmatprep.subr.bf16.mxu0 0
    %791 = vmatpush1.bf16.msra.mxu0 0
    %792 = vmatprep.mubr.bf16.mxu0 0
    %793 = vmatmul.mubr.bf16.gmra.mrb[0].mxu0 %v631
    %v794 = vpop.f32.mrb[0].mxu0
    %v795 = vadd.f32 0.0, %v794
    %v796 = vpop.f32.mrb[0].mxu0
    %v797 = vadd.f32 0.0, %v796
    %v798 = vpop.f32.mrb[0].mxu0
    %v799 = vadd.f32 0.0, %v798
    %v800 = vpop.f32.mrb[0].mxu0
    %v801 = vadd.f32 0.0, %v800
    %802 = vdwg.mxu0
    %803 = vmatprep.subr.bf16.mxu0 0
    %804 = vmatpush1.bf16.msra.mxu0 %v714
    %805 = vmatprep.subr.bf16.mxu0 0
    %806 = vmatpush1.bf16.msra.mxu0 %v717
    %807 = vmatprep.subr.bf16.mxu0 0
    %808 = vmatpush1.bf16.msra.mxu0 %v720
    %809 = vmatprep.subr.bf16.mxu0 0
    %810 = vmatpush1.bf16.msra.mxu0 %v723
    %811 = vmatprep.subr.bf16.mxu0 0
    %812 = vmatpush1.bf16.msra.mxu0 %v726
    %813 = vmatprep.subr.bf16.mxu0 0
    %814 = vmatpush1.bf16.msra.mxu0 %v729
    %815 = vmatprep.subr.bf16.mxu0 0
    %816 = vmatpush1.bf16.msra.mxu0 %v732
    %817 = vmatprep.subr.bf16.mxu0 0
    %818 = vmatpush1.bf16.msra.mxu0 %v735
    %819 = vmatprep.subr.bf16.mxu0 0
    %820 = vmatpush1.bf16.msra.mxu0 0
    %821 = vmatprep.subr.bf16.mxu0 0
    %822 = vmatpush1.bf16.msra.mxu0 0
    %823 = vmatprep.subr.bf16.mxu0 0
    %824 = vmatpush1.bf16.msra.mxu0 0
    %825 = vmatprep.subr.bf16.mxu0 0
    %826 = vmatpush1.bf16.msra.mxu0 0
    %827 = vmatprep.subr.bf16.mxu0 0
    %828 = vmatpush1.bf16.msra.mxu0 0
    %829 = vmatprep.subr.bf16.mxu0 0
    %830 = vmatpush1.bf16.msra.mxu0 0
    %831 = vmatprep.subr.bf16.mxu0 0
    %832 = vmatpush1.bf16.msra.mxu0 0
    %833 = vmatprep.subr.bf16.mxu0 0
    %834 = vmatpush1.bf16.msra.mxu0 0
    %835 = vmatprep.mubr.bf16.mxu0 0
    %836 = vmatmul.mubr.bf16.gmra.mrb[0].mxu0 %v631
    %v837 = vpop.f32.mrb[0].mxu0
    %v838 = vadd.f32 0.0, %v837
    %v839 = vpop.f32.mrb[0].mxu0
    %v840 = vpop.f32.mrb[0].mxu0
    %v841 = vadd.f32 0.0, %v840
    %v842 = vpop.f32.mrb[0].mxu0
    %843 = vdwg.mxu0
    %844 = vadd.xlane.f32.xlu0 %v795
    %v845 = vpop.xlane.xlu0 %844
    %846 = vadd.xlane.f32.xlu0 %v799
    %v847 = vpop.xlane.xlu0 %846
    %v848 = vmul.f32 %v845, %v582
    %v849 = vmul.f32 %v847, %v582
    %v850 = vsub.f32 %v795, %v848
    %v851 = vsub.f32 %v799, %v849
    %v852 = vmul.f32 %v850, %v850
    %v853 = vmul.f32 %v851, %v851
    %854 = vadd.xlane.f32.xlu0 %v852
    %v855 = vpop.xlane.xlu0 %854
    %856 = vadd.xlane.f32.xlu0 %v853
    %v857 = vpop.xlane.xlu0 %856
    %v858 = vmul.f32 %v855, %v582
    %v859 = vmul.f32 %v857, %v582
    %v860 = vadd.f32 %v858, 1e-05
    %v861 = vadd.f32 %v859, 1e-05
    %v862 = vrsqrt.pop %v860
    %v863 = vrsqrt.pop %v861
    %v864 = vmul.f32 %v850, %v862
    %v865 = vmul.f32 %v851, %v863
    %v866 = vlaneseq
    %v867 = vshrl.u32 %v866, 7
    %v868 = vsub.s32 5, %v867
    %v869 = vrot.slane %v178, %v868
    %v870 = vmul.f32 %v864, %v869
    %v871 = vmul.f32 %v865, %v869
    %v872 = vlaneseq
    %v873 = vshrl.u32 %v872, 7
    %v874 = vsub.s32 6, %v873
    %v875 = vrot.slane %v178, %v874
    %v876 = vadd.f32 %v870, %v875
    %v877 = vadd.f32 %v871, %v875
    %878 = vadd.xlane.f32.xlu0 %v797
    %v879 = vpop.xlane.xlu0 %878
    %880 = vadd.xlane.f32.xlu0 %v801
    %v881 = vpop.xlane.xlu0 %880
    %v882 = vmul.f32 %v879, %v582
    %v883 = vmul.f32 %v881, %v582
    %v884 = vsub.f32 %v797, %v882
    %v885 = vsub.f32 %v801, %v883
    %v886 = vmul.f32 %v884, %v884
    %v887 = vmul.f32 %v885, %v885
    %888 = vadd.xlane.f32.xlu0 %v886
    %v889 = vpop.xlane.xlu0 %888
    %890 = vadd.xlane.f32.xlu0 %v887
    %v891 = vpop.xlane.xlu0 %890
    %v892 = vmul.f32 %v889, %v582
    %v893 = vmul.f32 %v891, %v582
    %v894 = vadd.f32 %v892, 1e-05
    %v895 = vadd.f32 %v893, 1e-05
    %v896 = vrsqrt.pop %v894
    %v897 = vrsqrt.pop %v895
    %v898 = vmul.f32 %v884, %v896
    %v899 = vmul.f32 %v885, %v897
    %v900 = vlaneseq
    %v901 = vshrl.u32 %v900, 7
    %v902 = vsub.s32 7, %v901
    %v903 = vrot.slane %v178, %v902
    %v904 = vmul.f32 %v898, %v903
    %v905 = vmul.f32 %v899, %v903
    %v906 = vlaneseq
    %v907 = vshrl.u32 %v906, 7
    %v908 = vsub.s32 0, %v907
    %v909 = vrot.slane %v179, %v908
    %v910 = vadd.f32 %v904, %v909
    %v911 = vadd.f32 %v905, %v909
    %v912 = vld [vmem:[#allocation6] sm:$0xff]
    %v913 = vld [vmem:[#allocation6 + $0x8] sm:$0xff]
    %v914 = vld [vmem:[#allocation6 + $0x10] sm:$0xff]
    %v915 = vld [vmem:[#allocation6 + $0x18] sm:$0xff]
    %v916 = vld [vmem:[#allocation6 + $0x20] sm:$0xff]
    %v917 = vld [vmem:[#allocation6 + $0x28] sm:$0xff]
    %918 = vrot.lane.b32.xlu0 %v876, 127
    %v919 = vpop.permute.xlu0 %918
    %920 = vrot.lane.b32.xlu0 %v877, 127
    %v921 = vpop.permute.xlu0 %920
    %922 = vrot.lane.b32.xlu0 %v876, 1
    %v923 = vpop.permute.xlu0 %922
    %924 = vrot.lane.b32.xlu0 %v877, 1
    %v925 = vpop.permute.xlu0 %924
    %v926 = vmul.f32 %v876, %v912
    %v927 = vmul.f32 %v877, %v913
    %v928 = vmul.f32 %v919, %v914
    %v929 = vmul.f32 %v921, %v915
    %v930 = vadd.f32 %v926, %v928
    %v931 = vadd.f32 %v927, %v929
    %v932 = vmul.f32 %v923, %v916
    %v933 = vmul.f32 %v925, %v917
    %v934 = vadd.f32 %v930, %v932
    %v935 = vadd.f32 %v931, %v933
    %v936 = vmul.f32 %v934, 0.17677669
    %v937 = vmul.f32 %v935, 0.17677669
    %938 = vrot.lane.b32.xlu0 %v910, 127
    %v939 = vpop.permute.xlu0 %938
    %940 = vrot.lane.b32.xlu0 %v911, 127
    %v941 = vpop.permute.xlu0 %940
    %942 = vrot.lane.b32.xlu0 %v910, 1
    %v943 = vpop.permute.xlu0 %942
    %944 = vrot.lane.b32.xlu0 %v911, 1
    %v945 = vpop.permute.xlu0 %944
    %v946 = vmul.f32 %v910, %v912
    %v947 = vmul.f32 %v911, %v913
    %v948 = vmul.f32 %v939, %v914
    %v949 = vmul.f32 %v941, %v915
    %v950 = vadd.f32 %v946, %v948
    %v951 = vadd.f32 %v947, %v949
    %v952 = vmul.f32 %v943, %v916
    %v953 = vmul.f32 %v945, %v917
    %v954 = vadd.f32 %v950, %v952
    %v955 = vadd.f32 %v951, %v953
    %v956 = vld [vmem:[#allocation8] sm:$0xff]
    %v957 = vmul.f32 %v956, %v956
    %958 = vadd.xlane.f32.xlu0 %v957
    %v959 = vpop.xlane.xlu0 %958
    %v960 = vmul.f32 %v959, %v582
    %v961 = vadd.f32 %v960, 1e-06
    %v962 = vrsqrt.pop %v961
    %v963 = vmul.f32 %v956, %v962
    %v964 = vlaneseq
    %v965 = vshrl.u32 %v964, 7
    %v966 = vsub.s32 4, %v965
    %v967 = vrot.slane %v178, %v966
    %v968 = vmul.f32 %v963, %v967
    %v969 = vld [vmem:[#allocation12] sm:$0xff]
    %v970 = vld [vmem:[#allocation12 + $0x8] sm:$0xff]
    %v971 = vld [vmem:[#allocation12 + $0x10] sm:$0xff]
    %v972 = vld [vmem:[#allocation12 + $0x18] sm:$0xff]
    %v973 = vld [vmem:[#allocation12 + $0x20] sm:$0xff]
    %v974 = vld [vmem:[#allocation12 + $0x28] sm:$0xff]
    %v975 = vld [vmem:[#allocation12 + $0x30] sm:$0xff]
    %v976 = vld [vmem:[#allocation12 + $0x38] sm:$0xff]
    %v977 = vld [vmem:[#allocation12 + $0x40] sm:$0xff]
    %v978 = vld [vmem:[#allocation12 + $0x48] sm:$0xff]
    %v979 = vld [vmem:[#allocation12 + $0x50] sm:$0xff]
    %v980 = vld [vmem:[#allocation12 + $0x58] sm:$0xff]
    %v981 = vld [vmem:[#allocation12 + $0x60] sm:$0xff]
    %v982 = vld [vmem:[#allocation12 + $0x68] sm:$0xff]
    %v983 = vld [vmem:[#allocation12 + $0x70] sm:$0xff]
    %v984 = vld [vmem:[#allocation12 + $0x78] sm:$0xff]
    %v985 = vpack.c.bf16 %v968, %v968
    %v1002 = vunpack.c.l.b16 %v969
    %v1003 = vunpack.c.h.b16 %v969
    %v1004 = vunpack.c.l.b16 %v970
    %v1005 = vunpack.c.h.b16 %v970
    %v1006 = vunpack.c.l.b16 %v971
    %v1007 = vunpack.c.h.b16 %v971
    %v1008 = vunpack.c.l.b16 %v972
    %v1009 = vunpack.c.h.b16 %v972
    %v1010 = vunpack.c.l.b16 %v973
    %v1011 = vunpack.c.h.b16 %v973
    %v1012 = vunpack.c.l.b16 %v974
    %v1013 = vunpack.c.h.b16 %v974
    %v1014 = vunpack.c.l.b16 %v975
    %v1015 = vunpack.c.h.b16 %v975
    %v1016 = vunpack.c.l.b16 %v976
    %v1017 = vunpack.c.h.b16 %v976
    %v1018 = vunpack.c.l.b16 %v977
    %v1019 = vunpack.c.h.b16 %v977
    %v1020 = vunpack.c.l.b16 %v978
    %v1021 = vunpack.c.h.b16 %v978
    %v1022 = vunpack.c.l.b16 %v979
    %v1023 = vunpack.c.h.b16 %v979
    %v1024 = vunpack.c.l.b16 %v980
    %v1025 = vunpack.c.h.b16 %v980
    %v1026 = vunpack.c.l.b16 %v981
    %v1027 = vunpack.c.h.b16 %v981
    %v1028 = vunpack.c.l.b16 %v982
    %v1029 = vunpack.c.h.b16 %v982
    %v1030 = vunpack.c.l.b16 %v983
    %v1031 = vunpack.c.h.b16 %v983
    %v1032 = vunpack.c.l.b16 %v984
    %v1033 = vunpack.c.h.b16 %v984
    %v1034 = vpack.c.b16 %v1004, %v1002
    %v1035 = vpack.c.b16 %v1005, %v1003
    %v1036 = vpack.c.b16 %v1008, %v1006
    %v1037 = vpack.c.b16 %v1009, %v1007
    %v1038 = vpack.c.b16 %v1012, %v1010
    %v1039 = vpack.c.b16 %v1013, %v1011
    %v1040 = vpack.c.b16 %v1016, %v1014
    %v1041 = vpack.c.b16 %v1017, %v1015
    %v1042 = vpack.c.b16 %v1020, %v1018
    %v1043 = vpack.c.b16 %v1021, %v1019
    %v1044 = vpack.c.b16 %v1024, %v1022
    %v1045 = vpack.c.b16 %v1025, %v1023
    %v1046 = vpack.c.b16 %v1028, %v1026
    %v1047 = vpack.c.b16 %v1029, %v1027
    %v1048 = vpack.c.b16 %v1032, %v1030
    %v1049 = vpack.c.b16 %v1033, %v1031
    %1066 = vmatprep.subr.bf16.mxu0 %v1035
    %1067 = vmatpush1.bf16.msra.mxu0 %v1034
    %1068 = vmatprep.subr.bf16.mxu0 %v1037
    %1069 = vmatpush1.bf16.msra.mxu0 %v1036
    %1070 = vmatprep.subr.bf16.mxu0 %v1039
    %1071 = vmatpush1.bf16.msra.mxu0 %v1038
    %1072 = vmatprep.subr.bf16.mxu0 %v1041
    %1073 = vmatpush1.bf16.msra.mxu0 %v1040
    %1074 = vmatprep.subr.bf16.mxu0 %v1043
    %1075 = vmatpush1.bf16.msra.mxu0 %v1042
    %1076 = vmatprep.subr.bf16.mxu0 %v1045
    %1077 = vmatpush1.bf16.msra.mxu0 %v1044
    %1078 = vmatprep.subr.bf16.mxu0 %v1047
    %1079 = vmatpush1.bf16.msra.mxu0 %v1046
    %1080 = vmatprep.subr.bf16.mxu0 %v1049
    %1081 = vmatpush1.bf16.msra.mxu0 %v1048
    %1082 = vmatprep.subr.bf16.mxu0 0
    %1083 = vmatpush1.bf16.msra.mxu0 0
    %1084 = vmatprep.subr.bf16.mxu0 0
    %1085 = vmatpush1.bf16.msra.mxu0 0
    %1086 = vmatprep.subr.bf16.mxu0 0
    %1087 = vmatpush1.bf16.msra.mxu0 0
    %1088 = vmatprep.subr.bf16.mxu0 0
    %1089 = vmatpush1.bf16.msra.mxu0 0
    %1090 = vmatprep.subr.bf16.mxu0 0
    %1091 = vmatpush1.bf16.msra.mxu0 0
    %1092 = vmatprep.subr.bf16.mxu0 0
    %1093 = vmatpush1.bf16.msra.mxu0 0
    %1094 = vmatprep.subr.bf16.mxu0 0
    %1095 = vmatpush1.bf16.msra.mxu0 0
    %1096 = vmatprep.subr.bf16.mxu0 0
    %1097 = vmatpush1.bf16.msra.mxu0 0
    %1098 = vmatprep.mubr.bf16.mxu0 0
    %1099 = vmatmul.mubr.bf16.gmra.mrb[0].mxu0 %v985
    %v1100 = vpop.f32.mrb[0].mxu0
    %v1101 = vadd.f32 0.0, %v1100
    %v1102 = vpop.f32.mrb[0].mxu0
    %v1103 = vadd.f32 0.0, %v1102
    %v1104 = vpop.f32.mrb[0].mxu0
    %v1105 = vpop.f32.mrb[0].mxu0
    %1106 = vdwg.mxu0
    %1107 = vadd.xlane.f32.xlu0 %v1101
    %v1108 = vpop.xlane.xlu0 %1107
    %v1109 = vmul.f32 %v1108, %v582
    %v1110 = vsub.f32 %v1101, %v1109
    %v1111 = vmul.f32 %v1110, %v1110
    %1112 = vadd.xlane.f32.xlu0 %v1111
    %v1113 = vpop.xlane.xlu0 %1112
    %v1114 = vmul.f32 %v1113, %v582
    %v1115 = vadd.f32 %v1114, 1e-05
    %v1116 = vrsqrt.pop %v1115
    %v1117 = vmul.f32 %v1110, %v1116
    %v1118 = vlaneseq
    %v1119 = vshrl.u32 %v1118, 7
    %v1120 = vsub.s32 1, %v1119
    %v1121 = vrot.slane %v179, %v1120
    %v1122 = vmul.f32 %v1117, %v1121
    %v1123 = vlaneseq
    %v1124 = vshrl.u32 %v1123, 7
    %v1125 = vsub.s32 2, %v1124
    %v1126 = vrot.slane %v179, %v1125
    %v1127 = vadd.f32 %v1122, %v1126
    %1130 = vrot.lane.b32.xlu0 %v936, 96
    %v1131 = vpop.permute.xlu0 %1130
    %1132 = vrot.lane.b32.xlu0 %v937, 96
    %v1133 = vpop.permute.xlu0 %1132
    %1136 = vrot.lane.b32.xlu0 %v936, 64
    %v1137 = vpop.permute.xlu0 %1136
    %1138 = vrot.lane.b32.xlu0 %v937, 64
    %v1139 = vpop.permute.xlu0 %1138
    %1142 = vrot.lane.b32.xlu0 %v936, 32
    %v1143 = vpop.permute.xlu0 %1142
    %1144 = vrot.lane.b32.xlu0 %v937, 32
    %v1145 = vpop.permute.xlu0 %1144
    %v1148 = vpack.c.bf16 %v937, %v936
    %v1149 = vpack.c.bf16 %v1133, %v1131
    %v1150 = vpack.c.bf16 %v1139, %v1137
    %v1151 = vpack.c.bf16 %v1145, %v1143
    %1154 = vrot.lane.b32.xlu0 %v954, 96
    %v1155 = vpop.permute.xlu0 %1154
    %1156 = vrot.lane.b32.xlu0 %v955, 96
    %v1157 = vpop.permute.xlu0 %1156
    %1160 = vrot.lane.b32.xlu0 %v954, 64
    %v1161 = vpop.permute.xlu0 %1160
    %1162 = vrot.lane.b32.xlu0 %v955, 64
    %v1163 = vpop.permute.xlu0 %1162
    %1166 = vrot.lane.b32.xlu0 %v954, 32
    %v1167 = vpop.permute.xlu0 %1166
    %1168 = vrot.lane.b32.xlu0 %v955, 32
    %v1169 = vpop.permute.xlu0 %1168
    %v1172 = vpack.c.bf16 %v955, %v954
    %v1173 = vpack.c.bf16 %v1157, %v1155
    %v1174 = vpack.c.bf16 %v1163, %v1161
    %v1175 = vpack.c.bf16 %v1169, %v1167
    %1178 = vrot.lane.b32.xlu0 %v838, 96
    %v1179 = vpop.permute.xlu0 %1178
    %1180 = vrot.lane.b32.xlu0 %v841, 96
    %v1181 = vpop.permute.xlu0 %1180
    %1184 = vrot.lane.b32.xlu0 %v838, 64
    %v1185 = vpop.permute.xlu0 %1184
    %1186 = vrot.lane.b32.xlu0 %v841, 64
    %v1187 = vpop.permute.xlu0 %1186
    %1190 = vrot.lane.b32.xlu0 %v838, 32
    %v1191 = vpop.permute.xlu0 %1190
    %1192 = vrot.lane.b32.xlu0 %v841, 32
    %v1193 = vpop.permute.xlu0 %1192
    %v1196 = vpack.c.bf16 %v841, %v838
    %v1197 = vpack.c.bf16 %v1181, %v1179
    %v1198 = vpack.c.bf16 %v1187, %v1185
    %v1199 = vpack.c.bf16 %v1193, %v1191
    %1201 = vrot.lane.b32.xlu0 %v1127, 96
    %v1202 = vpop.permute.xlu0 %1201
    %1204 = vrot.lane.b32.xlu0 %v1127, 64
    %v1205 = vpop.permute.xlu0 %1204
    %1207 = vrot.lane.b32.xlu0 %v1127, 32
    %v1208 = vpop.permute.xlu0 %1207
    %v1210 = vpack.c.bf16 %v1127, %v1127
    %v1211 = vpack.c.bf16 %v1202, %v1202
    %v1212 = vpack.c.bf16 %v1205, %v1205
    %v1213 = vpack.c.bf16 %v1208, %v1208
    %1215 = vrot.lane.b32.xlu0 %v1103, 96
    %v1216 = vpop.permute.xlu0 %1215
    %1218 = vrot.lane.b32.xlu0 %v1103, 64
    %v1219 = vpop.permute.xlu0 %1218
    %1221 = vrot.lane.b32.xlu0 %v1103, 32
    %v1222 = vpop.permute.xlu0 %1221
    %v1224 = vpack.c.bf16 %v1103, %v1103
    %v1225 = vpack.c.bf16 %v1216, %v1216
    %v1226 = vpack.c.bf16 %v1219, %v1219
    %v1227 = vpack.c.bf16 %v1222, %v1222
    %vm1228 = vcmask 261120
    %v1230 = vsel %vm1228, %v1148, 0
    %v1233 = vsel %vm1228, %v1172, 0
    %1235 = vmatprep.subr.bf16.mxu0 0
    %1236 = vmatpush1.bf16.xpose.msra.mxu0 %v1233
    %1237 = vmatprep.subr.bf16.mxu0 0
    %1238 = vmatpush1.bf16.xpose.msra.mxu0 0
    %1239 = vmatprep.subr.bf16.mxu0 0
    %1240 = vmatpush1.bf16.xpose.msra.mxu0 0
    %1241 = vmatprep.subr.bf16.mxu0 0
    %1242 = vmatpush1.bf16.xpose.msra.mxu0 0
    %1243 = vmatprep.subr.bf16.mxu0 0
    %1244 = vmatpush1.bf16.xpose.msra.mxu0 0
    %1245 = vmatprep.subr.bf16.mxu0 0
    %1246 = vmatpush1.bf16.xpose.msra.mxu0 0
    %1247 = vmatprep.subr.bf16.mxu0 0
    %1248 = vmatpush1.bf16.xpose.msra.mxu0 0
    %1249 = vmatprep.subr.bf16.mxu0 0
    %1250 = vmatpush1.bf16.xpose.msra.mxu0 0
    %1251 = vmatprep.subr.bf16.mxu0 0
    %1252 = vmatpush1.bf16.xpose.msra.mxu0 0
    %1253 = vmatprep.subr.bf16.mxu0 0
    %1254 = vmatpush1.bf16.xpose.msra.mxu0 0
    %1255 = vmatprep.subr.bf16.mxu0 0
    %1256 = vmatpush1.bf16.xpose.msra.mxu0 0
    %1257 = vmatprep.subr.bf16.mxu0 0
    %1258 = vmatpush1.bf16.xpose.msra.mxu0 0
    %1259 = vmatprep.subr.bf16.mxu0 0
    %1260 = vmatpush1.bf16.xpose.msra.mxu0 0
    %1261 = vmatprep.subr.bf16.mxu0 0
    %1262 = vmatpush1.bf16.xpose.msra.mxu0 0
    %1263 = vmatprep.subr.bf16.mxu0 0
    %1264 = vmatpush1.bf16.xpose.msra.mxu0 0
    %1265 = vmatprep.subr.bf16.mxu0 0
    %1266 = vmatpush1.bf16.xpose.msra.mxu0 0
    %1267 = vmatprep.mubr.bf16.mxu0 0
    %1268 = vmatmul.mubr.bf16.gmra.mrb[0].mxu0 %v1230
    %v1269 = vpop.f32.mrb[0].mxu0
    %v1270 = vadd.f32 %v196, %v1269
    %v1271 = vpop.f32.mrb[0].mxu0
    %v1272 = vpop.f32.mrb[0].mxu0
    %v1273 = vadd.f32 %v197, %v1272
    %v1274 = vpop.f32.mrb[0].mxu0
    %1275 = vdwg.mxu0
    %v1277 = vsel %vm1228, %v1149, 0
    %v1280 = vsel %vm1228, %v1173, 0
    %1282 = vmatprep.subr.bf16.mxu0 0
    %1283 = vmatpush1.bf16.xpose.msra.mxu0 %v1280
    %1284 = vmatprep.subr.bf16.mxu0 0
    %1285 = vmatpush1.bf16.xpose.msra.mxu0 0
    %1286 = vmatprep.subr.bf16.mxu0 0
    %1287 = vmatpush1.bf16.xpose.msra.mxu0 0
    %1288 = vmatprep.subr.bf16.mxu0 0
    %1289 = vmatpush1.bf16.xpose.msra.mxu0 0
    %1290 = vmatprep.subr.bf16.mxu0 0
    %1291 = vmatpush1.bf16.xpose.msra.mxu0 0
    %1292 = vmatprep.subr.bf16.mxu0 0
    %1293 = vmatpush1.bf16.xpose.msra.mxu0 0
    %1294 = vmatprep.subr.bf16.mxu0 0
    %1295 = vmatpush1.bf16.xpose.msra.mxu0 0
    %1296 = vmatprep.subr.bf16.mxu0 0
    %1297 = vmatpush1.bf16.xpose.msra.mxu0 0
    %1298 = vmatprep.subr.bf16.mxu0 0
    %1299 = vmatpush1.bf16.xpose.msra.mxu0 0
    %1300 = vmatprep.subr.bf16.mxu0 0
    %1301 = vmatpush1.bf16.xpose.msra.mxu0 0
    %1302 = vmatprep.subr.bf16.mxu0 0
    %1303 = vmatpush1.bf16.xpose.msra.mxu0 0
    %1304 = vmatprep.subr.bf16.mxu0 0
    %1305 = vmatpush1.bf16.xpose.msra.mxu0 0
    %1306 = vmatprep.subr.bf16.mxu0 0
    %1307 = vmatpush1.bf16.xpose.msra.mxu0 0
    %1308 = vmatprep.subr.bf16.mxu0 0
    %1309 = vmatpush1.bf16.xpose.msra.mxu0 0
    %1310 = vmatprep.subr.bf16.mxu0 0
    %1311 = vmatpush1.bf16.xpose.msra.mxu0 0
    %1312 = vmatprep.subr.bf16.mxu0 0
    %1313 = vmatpush1.bf16.xpose.msra.mxu0 0
    %1314 = vmatprep.mubr.bf16.mxu0 0
    %1315 = vmatmul.mubr.bf16.gmra.mrb[0].mxu0 %v1277
    %v1316 = vpop.f32.mrb[0].mxu0
    %v1317 = vadd.f32 %v196, %v1316
    %v1318 = vpop.f32.mrb[0].mxu0
    %v1319 = vpop.f32.mrb[0].mxu0
    %v1320 = vadd.f32 %v197, %v1319
    %v1321 = vpop.f32.mrb[0].mxu0
    %1322 = vdwg.mxu0
    %v1324 = vsel %vm1228, %v1150, 0
    %v1327 = vsel %vm1228, %v1174, 0
    %1329 = vmatprep.subr.bf16.mxu0 0
    %1330 = vmatpush1.bf16.xpose.msra.mxu0 %v1327
    %1331 = vmatprep.subr.bf16.mxu0 0
    %1332 = vmatpush1.bf16.xpose.msra.mxu0 0
    %1333 = vmatprep.subr.bf16.mxu0 0
    %1334 = vmatpush1.bf16.xpose.msra.mxu0 0
    %1335 = vmatprep.subr.bf16.mxu0 0
    %1336 = vmatpush1.bf16.xpose.msra.mxu0 0
    %1337 = vmatprep.subr.bf16.mxu0 0
    %1338 = vmatpush1.bf16.xpose.msra.mxu0 0
    %1339 = vmatprep.subr.bf16.mxu0 0
    %1340 = vmatpush1.bf16.xpose.msra.mxu0 0
    %1341 = vmatprep.subr.bf16.mxu0 0
    %1342 = vmatpush1.bf16.xpose.msra.mxu0 0
    %1343 = vmatprep.subr.bf16.mxu0 0
    %1344 = vmatpush1.bf16.xpose.msra.mxu0 0
    %1345 = vmatprep.subr.bf16.mxu0 0
    %1346 = vmatpush1.bf16.xpose.msra.mxu0 0
    %1347 = vmatprep.subr.bf16.mxu0 0
    %1348 = vmatpush1.bf16.xpose.msra.mxu0 0
    %1349 = vmatprep.subr.bf16.mxu0 0
    %1350 = vmatpush1.bf16.xpose.msra.mxu0 0
    %1351 = vmatprep.subr.bf16.mxu0 0
    %1352 = vmatpush1.bf16.xpose.msra.mxu0 0
    %1353 = vmatprep.subr.bf16.mxu0 0
    %1354 = vmatpush1.bf16.xpose.msra.mxu0 0
    %1355 = vmatprep.subr.bf16.mxu0 0
    %1356 = vmatpush1.bf16.xpose.msra.mxu0 0
    %1357 = vmatprep.subr.bf16.mxu0 0
    %1358 = vmatpush1.bf16.xpose.msra.mxu0 0
    %1359 = vmatprep.subr.bf16.mxu0 0
    %1360 = vmatpush1.bf16.xpose.msra.mxu0 0
    %1361 = vmatprep.mubr.bf16.mxu0 0
    %1362 = vmatmul.mubr.bf16.gmra.mrb[0].mxu0 %v1324
    %v1363 = vpop.f32.mrb[0].mxu0
    %v1364 = vadd.f32 %v196, %v1363
    %v1365 = vpop.f32.mrb[0].mxu0
    %v1366 = vpop.f32.mrb[0].mxu0
    %v1367 = vadd.f32 %v197, %v1366
    %v1368 = vpop.f32.mrb[0].mxu0
    %1369 = vdwg.mxu0
    %v1371 = vsel %vm1228, %v1151, 0
    %v1374 = vsel %vm1228, %v1175, 0
    %1376 = vmatprep.subr.bf16.mxu0 0
    %1377 = vmatpush1.bf16.xpose.msra.mxu0 %v1374
    %1378 = vmatprep.subr.bf16.mxu0 0
    %1379 = vmatpush1.bf16.xpose.msra.mxu0 0
    %1380 = vmatprep.subr.bf16.mxu0 0
    %1381 = vmatpush1.bf16.xpose.msra.mxu0 0
    %1382 = vmatprep.subr.bf16.mxu0 0
    %1383 = vmatpush1.bf16.xpose.msra.mxu0 0
    %1384 = vmatprep.subr.bf16.mxu0 0
    %1385 = vmatpush1.bf16.xpose.msra.mxu0 0
    %1386 = vmatprep.subr.bf16.mxu0 0
    %1387 = vmatpush1.bf16.xpose.msra.mxu0 0
    %1388 = vmatprep.subr.bf16.mxu0 0
    %1389 = vmatpush1.bf16.xpose.msra.mxu0 0
    %1390 = vmatprep.subr.bf16.mxu0 0
    %1391 = vmatpush1.bf16.xpose.msra.mxu0 0
    %1392 = vmatprep.subr.bf16.mxu0 0
    %1393 = vmatpush1.bf16.xpose.msra.mxu0 0
    %1394 = vmatprep.subr.bf16.mxu0 0
    %1395 = vmatpush1.bf16.xpose.msra.mxu0 0
    %1396 = vmatprep.subr.bf16.mxu0 0
    %1397 = vmatpush1.bf16.xpose.msra.mxu0 0
    %1398 = vmatprep.subr.bf16.mxu0 0
    %1399 = vmatpush1.bf16.xpose.msra.mxu0 0
    %1400 = vmatprep.subr.bf16.mxu0 0
    %1401 = vmatpush1.bf16.xpose.msra.mxu0 0
    %1402 = vmatprep.subr.bf16.mxu0 0
    %1403 = vmatpush1.bf16.xpose.msra.mxu0 0
    %1404 = vmatprep.subr.bf16.mxu0 0
    %1405 = vmatpush1.bf16.xpose.msra.mxu0 0
    %1406 = vmatprep.subr.bf16.mxu0 0
    %1407 = vmatpush1.bf16.xpose.msra.mxu0 0
    %1408 = vmatprep.mubr.bf16.mxu0 0
    %1409 = vmatmul.mubr.bf16.gmra.mrb[0].mxu0 %v1371
    %v1410 = vpop.f32.mrb[0].mxu0
    %v1411 = vadd.f32 %v196, %v1410
    %v1412 = vpop.f32.mrb[0].mxu0
    %v1413 = vpop.f32.mrb[0].mxu0
    %v1414 = vadd.f32 %v197, %v1413
    %v1415 = vpop.f32.mrb[0].mxu0
    %1416 = vdwg.mxu0
    %vm1417 = vcmask 130048
    %v1418 = vsel %vm1417, %v1270, -inf
    %1419 = vmax.xlane.f32.xlu0 %v1418
    %v1420 = vpop.xlane.xlu0 %1419
    %v1421 = vsel %vm1417, %v1273, -inf
    %1422 = vmax.xlane.f32.xlu0 %v1421
    %v1423 = vpop.xlane.xlu0 %1422
    %v1424 = vsel %vm1417, %v1317, -inf
    %1425 = vmax.xlane.f32.xlu0 %v1424
    %v1426 = vpop.xlane.xlu0 %1425
    %v1427 = vsel %vm1417, %v1320, -inf
    %1428 = vmax.xlane.f32.xlu0 %v1427
    %v1429 = vpop.xlane.xlu0 %1428
    %v1430 = vsel %vm1417, %v1364, -inf
    %1431 = vmax.xlane.f32.xlu0 %v1430
    %v1432 = vpop.xlane.xlu0 %1431
    %v1433 = vsel %vm1417, %v1367, -inf
    %1434 = vmax.xlane.f32.xlu0 %v1433
    %v1435 = vpop.xlane.xlu0 %1434
    %v1436 = vsel %vm1417, %v1411, -inf
    %1437 = vmax.xlane.f32.xlu0 %v1436
    %v1438 = vpop.xlane.xlu0 %1437
    %v1439 = vsel %vm1417, %v1414, -inf
    %1440 = vmax.xlane.f32.xlu0 %v1439
    %v1441 = vpop.xlane.xlu0 %1440
    %v1442 = vsub.f32 %v1270, %v1420
    %v1443 = vsub.f32 %v1273, %v1423
    %v1444 = vsub.f32 %v1317, %v1426
    %v1445 = vsub.f32 %v1320, %v1429
    %v1446 = vsub.f32 %v1364, %v1432
    %v1447 = vsub.f32 %v1367, %v1435
    %v1448 = vsub.f32 %v1411, %v1438
    %v1449 = vsub.f32 %v1414, %v1441
    %v1450 = vmul.f32 %v1442, 1.442695
    %v1451 = vpow.pop %v1450
    %v1452 = vmul.f32 %v1443, 1.442695
    %v1453 = vpow.pop %v1452
    %v1454 = vmul.f32 %v1444, 1.442695
    %v1455 = vpow.pop %v1454
    %v1456 = vmul.f32 %v1445, 1.442695
    %v1457 = vpow.pop %v1456
    %v1458 = vmul.f32 %v1446, 1.442695
    %v1459 = vpow.pop %v1458
    %v1460 = vmul.f32 %v1447, 1.442695
    %v1461 = vpow.pop %v1460
    %v1462 = vmul.f32 %v1448, 1.442695
    %v1463 = vpow.pop %v1462
    %v1464 = vmul.f32 %v1449, 1.442695
    %v1465 = vpow.pop %v1464
    %v1466 = vsel %vm1417, %v1451, 0.0
    %1467 = vadd.xlane.f32.xlu0 %v1466
    %v1468 = vpop.xlane.xlu0 %1467
    %v1469 = vsel %vm1417, %v1453, 0.0
    %1470 = vadd.xlane.f32.xlu0 %v1469
    %v1471 = vpop.xlane.xlu0 %1470
    %v1472 = vsel %vm1417, %v1455, 0.0
    %1473 = vadd.xlane.f32.xlu0 %v1472
    %v1474 = vpop.xlane.xlu0 %1473
    %v1475 = vsel %vm1417, %v1457, 0.0
    %1476 = vadd.xlane.f32.xlu0 %v1475
    %v1477 = vpop.xlane.xlu0 %1476
    %v1478 = vsel %vm1417, %v1459, 0.0
    %1479 = vadd.xlane.f32.xlu0 %v1478
    %v1480 = vpop.xlane.xlu0 %1479
    %v1481 = vsel %vm1417, %v1461, 0.0
    %1482 = vadd.xlane.f32.xlu0 %v1481
    %v1483 = vpop.xlane.xlu0 %1482
    %v1484 = vsel %vm1417, %v1463, 0.0
    %1485 = vadd.xlane.f32.xlu0 %v1484
    %v1486 = vpop.xlane.xlu0 %1485
    %v1487 = vsel %vm1417, %v1465, 0.0
    %1488 = vadd.xlane.f32.xlu0 %v1487
    %v1489 = vpop.xlane.xlu0 %1488
    %v1490 = vrcp.pop %v1468
    %v1491 = vrcp.pop %v1471
    %v1492 = vrcp.pop %v1474
    %v1493 = vrcp.pop %v1477
    %v1494 = vrcp.pop %v1480
    %v1495 = vrcp.pop %v1483
    %v1496 = vrcp.pop %v1486
    %v1497 = vrcp.pop %v1489
    %v1498 = vmul.f32 %v1451, %v1490
    %v1499 = vmul.f32 %v1453, %v1491
    %v1500 = vmul.f32 %v1455, %v1492
    %v1501 = vmul.f32 %v1457, %v1493
    %v1502 = vmul.f32 %v1459, %v1494
    %v1503 = vmul.f32 %v1461, %v1495
    %v1504 = vmul.f32 %v1463, %v1496
    %v1505 = vmul.f32 %v1465, %v1497
    %v1506 = vpack.c.bf16 %v1499, %v1498
    %v1507 = vpack.c.bf16 %v1501, %v1500
    %v1508 = vpack.c.bf16 %v1503, %v1502
    %v1509 = vpack.c.bf16 %v1505, %v1504
    %v1511 = vsel %vm1417, %v1506, 0
    %1513 = vmatprep.subr.bf16.mxu0 0
    %1514 = vmatpush1.bf16.msra.mxu0 %v1196
    %1515 = vmatprep.subr.bf16.mxu0 0
    %1516 = vmatpush1.bf16.msra.mxu0 0
    %1517 = vmatprep.subr.bf16.mxu0 0
    %1518 = vmatpush1.bf16.msra.mxu0 0
    %1519 = vmatprep.subr.bf16.mxu0 0
    %1520 = vmatpush1.bf16.msra.mxu0 0
    %1521 = vmatprep.subr.bf16.mxu0 0
    %1522 = vmatpush1.bf16.msra.mxu0 0
    %1523 = vmatprep.subr.bf16.mxu0 0
    %1524 = vmatpush1.bf16.msra.mxu0 0
    %1525 = vmatprep.subr.bf16.mxu0 0
    %1526 = vmatpush1.bf16.msra.mxu0 0
    %1527 = vmatprep.subr.bf16.mxu0 0
    %1528 = vmatpush1.bf16.msra.mxu0 0
    %1529 = vmatprep.subr.bf16.mxu0 0
    %1530 = vmatpush1.bf16.msra.mxu0 0
    %1531 = vmatprep.subr.bf16.mxu0 0
    %1532 = vmatpush1.bf16.msra.mxu0 0
    %1533 = vmatprep.subr.bf16.mxu0 0
    %1534 = vmatpush1.bf16.msra.mxu0 0
    %1535 = vmatprep.subr.bf16.mxu0 0
    %1536 = vmatpush1.bf16.msra.mxu0 0
    %1537 = vmatprep.subr.bf16.mxu0 0
    %1538 = vmatpush1.bf16.msra.mxu0 0
    %1539 = vmatprep.subr.bf16.mxu0 0
    %1540 = vmatpush1.bf16.msra.mxu0 0
    %1541 = vmatprep.subr.bf16.mxu0 0
    %1542 = vmatpush1.bf16.msra.mxu0 0
    %1543 = vmatprep.subr.bf16.mxu0 0
    %1544 = vmatpush1.bf16.msra.mxu0 0
    %1545 = vmatprep.mubr.bf16.mxu0 0
    %1546 = vmatmul.mubr.bf16.gmra.mrb[0].mxu0 %v1511
    %v1547 = vpop.f32.mrb[0].mxu0
    %v1548 = vadd.f32 0.0, %v1547
    %v1549 = vpop.f32.mrb[0].mxu0
    %v1550 = vpop.f32.mrb[0].mxu0
    %v1551 = vadd.f32 0.0, %v1550
    %v1552 = vpop.f32.mrb[0].mxu0
    %1553 = vdwg.mxu0
    %v1555 = vsel %vm1417, %v1507, 0
    %1557 = vmatprep.subr.bf16.mxu0 0
    %1558 = vmatpush1.bf16.msra.mxu0 %v1197
    %1559 = vmatprep.subr.bf16.mxu0 0
    %1560 = vmatpush1.bf16.msra.mxu0 0
    %1561 = vmatprep.subr.bf16.mxu0 0
    %1562 = vmatpush1.bf16.msra.mxu0 0
    %1563 = vmatprep.subr.bf16.mxu0 0
    %1564 = vmatpush1.bf16.msra.mxu0 0
    %1565 = vmatprep.subr.bf16.mxu0 0
    %1566 = vmatpush1.bf16.msra.mxu0 0
    %1567 = vmatprep.subr.bf16.mxu0 0
    %1568 = vmatpush1.bf16.msra.mxu0 0
    %1569 = vmatprep.subr.bf16.mxu0 0
    %1570 = vmatpush1.bf16.msra.mxu0 0
    %1571 = vmatprep.subr.bf16.mxu0 0
    %1572 = vmatpush1.bf16.msra.mxu0 0
    %1573 = vmatprep.subr.bf16.mxu0 0
    %1574 = vmatpush1.bf16.msra.mxu0 0
    %1575 = vmatprep.subr.bf16.mxu0 0
    %1576 = vmatpush1.bf16.msra.mxu0 0
    %1577 = vmatprep.subr.bf16.mxu0 0
    %1578 = vmatpush1.bf16.msra.mxu0 0
    %1579 = vmatprep.subr.bf16.mxu0 0
    %1580 = vmatpush1.bf16.msra.mxu0 0
    %1581 = vmatprep.subr.bf16.mxu0 0
    %1582 = vmatpush1.bf16.msra.mxu0 0
    %1583 = vmatprep.subr.bf16.mxu0 0
    %1584 = vmatpush1.bf16.msra.mxu0 0
    %1585 = vmatprep.subr.bf16.mxu0 0
    %1586 = vmatpush1.bf16.msra.mxu0 0
    %1587 = vmatprep.subr.bf16.mxu0 0
    %1588 = vmatpush1.bf16.msra.mxu0 0
    %1589 = vmatprep.mubr.bf16.mxu0 0
    %1590 = vmatmul.mubr.bf16.gmra.mrb[0].mxu0 %v1555
    %v1591 = vpop.f32.mrb[0].mxu0
    %v1592 = vadd.f32 0.0, %v1591
    %v1593 = vpop.f32.mrb[0].mxu0
    %v1594 = vpop.f32.mrb[0].mxu0
    %v1595 = vadd.f32 0.0, %v1594
    %v1596 = vpop.f32.mrb[0].mxu0
    %1597 = vdwg.mxu0
    %v1599 = vsel %vm1417, %v1508, 0
    %1601 = vmatprep.subr.bf16.mxu0 0
    %1602 = vmatpush1.bf16.msra.mxu0 %v1198
    %1603 = vmatprep.subr.bf16.mxu0 0
    %1604 = vmatpush1.bf16.msra.mxu0 0
    %1605 = vmatprep.subr.bf16.mxu0 0
    %1606 = vmatpush1.bf16.msra.mxu0 0
    %1607 = vmatprep.subr.bf16.mxu0 0
    %1608 = vmatpush1.bf16.msra.mxu0 0
    %1609 = vmatprep.subr.bf16.mxu0 0
    %1610 = vmatpush1.bf16.msra.mxu0 0
    %1611 = vmatprep.subr.bf16.mxu0 0
    %1612 = vmatpush1.bf16.msra.mxu0 0
    %1613 = vmatprep.subr.bf16.mxu0 0
    %1614 = vmatpush1.bf16.msra.mxu0 0
    %1615 = vmatprep.subr.bf16.mxu0 0
    %1616 = vmatpush1.bf16.msra.mxu0 0
    %1617 = vmatprep.subr.bf16.mxu0 0
    %1618 = vmatpush1.bf16.msra.mxu0 0
    %1619 = vmatprep.subr.bf16.mxu0 0
    %1620 = vmatpush1.bf16.msra.mxu0 0
    %1621 = vmatprep.subr.bf16.mxu0 0
    %1622 = vmatpush1.bf16.msra.mxu0 0
    %1623 = vmatprep.subr.bf16.mxu0 0
    %1624 = vmatpush1.bf16.msra.mxu0 0
    %1625 = vmatprep.subr.bf16.mxu0 0
    %1626 = vmatpush1.bf16.msra.mxu0 0
    %1627 = vmatprep.subr.bf16.mxu0 0
    %1628 = vmatpush1.bf16.msra.mxu0 0
    %1629 = vmatprep.subr.bf16.mxu0 0
    %1630 = vmatpush1.bf16.msra.mxu0 0
    %1631 = vmatprep.subr.bf16.mxu0 0
    %1632 = vmatpush1.bf16.msra.mxu0 0
    %1633 = vmatprep.mubr.bf16.mxu0 0
    %1634 = vmatmul.mubr.bf16.gmra.mrb[0].mxu0 %v1599
    %v1635 = vpop.f32.mrb[0].mxu0
    %v1636 = vadd.f32 0.0, %v1635
    %v1637 = vpop.f32.mrb[0].mxu0
    %v1638 = vpop.f32.mrb[0].mxu0
    %v1639 = vadd.f32 0.0, %v1638
    %v1640 = vpop.f32.mrb[0].mxu0
    %1641 = vdwg.mxu0
    %v1643 = vsel %vm1417, %v1509, 0
    %1645 = vmatprep.subr.bf16.mxu0 0
    %1646 = vmatpush1.bf16.msra.mxu0 %v1199
    %1647 = vmatprep.subr.bf16.mxu0 0
    %1648 = vmatpush1.bf16.msra.mxu0 0
    %1649 = vmatprep.subr.bf16.mxu0 0
    %1650 = vmatpush1.bf16.msra.mxu0 0
    %1651 = vmatprep.subr.bf16.mxu0 0
    %1652 = vmatpush1.bf16.msra.mxu0 0
    %1653 = vmatprep.subr.bf16.mxu0 0
    %1654 = vmatpush1.bf16.msra.mxu0 0
    %1655 = vmatprep.subr.bf16.mxu0 0
    %1656 = vmatpush1.bf16.msra.mxu0 0
    %1657 = vmatprep.subr.bf16.mxu0 0
    %1658 = vmatpush1.bf16.msra.mxu0 0
    %1659 = vmatprep.subr.bf16.mxu0 0
    %1660 = vmatpush1.bf16.msra.mxu0 0
    %1661 = vmatprep.subr.bf16.mxu0 0
    %1662 = vmatpush1.bf16.msra.mxu0 0
    %1663 = vmatprep.subr.bf16.mxu0 0
    %1664 = vmatpush1.bf16.msra.mxu0 0
    %1665 = vmatprep.subr.bf16.mxu0 0
    %1666 = vmatpush1.bf16.msra.mxu0 0
    %1667 = vmatprep.subr.bf16.mxu0 0
    %1668 = vmatpush1.bf16.msra.mxu0 0
    %1669 = vmatprep.subr.bf16.mxu0 0
    %1670 = vmatpush1.bf16.msra.mxu0 0
    %1671 = vmatprep.subr.bf16.mxu0 0
    %1672 = vmatpush1.bf16.msra.mxu0 0
    %1673 = vmatprep.subr.bf16.mxu0 0
    %1674 = vmatpush1.bf16.msra.mxu0 0
    %1675 = vmatprep.subr.bf16.mxu0 0
    %1676 = vmatpush1.bf16.msra.mxu0 0
    %1677 = vmatprep.mubr.bf16.mxu0 0
    %1678 = vmatmul.mubr.bf16.gmra.mrb[0].mxu0 %v1643
    %v1679 = vpop.f32.mrb[0].mxu0
    %v1680 = vadd.f32 0.0, %v1679
    %v1681 = vpop.f32.mrb[0].mxu0
    %v1682 = vpop.f32.mrb[0].mxu0
    %v1683 = vadd.f32 0.0, %v1682
    %v1684 = vpop.f32.mrb[0].mxu0
    %1685 = vdwg.mxu0
    %1688 = vrot.lane.b32.xlu0 %v196, 112
    %v1689 = vpop.permute.xlu0 %1688
    %1690 = vrot.lane.b32.xlu0 %v197, 112
    %v1691 = vpop.permute.xlu0 %1690
    %v1695 = vsel %vm1228, %v1210, 0
    %1697 = vmatprep.subr.bf16.mxu0 0
    %1698 = vmatpush1.bf16.xpose.msra.mxu0 %v1695
    %1699 = vmatprep.subr.bf16.mxu0 0
    %1700 = vmatpush1.bf16.xpose.msra.mxu0 0
    %1701 = vmatprep.subr.bf16.mxu0 0
    %1702 = vmatpush1.bf16.xpose.msra.mxu0 0
    %1703 = vmatprep.subr.bf16.mxu0 0
    %1704 = vmatpush1.bf16.xpose.msra.mxu0 0
    %1705 = vmatprep.subr.bf16.mxu0 0
    %1706 = vmatpush1.bf16.xpose.msra.mxu0 0
    %1707 = vmatprep.subr.bf16.mxu0 0
    %1708 = vmatpush1.bf16.xpose.msra.mxu0 0
    %1709 = vmatprep.subr.bf16.mxu0 0
    %1710 = vmatpush1.bf16.xpose.msra.mxu0 0
    %1711 = vmatprep.subr.bf16.mxu0 0
    %1712 = vmatpush1.bf16.xpose.msra.mxu0 0
    %1713 = vmatprep.subr.bf16.mxu0 0
    %1714 = vmatpush1.bf16.xpose.msra.mxu0 0
    %1715 = vmatprep.subr.bf16.mxu0 0
    %1716 = vmatpush1.bf16.xpose.msra.mxu0 0
    %1717 = vmatprep.subr.bf16.mxu0 0
    %1718 = vmatpush1.bf16.xpose.msra.mxu0 0
    %1719 = vmatprep.subr.bf16.mxu0 0
    %1720 = vmatpush1.bf16.xpose.msra.mxu0 0
    %1721 = vmatprep.subr.bf16.mxu0 0
    %1722 = vmatpush1.bf16.xpose.msra.mxu0 0
    %1723 = vmatprep.subr.bf16.mxu0 0
    %1724 = vmatpush1.bf16.xpose.msra.mxu0 0
    %1725 = vmatprep.subr.bf16.mxu0 0
    %1726 = vmatpush1.bf16.xpose.msra.mxu0 0
    %1727 = vmatprep.subr.bf16.mxu0 0
    %1728 = vmatpush1.bf16.xpose.msra.mxu0 0
    %1729 = vmatprep.mubr.bf16.mxu0 0
    %1730 = vmatmul.mubr.bf16.gmra.mrb[0].mxu0 %v1230
    %v1731 = vpop.f32.mrb[0].mxu0
    %v1732 = vadd.f32 %v1689, %v1731
    %v1733 = vpop.f32.mrb[0].mxu0
    %v1734 = vpop.f32.mrb[0].mxu0
    %v1735 = vadd.f32 %v1691, %v1734
    %v1736 = vpop.f32.mrb[0].mxu0
    %1737 = vdwg.mxu0
    %v1739 = vsel %vm1228, %v1211, 0
    %1741 = vmatprep.subr.bf16.mxu0 0
    %1742 = vmatpush1.bf16.xpose.msra.mxu0 %v1739
    %1743 = vmatprep.subr.bf16.mxu0 0
    %1744 = vmatpush1.bf16.xpose.msra.mxu0 0
    %1745 = vmatprep.subr.bf16.mxu0 0
    %1746 = vmatpush1.bf16.xpose.msra.mxu0 0
    %1747 = vmatprep.subr.bf16.mxu0 0
    %1748 = vmatpush1.bf16.xpose.msra.mxu0 0
    %1749 = vmatprep.subr.bf16.mxu0 0
    %1750 = vmatpush1.bf16.xpose.msra.mxu0 0
    %1751 = vmatprep.subr.bf16.mxu0 0
    %1752 = vmatpush1.bf16.xpose.msra.mxu0 0
    %1753 = vmatprep.subr.bf16.mxu0 0
    %1754 = vmatpush1.bf16.xpose.msra.mxu0 0
    %1755 = vmatprep.subr.bf16.mxu0 0
    %1756 = vmatpush1.bf16.xpose.msra.mxu0 0
    %1757 = vmatprep.subr.bf16.mxu0 0
    %1758 = vmatpush1.bf16.xpose.msra.mxu0 0
    %1759 = vmatprep.subr.bf16.mxu0 0
    %1760 = vmatpush1.bf16.xpose.msra.mxu0 0
    %1761 = vmatprep.subr.bf16.mxu0 0
    %1762 = vmatpush1.bf16.xpose.msra.mxu0 0
    %1763 = vmatprep.subr.bf16.mxu0 0
    %1764 = vmatpush1.bf16.xpose.msra.mxu0 0
    %1765 = vmatprep.subr.bf16.mxu0 0
    %1766 = vmatpush1.bf16.xpose.msra.mxu0 0
    %1767 = vmatprep.subr.bf16.mxu0 0
    %1768 = vmatpush1.bf16.xpose.msra.mxu0 0
    %1769 = vmatprep.subr.bf16.mxu0 0
    %1770 = vmatpush1.bf16.xpose.msra.mxu0 0
    %1771 = vmatprep.subr.bf16.mxu0 0
    %1772 = vmatpush1.bf16.xpose.msra.mxu0 0
    %1773 = vmatprep.mubr.bf16.mxu0 0
    %1774 = vmatmul.mubr.bf16.gmra.mrb[0].mxu0 %v1277
    %v1775 = vpop.f32.mrb[0].mxu0
    %v1776 = vadd.f32 %v1689, %v1775
    %v1777 = vpop.f32.mrb[0].mxu0
    %v1778 = vpop.f32.mrb[0].mxu0
    %v1779 = vadd.f32 %v1691, %v1778
    %v1780 = vpop.f32.mrb[0].mxu0
    %1781 = vdwg.mxu0
    %v1783 = vsel %vm1228, %v1212, 0
    %1785 = vmatprep.subr.bf16.mxu0 0
    %1786 = vmatpush1.bf16.xpose.msra.mxu0 %v1783
    %1787 = vmatprep.subr.bf16.mxu0 0
    %1788 = vmatpush1.bf16.xpose.msra.mxu0 0
    %1789 = vmatprep.subr.bf16.mxu0 0
    %1790 = vmatpush1.bf16.xpose.msra.mxu0 0
    %1791 = vmatprep.subr.bf16.mxu0 0
    %1792 = vmatpush1.bf16.xpose.msra.mxu0 0
    %1793 = vmatprep.subr.bf16.mxu0 0
    %1794 = vmatpush1.bf16.xpose.msra.mxu0 0
    %1795 = vmatprep.subr.bf16.mxu0 0
    %1796 = vmatpush1.bf16.xpose.msra.mxu0 0
    %1797 = vmatprep.subr.bf16.mxu0 0
    %1798 = vmatpush1.bf16.xpose.msra.mxu0 0
    %1799 = vmatprep.subr.bf16.mxu0 0
    %1800 = vmatpush1.bf16.xpose.msra.mxu0 0
    %1801 = vmatprep.subr.bf16.mxu0 0
    %1802 = vmatpush1.bf16.xpose.msra.mxu0 0
    %1803 = vmatprep.subr.bf16.mxu0 0
    %1804 = vmatpush1.bf16.xpose.msra.mxu0 0
    %1805 = vmatprep.subr.bf16.mxu0 0
    %1806 = vmatpush1.bf16.xpose.msra.mxu0 0
    %1807 = vmatprep.subr.bf16.mxu0 0
    %1808 = vmatpush1.bf16.xpose.msra.mxu0 0
    %1809 = vmatprep.subr.bf16.mxu0 0
    %1810 = vmatpush1.bf16.xpose.msra.mxu0 0
    %1811 = vmatprep.subr.bf16.mxu0 0
    %1812 = vmatpush1.bf16.xpose.msra.mxu0 0
    %1813 = vmatprep.subr.bf16.mxu0 0
    %1814 = vmatpush1.bf16.xpose.msra.mxu0 0
    %1815 = vmatprep.subr.bf16.mxu0 0
    %1816 = vmatpush1.bf16.xpose.msra.mxu0 0
    %1817 = vmatprep.mubr.bf16.mxu0 0
    %1818 = vmatmul.mubr.bf16.gmra.mrb[0].mxu0 %v1324
    %v1819 = vpop.f32.mrb[0].mxu0
    %v1820 = vadd.f32 %v1689, %v1819
    %v1821 = vpop.f32.mrb[0].mxu0
    %v1822 = vpop.f32.mrb[0].mxu0
    %v1823 = vadd.f32 %v1691, %v1822
    %v1824 = vpop.f32.mrb[0].mxu0
    %1825 = vdwg.mxu0
    %v1827 = vsel %vm1228, %v1213, 0
    %1829 = vmatprep.subr.bf16.mxu0 0
    %1830 = vmatpush1.bf16.xpose.msra.mxu0 %v1827
    %1831 = vmatprep.subr.bf16.mxu0 0
    %1832 = vmatpush1.bf16.xpose.msra.mxu0 0
    %1833 = vmatprep.subr.bf16.mxu0 0
    %1834 = vmatpush1.bf16.xpose.msra.mxu0 0
    %1835 = vmatprep.subr.bf16.mxu0 0
    %1836 = vmatpush1.bf16.xpose.msra.mxu0 0
    %1837 = vmatprep.subr.bf16.mxu0 0
    %1838 = vmatpush1.bf16.xpose.msra.mxu0 0
    %1839 = vmatprep.subr.bf16.mxu0 0
    %1840 = vmatpush1.bf16.xpose.msra.mxu0 0
    %1841 = vmatprep.subr.bf16.mxu0 0
    %1842 = vmatpush1.bf16.xpose.msra.mxu0 0
    %1843 = vmatprep.subr.bf16.mxu0 0
    %1844 = vmatpush1.bf16.xpose.msra.mxu0 0
    %1845 = vmatprep.subr.bf16.mxu0 0
    %1846 = vmatpush1.bf16.xpose.msra.mxu0 0
    %1847 = vmatprep.subr.bf16.mxu0 0
    %1848 = vmatpush1.bf16.xpose.msra.mxu0 0
    %1849 = vmatprep.subr.bf16.mxu0 0
    %1850 = vmatpush1.bf16.xpose.msra.mxu0 0
    %1851 = vmatprep.subr.bf16.mxu0 0
    %1852 = vmatpush1.bf16.xpose.msra.mxu0 0
    %1853 = vmatprep.subr.bf16.mxu0 0
    %1854 = vmatpush1.bf16.xpose.msra.mxu0 0
    %1855 = vmatprep.subr.bf16.mxu0 0
    %1856 = vmatpush1.bf16.xpose.msra.mxu0 0
    %1857 = vmatprep.subr.bf16.mxu0 0
    %1858 = vmatpush1.bf16.xpose.msra.mxu0 0
    %1859 = vmatprep.subr.bf16.mxu0 0
    %1860 = vmatpush1.bf16.xpose.msra.mxu0 0
    %1861 = vmatprep.mubr.bf16.mxu0 0
    %1862 = vmatmul.mubr.bf16.gmra.mrb[0].mxu0 %v1371
    %v1863 = vpop.f32.mrb[0].mxu0
    %v1864 = vadd.f32 %v1689, %v1863
    %v1865 = vpop.f32.mrb[0].mxu0
    %v1866 = vpop.f32.mrb[0].mxu0
    %v1867 = vadd.f32 %v1691, %v1866
    %v1868 = vpop.f32.mrb[0].mxu0
    %1869 = vdwg.mxu0
    %v1870 = vsel %vm216, %v1732, -inf
    %1871 = vmax.xlane.f32.xlu0 %v1870
    %v1872 = vpop.xlane.xlu0 %1871
    %v1873 = vsel %vm216, %v1735, -inf
    %1874 = vmax.xlane.f32.xlu0 %v1873
    %v1875 = vpop.xlane.xlu0 %1874
    %v1876 = vsel %vm216, %v1776, -inf
    %1877 = vmax.xlane.f32.xlu0 %v1876
    %v1878 = vpop.xlane.xlu0 %1877
    %v1879 = vsel %vm216, %v1779, -inf
    %1880 = vmax.xlane.f32.xlu0 %v1879
    %v1881 = vpop.xlane.xlu0 %1880
    %v1882 = vsel %vm216, %v1820, -inf
    %1883 = vmax.xlane.f32.xlu0 %v1882
    %v1884 = vpop.xlane.xlu0 %1883
    %v1885 = vsel %vm216, %v1823, -inf
    %1886 = vmax.xlane.f32.xlu0 %v1885
    %v1887 = vpop.xlane.xlu0 %1886
    %v1888 = vsel %vm216, %v1864, -inf
    %1889 = vmax.xlane.f32.xlu0 %v1888
    %v1890 = vpop.xlane.xlu0 %1889
    %v1891 = vsel %vm216, %v1867, -inf
    %1892 = vmax.xlane.f32.xlu0 %v1891
    %v1893 = vpop.xlane.xlu0 %1892
    %v1894 = vsub.f32 %v1732, %v1872
    %v1895 = vsub.f32 %v1735, %v1875
    %v1896 = vsub.f32 %v1776, %v1878
    %v1897 = vsub.f32 %v1779, %v1881
    %v1898 = vsub.f32 %v1820, %v1884
    %v1899 = vsub.f32 %v1823, %v1887
    %v1900 = vsub.f32 %v1864, %v1890
    %v1901 = vsub.f32 %v1867, %v1893
    %v1902 = vmul.f32 %v1894, 1.442695
    %v1903 = vpow.pop %v1902
    %v1904 = vmul.f32 %v1895, 1.442695
    %v1905 = vpow.pop %v1904
    %v1906 = vmul.f32 %v1896, 1.442695
    %v1907 = vpow.pop %v1906
    %v1908 = vmul.f32 %v1897, 1.442695
    %v1909 = vpow.pop %v1908
    %v1910 = vmul.f32 %v1898, 1.442695
    %v1911 = vpow.pop %v1910
    %v1912 = vmul.f32 %v1899, 1.442695
    %v1913 = vpow.pop %v1912
    %v1914 = vmul.f32 %v1900, 1.442695
    %v1915 = vpow.pop %v1914
    %v1916 = vmul.f32 %v1901, 1.442695
    %v1917 = vpow.pop %v1916
    %v1918 = vsel %vm216, %v1903, 0.0
    %1919 = vadd.xlane.f32.xlu0 %v1918
    %v1920 = vpop.xlane.xlu0 %1919
    %v1921 = vsel %vm216, %v1905, 0.0
    %1922 = vadd.xlane.f32.xlu0 %v1921
    %v1923 = vpop.xlane.xlu0 %1922
    %v1924 = vsel %vm216, %v1907, 0.0
    %1925 = vadd.xlane.f32.xlu0 %v1924
    %v1926 = vpop.xlane.xlu0 %1925
    %v1927 = vsel %vm216, %v1909, 0.0
    %1928 = vadd.xlane.f32.xlu0 %v1927
    %v1929 = vpop.xlane.xlu0 %1928
    %v1930 = vsel %vm216, %v1911, 0.0
    %1931 = vadd.xlane.f32.xlu0 %v1930
    %v1932 = vpop.xlane.xlu0 %1931
    %v1933 = vsel %vm216, %v1913, 0.0
    %1934 = vadd.xlane.f32.xlu0 %v1933
    %v1935 = vpop.xlane.xlu0 %1934
    %v1936 = vsel %vm216, %v1915, 0.0
    %1937 = vadd.xlane.f32.xlu0 %v1936
    %v1938 = vpop.xlane.xlu0 %1937
    %v1939 = vsel %vm216, %v1917, 0.0
    %1940 = vadd.xlane.f32.xlu0 %v1939
    %v1941 = vpop.xlane.xlu0 %1940
    %v1942 = vrcp.pop %v1920
    %v1943 = vrcp.pop %v1923
    %v1944 = vrcp.pop %v1926
    %v1945 = vrcp.pop %v1929
    %v1946 = vrcp.pop %v1932
    %v1947 = vrcp.pop %v1935
    %v1948 = vrcp.pop %v1938
    %v1949 = vrcp.pop %v1941
    %v1950 = vmul.f32 %v1903, %v1942
    %v1951 = vmul.f32 %v1905, %v1943
    %v1952 = vmul.f32 %v1907, %v1944
    %v1953 = vmul.f32 %v1909, %v1945
    %v1954 = vmul.f32 %v1911, %v1946
    %v1955 = vmul.f32 %v1913, %v1947
    %v1956 = vmul.f32 %v1915, %v1948
    %v1957 = vmul.f32 %v1917, %v1949
    %v1958 = vpack.c.bf16 %v1951, %v1950
    %v1959 = vpack.c.bf16 %v1953, %v1952
    %v1960 = vpack.c.bf16 %v1955, %v1954
    %v1961 = vpack.c.bf16 %v1957, %v1956
    %v1963 = vsel %vm216, %v1958, 0
    %v1966 = vsel %vm220, %v1224, 0
    %1968 = vmatprep.subr.bf16.mxu0 0
    %1969 = vmatpush1.bf16.msra.mxu0 %v1966
    %1970 = vmatprep.subr.bf16.mxu0 0
    %1971 = vmatpush1.bf16.msra.mxu0 0
    %1972 = vmatprep.subr.bf16.mxu0 0
    %1973 = vmatpush1.bf16.msra.mxu0 0
    %1974 = vmatprep.subr.bf16.mxu0 0
    %1975 = vmatpush1.bf16.msra.mxu0 0
    %1976 = vmatprep.subr.bf16.mxu0 0
    %1977 = vmatpush1.bf16.msra.mxu0 0
    %1978 = vmatprep.subr.bf16.mxu0 0
    %1979 = vmatpush1.bf16.msra.mxu0 0
    %1980 = vmatprep.subr.bf16.mxu0 0
    %1981 = vmatpush1.bf16.msra.mxu0 0
    %1982 = vmatprep.subr.bf16.mxu0 0
    %1983 = vmatpush1.bf16.msra.mxu0 0
    %1984 = vmatprep.subr.bf16.mxu0 0
    %1985 = vmatpush1.bf16.msra.mxu0 0
    %1986 = vmatprep.subr.bf16.mxu0 0
    %1987 = vmatpush1.bf16.msra.mxu0 0
    %1988 = vmatprep.subr.bf16.mxu0 0
    %1989 = vmatpush1.bf16.msra.mxu0 0
    %1990 = vmatprep.subr.bf16.mxu0 0
    %1991 = vmatpush1.bf16.msra.mxu0 0
    %1992 = vmatprep.subr.bf16.mxu0 0
    %1993 = vmatpush1.bf16.msra.mxu0 0
    %1994 = vmatprep.subr.bf16.mxu0 0
    %1995 = vmatpush1.bf16.msra.mxu0 0
    %1996 = vmatprep.subr.bf16.mxu0 0
    %1997 = vmatpush1.bf16.msra.mxu0 0
    %1998 = vmatprep.subr.bf16.mxu0 0
    %1999 = vmatpush1.bf16.msra.mxu0 0
    %2000 = vmatprep.mubr.bf16.mxu0 0
    %2001 = vmatmul.mubr.bf16.gmra.mrb[0].mxu0 %v1963
    %v2002 = vpop.f32.mrb[0].mxu0
    %v2003 = vadd.f32 0.0, %v2002
    %v2004 = vpop.f32.mrb[0].mxu0
    %v2005 = vpop.f32.mrb[0].mxu0
    %v2006 = vadd.f32 0.0, %v2005
    %v2007 = vpop.f32.mrb[0].mxu0
    %2008 = vdwg.mxu0
    %v2010 = vsel %vm216, %v1959, 0
    %v2013 = vsel %vm220, %v1225, 0
    %2015 = vmatprep.subr.bf16.mxu0 0
    %2016 = vmatpush1.bf16.msra.mxu0 %v2013
    %2017 = vmatprep.subr.bf16.mxu0 0
    %2018 = vmatpush1.bf16.msra.mxu0 0
    %2019 = vmatprep.subr.bf16.mxu0 0
    %2020 = vmatpush1.bf16.msra.mxu0 0
    %2021 = vmatprep.subr.bf16.mxu0 0
    %2022 = vmatpush1.bf16.msra.mxu0 0
    %2023 = vmatprep.subr.bf16.mxu0 0
    %2024 = vmatpush1.bf16.msra.mxu0 0
    %2025 = vmatprep.subr.bf16.mxu0 0
    %2026 = vmatpush1.bf16.msra.mxu0 0
    %2027 = vmatprep.subr.bf16.mxu0 0
    %2028 = vmatpush1.bf16.msra.mxu0 0
    %2029 = vmatprep.subr.bf16.mxu0 0
    %2030 = vmatpush1.bf16.msra.mxu0 0
    %2031 = vmatprep.subr.bf16.mxu0 0
    %2032 = vmatpush1.bf16.msra.mxu0 0
    %2033 = vmatprep.subr.bf16.mxu0 0
    %2034 = vmatpush1.bf16.msra.mxu0 0
    %2035 = vmatprep.subr.bf16.mxu0 0
    %2036 = vmatpush1.bf16.msra.mxu0 0
    %2037 = vmatprep.subr.bf16.mxu0 0
    %2038 = vmatpush1.bf16.msra.mxu0 0
    %2039 = vmatprep.subr.bf16.mxu0 0
    %2040 = vmatpush1.bf16.msra.mxu0 0
    %2041 = vmatprep.subr.bf16.mxu0 0
    %2042 = vmatpush1.bf16.msra.mxu0 0
    %2043 = vmatprep.subr.bf16.mxu0 0
    %2044 = vmatpush1.bf16.msra.mxu0 0
    %2045 = vmatprep.subr.bf16.mxu0 0
    %2046 = vmatpush1.bf16.msra.mxu0 0
    %2047 = vmatprep.mubr.bf16.mxu0 0
    %2048 = vmatmul.mubr.bf16.gmra.mrb[0].mxu0 %v2010
    %v2049 = vpop.f32.mrb[0].mxu0
    %v2050 = vadd.f32 0.0, %v2049
    %v2051 = vpop.f32.mrb[0].mxu0
    %v2052 = vpop.f32.mrb[0].mxu0
    %v2053 = vadd.f32 0.0, %v2052
    %v2054 = vpop.f32.mrb[0].mxu0
    %2055 = vdwg.mxu0
    %v2057 = vsel %vm216, %v1960, 0
    %v2060 = vsel %vm220, %v1226, 0
    %2062 = vmatprep.subr.bf16.mxu0 0
    %2063 = vmatpush1.bf16.msra.mxu0 %v2060
    %2064 = vmatprep.subr.bf16.mxu0 0
    %2065 = vmatpush1.bf16.msra.mxu0 0
    %2066 = vmatprep.subr.bf16.mxu0 0
    %2067 = vmatpush1.bf16.msra.mxu0 0
    %2068 = vmatprep.subr.bf16.mxu0 0
    %2069 = vmatpush1.bf16.msra.mxu0 0
    %2070 = vmatprep.subr.bf16.mxu0 0
    %2071 = vmatpush1.bf16.msra.mxu0 0
    %2072 = vmatprep.subr.bf16.mxu0 0
    %2073 = vmatpush1.bf16.msra.mxu0 0
    %2074 = vmatprep.subr.bf16.mxu0 0
    %2075 = vmatpush1.bf16.msra.mxu0 0
    %2076 = vmatprep.subr.bf16.mxu0 0
    %2077 = vmatpush1.bf16.msra.mxu0 0
    %2078 = vmatprep.subr.bf16.mxu0 0
    %2079 = vmatpush1.bf16.msra.mxu0 0
    %2080 = vmatprep.subr.bf16.mxu0 0
    %2081 = vmatpush1.bf16.msra.mxu0 0
    %2082 = vmatprep.subr.bf16.mxu0 0
    %2083 = vmatpush1.bf16.msra.mxu0 0
    %2084 = vmatprep.subr.bf16.mxu0 0
    %2085 = vmatpush1.bf16.msra.mxu0 0
    %2086 = vmatprep.subr.bf16.mxu0 0
    %2087 = vmatpush1.bf16.msra.mxu0 0
    %2088 = vmatprep.subr.bf16.mxu0 0
    %2089 = vmatpush1.bf16.msra.mxu0 0
    %2090 = vmatprep.subr.bf16.mxu0 0
    %2091 = vmatpush1.bf16.msra.mxu0 0
    %2092 = vmatprep.subr.bf16.mxu0 0
    %2093 = vmatpush1.bf16.msra.mxu0 0
    %2094 = vmatprep.mubr.bf16.mxu0 0
    %2095 = vmatmul.mubr.bf16.gmra.mrb[0].mxu0 %v2057
    %v2096 = vpop.f32.mrb[0].mxu0
    %v2097 = vadd.f32 0.0, %v2096
    %v2098 = vpop.f32.mrb[0].mxu0
    %v2099 = vpop.f32.mrb[0].mxu0
    %v2100 = vadd.f32 0.0, %v2099
    %v2101 = vpop.f32.mrb[0].mxu0
    %2102 = vdwg.mxu0
    %v2104 = vsel %vm216, %v1961, 0
    %v2107 = vsel %vm220, %v1227, 0
    %2109 = vmatprep.subr.bf16.mxu0 0
    %2110 = vmatpush1.bf16.msra.mxu0 %v2107
    %2111 = vmatprep.subr.bf16.mxu0 0
    %2112 = vmatpush1.bf16.msra.mxu0 0
    %2113 = vmatprep.subr.bf16.mxu0 0
    %2114 = vmatpush1.bf16.msra.mxu0 0
    %2115 = vmatprep.subr.bf16.mxu0 0
    %2116 = vmatpush1.bf16.msra.mxu0 0
    %2117 = vmatprep.subr.bf16.mxu0 0
    %2118 = vmatpush1.bf16.msra.mxu0 0
    %2119 = vmatprep.subr.bf16.mxu0 0
    %2120 = vmatpush1.bf16.msra.mxu0 0
    %2121 = vmatprep.subr.bf16.mxu0 0
    %2122 = vmatpush1.bf16.msra.mxu0 0
    %2123 = vmatprep.subr.bf16.mxu0 0
    %2124 = vmatpush1.bf16.msra.mxu0 0
    %2125 = vmatprep.subr.bf16.mxu0 0
    %2126 = vmatpush1.bf16.msra.mxu0 0
    %2127 = vmatprep.subr.bf16.mxu0 0
    %2128 = vmatpush1.bf16.msra.mxu0 0
    %2129 = vmatprep.subr.bf16.mxu0 0
    %2130 = vmatpush1.bf16.msra.mxu0 0
    %2131 = vmatprep.subr.bf16.mxu0 0
    %2132 = vmatpush1.bf16.msra.mxu0 0
    %2133 = vmatprep.subr.bf16.mxu0 0
    %2134 = vmatpush1.bf16.msra.mxu0 0
    %2135 = vmatprep.subr.bf16.mxu0 0
    %2136 = vmatpush1.bf16.msra.mxu0 0
    %2137 = vmatprep.subr.bf16.mxu0 0
    %2138 = vmatpush1.bf16.msra.mxu0 0
    %2139 = vmatprep.subr.bf16.mxu0 0
    %2140 = vmatpush1.bf16.msra.mxu0 0
    %2141 = vmatprep.mubr.bf16.mxu0 0
    %2142 = vmatmul.mubr.bf16.gmra.mrb[0].mxu0 %v2104
    %v2143 = vpop.f32.mrb[0].mxu0
    %v2144 = vadd.f32 0.0, %v2143
    %v2145 = vpop.f32.mrb[0].mxu0
    %v2146 = vpop.f32.mrb[0].mxu0
    %v2147 = vadd.f32 0.0, %v2146
    %v2148 = vpop.f32.mrb[0].mxu0
    %2149 = vdwg.mxu0
    %v2150 = vlaneseq
    %v2151 = vshrl.u32 %v2150, 7
    %v2152 = vsub.s32 3, %v2151
    %v2153 = vrot.slane %v180, %v2152
    %v2154 = vmul.f32 %v2153, %v2003
    %v2155 = vmul.f32 %v2153, %v2006
    %v2156 = vadd.f32 %v1548, %v2154
    %v2157 = vadd.f32 %v1551, %v2155
    %2158 = vst.msk [vmem:[#allocation2] sm:$0xff] %vm1228, %v2156
    %2159 = vst.msk [vmem:[#allocation2 + $0x8] sm:$0xff] %vm1228, %v2157
    %2162 = vrot.lane.b32.xlu0 %v2050, 32
    %v2163 = vpop.permute.xlu0 %2162
    %2164 = vrot.lane.b32.xlu0 %v2053, 32
    %v2165 = vpop.permute.xlu0 %2164
    %v2168 = vmul.f32 %v2153, %v2163
    %v2169 = vmul.f32 %v2153, %v2165
    %2172 = vrot.lane.b32.xlu0 %v2168, 96
    %v2173 = vpop.permute.xlu0 %2172
    %2174 = vrot.lane.b32.xlu0 %v2169, 96
    %v2175 = vpop.permute.xlu0 %2174
    %v2178 = vadd.f32 %v1592, %v2173
    %v2179 = vadd.f32 %v1595, %v2175
    %2182 = vrot.lane.b32.xlu0 %v2178, 32
    %v2183 = vpop.permute.xlu0 %2182
    %2184 = vrot.lane.b32.xlu0 %v2179, 32
    %v2185 = vpop.permute.xlu0 %2184
    %vm2188 = vcmask 523520
    %2189 = vst.msk [vmem:[#allocation2] sm:$0xff] %vm2188, %v2183
    %2190 = vst.msk [vmem:[#allocation2 + $0x8] sm:$0xff] %vm2188, %v2185
    %2193 = vrot.lane.b32.xlu0 %v2097, 64
    %v2194 = vpop.permute.xlu0 %2193
    %2195 = vrot.lane.b32.xlu0 %v2100, 64
    %v2196 = vpop.permute.xlu0 %2195
    %v2199 = vmul.f32 %v2153, %v2194
    %v2200 = vmul.f32 %v2153, %v2196
    %2203 = vrot.lane.b32.xlu0 %v2199, 64
    %v2204 = vpop.permute.xlu0 %2203
    %2205 = vrot.lane.b32.xlu0 %v2200, 64
    %v2206 = vpop.permute.xlu0 %2205
    %v2209 = vadd.f32 %v1636, %v2204
    %v2210 = vadd.f32 %v1639, %v2206
    %2213 = vrot.lane.b32.xlu0 %v2209, 64
    %v2214 = vpop.permute.xlu0 %2213
    %2215 = vrot.lane.b32.xlu0 %v2210, 64
    %v2216 = vpop.permute.xlu0 %2215
    %vm2219 = vcmask 785920
    %2220 = vst.msk [vmem:[#allocation2] sm:$0xff] %vm2219, %v2214
    %2221 = vst.msk [vmem:[#allocation2 + $0x8] sm:$0xff] %vm2219, %v2216
    %2224 = vrot.lane.b32.xlu0 %v2144, 96
    %v2225 = vpop.permute.xlu0 %2224
    %2226 = vrot.lane.b32.xlu0 %v2147, 96
    %v2227 = vpop.permute.xlu0 %2226
    %v2230 = vmul.f32 %v2153, %v2225
    %v2231 = vmul.f32 %v2153, %v2227
    %2234 = vrot.lane.b32.xlu0 %v2230, 32
    %v2235 = vpop.permute.xlu0 %2234
    %2236 = vrot.lane.b32.xlu0 %v2231, 32
    %v2237 = vpop.permute.xlu0 %2236
    %v2240 = vadd.f32 %v1680, %v2235
    %v2241 = vadd.f32 %v1683, %v2237
    %2244 = vrot.lane.b32.xlu0 %v2240, 96
    %v2245 = vpop.permute.xlu0 %2244
    %2246 = vrot.lane.b32.xlu0 %v2241, 96
    %v2247 = vpop.permute.xlu0 %2246
    %vm2250 = vcmask 1048320
    %2251 = vst.msk [vmem:[#allocation2] sm:$0xff] %vm2250, %v2245
    %2252 = vst.msk [vmem:[#allocation2 + $0x8] sm:$0xff] %vm2250, %v2247
    %v2253 = vld [vmem:[#allocation2] sm:$0xff]
    %v2254 = vld [vmem:[#allocation2 + $0x8] sm:$0xff]
    %v2255 = vld [vmem:[#allocation14] sm:$0xf]
    %v2256 = vld [vmem:[#allocation14 + $0x4] sm:$0xf]
    %v2257 = vld [vmem:[#allocation14 + $0x8] sm:$0xf]
    %v2258 = vld [vmem:[#allocation14 + $0xc] sm:$0xf]
    %v2259 = vld [vmem:[#allocation14 + $0x10] sm:$0xf]
    %v2260 = vld [vmem:[#allocation14 + $0x14] sm:$0xf]
    %v2261 = vld [vmem:[#allocation14 + $0x18] sm:$0xf]
    %v2262 = vld [vmem:[#allocation14 + $0x1c] sm:$0xf]
    %v2263 = vld [vmem:[#allocation14 + $0x20] sm:$0xf]
    %v2264 = vld [vmem:[#allocation14 + $0x24] sm:$0xf]
    %v2265 = vld [vmem:[#allocation14 + $0x28] sm:$0xf]
    %v2266 = vld [vmem:[#allocation14 + $0x2c] sm:$0xf]
    %v2267 = vld [vmem:[#allocation14 + $0x30] sm:$0xf]
    %v2268 = vld [vmem:[#allocation14 + $0x34] sm:$0xf]
    %v2269 = vld [vmem:[#allocation14 + $0x38] sm:$0xf]
    %v2270 = vld [vmem:[#allocation14 + $0x3c] sm:$0xf]
    %v2271 = vpack.c.bf16 %v2254, %v2253
    %v2288 = vunpack.c.l.b16 %v2255
    %v2289 = vunpack.c.l.b16 %v2256
    %v2290 = vunpack.c.l.b16 %v2257
    %v2291 = vunpack.c.l.b16 %v2258
    %v2292 = vunpack.c.l.b16 %v2259
    %v2293 = vunpack.c.l.b16 %v2260
    %v2294 = vunpack.c.l.b16 %v2261
    %v2295 = vunpack.c.l.b16 %v2262
    %v2296 = vunpack.c.l.b16 %v2263
    %v2297 = vunpack.c.l.b16 %v2264
    %v2298 = vunpack.c.l.b16 %v2265
    %v2299 = vunpack.c.l.b16 %v2266
    %v2300 = vunpack.c.l.b16 %v2267
    %v2301 = vunpack.c.l.b16 %v2268
    %v2302 = vunpack.c.l.b16 %v2269
    %v2303 = vunpack.c.l.b16 %v2270
    %v2304 = vpack.c.b16 %v2289, %v2288
    %v2305 = vpack.c.b16 %v2291, %v2290
    %v2306 = vpack.c.b16 %v2293, %v2292
    %v2307 = vpack.c.b16 %v2295, %v2294
    %v2308 = vpack.c.b16 %v2297, %v2296
    %v2309 = vpack.c.b16 %v2299, %v2298
    %v2310 = vpack.c.b16 %v2301, %v2300
    %v2311 = vpack.c.b16 %v2303, %v2302
    %2320 = vmatprep.subr.bf16.mxu0 0
    %2321 = vmatpush1.bf16.msra.mxu0 %v2304
    %2322 = vmatprep.subr.bf16.mxu0 0
    %2323 = vmatpush1.bf16.msra.mxu0 %v2305
    %2324 = vmatprep.subr.bf16.mxu0 0
    %2325 = vmatpush1.bf16.msra.mxu0 %v2306
    %2326 = vmatprep.subr.bf16.mxu0 0
    %2327 = vmatpush1.bf16.msra.mxu0 %v2307
    %2328 = vmatprep.subr.bf16.mxu0 0
    %2329 = vmatpush1.bf16.msra.mxu0 %v2308
    %2330 = vmatprep.subr.bf16.mxu0 0
    %2331 = vmatpush1.bf16.msra.mxu0 %v2309
    %2332 = vmatprep.subr.bf16.mxu0 0
    %2333 = vmatpush1.bf16.msra.mxu0 %v2310
    %2334 = vmatprep.subr.bf16.mxu0 0
    %2335 = vmatpush1.bf16.msra.mxu0 %v2311
    %2336 = vmatprep.subr.bf16.mxu0 0
    %2337 = vmatpush1.bf16.msra.mxu0 0
    %2338 = vmatprep.subr.bf16.mxu0 0
    %2339 = vmatpush1.bf16.msra.mxu0 0
    %2340 = vmatprep.subr.bf16.mxu0 0
    %2341 = vmatpush1.bf16.msra.mxu0 0
    %2342 = vmatprep.subr.bf16.mxu0 0
    %2343 = vmatpush1.bf16.msra.mxu0 0
    %2344 = vmatprep.subr.bf16.mxu0 0
    %2345 = vmatpush1.bf16.msra.mxu0 0
    %2346 = vmatprep.subr.bf16.mxu0 0
    %2347 = vmatpush1.bf16.msra.mxu0 0
    %2348 = vmatprep.subr.bf16.mxu0 0
    %2349 = vmatpush1.bf16.msra.mxu0 0
    %2350 = vmatprep.subr.bf16.mxu0 0
    %2351 = vmatpush1.bf16.msra.mxu0 0
    %2352 = vmatprep.mubr.bf16.mxu0 0
    %2353 = vmatmul.mubr.bf16.gmra.mrb[0].mxu0 %v2271
    %v2354 = vpop.f32.mrb[0].mxu0
    %v2355 = vadd.f32 0.0, %v2354
    %v2356 = vpop.f32.mrb[0].mxu0
    %v2357 = vpop.f32.mrb[0].mxu0
    %v2358 = vadd.f32 0.0, %v2357
    %v2359 = vpop.f32.mrb[0].mxu0
    %2360 = vdwg.mxu0
    %v2361 = vmul.f32 %v2355, %v2355
    %v2362 = vmul.f32 %v2358, %v2358
    %2363 = vadd.xlane.f32.xlu0 %v2361
    %v2364 = vpop.xlane.xlu0 %2363
    %2365 = vadd.xlane.f32.xlu0 %v2362
    %v2366 = vpop.xlane.xlu0 %2365
    %v2367 = vmul.f32 %v2364, %v582
    %v2368 = vmul.f32 %v2366, %v582
    %v2369 = vadd.f32 %v2367, 1e-06
    %v2370 = vadd.f32 %v2368, 1e-06
    %v2371 = vrsqrt.pop %v2369
    %v2372 = vrsqrt.pop %v2370
    %v2373 = vmul.f32 %v2355, %v2371
    %v2374 = vmul.f32 %v2358, %v2372
    %v2375 = vlaneseq
    %v2376 = vshrl.u32 %v2375, 7
    %v2377 = vsub.s32 1, %v2376
    %v2378 = vrot.slane %v178, %v2377
    %v2379 = vmul.f32 %v2373, %v2378
    %v2380 = vmul.f32 %v2374, %v2378
    %v2381 = vmul.f32 %v558, %v2379
    %v2382 = vmul.f32 %v559, %v2380
    %v2383 = vadd.f32 %v176, %v2381
    %v2384 = vadd.f32 %v177, %v2382
    %v2385 = vmul.f32 %v2383, %v2383
    %v2386 = vmul.f32 %v2384, %v2384
    %2387 = vadd.xlane.f32.xlu0 %v2385
    %v2388 = vpop.xlane.xlu0 %2387
    %2389 = vadd.xlane.f32.xlu0 %v2386
    %v2390 = vpop.xlane.xlu0 %2389
    %v2391 = vmul.f32 %v2388, %v582
    %v2392 = vmul.f32 %v2390, %v582
    %v2393 = vadd.f32 %v2391, 1e-06
    %v2394 = vadd.f32 %v2392, 1e-06
    %v2395 = vrsqrt.pop %v2393
    %v2396 = vrsqrt.pop %v2394
    %v2397 = vmul.f32 %v2383, %v2395
    %v2398 = vmul.f32 %v2384, %v2396
    %v2399 = vlaneseq
    %v2400 = vshrl.u32 %v2399, 7
    %v2401 = vsub.s32 2, %v2400
    %v2402 = vrot.slane %v178, %v2401
    %v2403 = vmul.f32 %v2397, %v2402
    %v2404 = vmul.f32 %v2398, %v2402
    %v2405 = vmul.f32 %v2403, %v566
    %v2406 = vmul.f32 %v2404, %v567
    %v2407 = vld [vmem:[#allocation17] sm:$0xff]
    %v2408 = vld [vmem:[#allocation17 + $0x8] sm:$0xff]
    %v2409 = vld [vmem:[#allocation17 + $0x10] sm:$0xff]
    %v2410 = vld [vmem:[#allocation17 + $0x18] sm:$0xff]
    %v2411 = vld [vmem:[#allocation17 + $0x20] sm:$0xff]
    %v2412 = vld [vmem:[#allocation17 + $0x28] sm:$0xff]
    %v2413 = vld [vmem:[#allocation17 + $0x30] sm:$0xff]
    %v2414 = vld [vmem:[#allocation17 + $0x38] sm:$0xff]
    %v2415 = vld [vmem:[#allocation17 + $0x40] sm:$0xff]
    %v2416 = vld [vmem:[#allocation17 + $0x48] sm:$0xff]
    %v2417 = vld [vmem:[#allocation17 + $0x50] sm:$0xff]
    %v2418 = vld [vmem:[#allocation17 + $0x58] sm:$0xff]
    %v2419 = vld [vmem:[#allocation17 + $0x60] sm:$0xff]
    %v2420 = vld [vmem:[#allocation17 + $0x68] sm:$0xff]
    %v2421 = vld [vmem:[#allocation17 + $0x70] sm:$0xff]
    %v2422 = vld [vmem:[#allocation17 + $0x78] sm:$0xff]
    %v2423 = vld [vmem:[#allocation17 + $0x80] sm:$0xff]
    %v2424 = vld [vmem:[#allocation17 + $0x88] sm:$0xff]
    %v2425 = vld [vmem:[#allocation17 + $0x90] sm:$0xff]
    %v2426 = vld [vmem:[#allocation17 + $0x98] sm:$0xff]
    %v2427 = vld [vmem:[#allocation17 + $0xa0] sm:$0xff]
    %v2428 = vld [vmem:[#allocation17 + $0xa8] sm:$0xff]
    %v2429 = vld [vmem:[#allocation17 + $0xb0] sm:$0xff]
    %v2430 = vld [vmem:[#allocation17 + $0xb8] sm:$0xff]
    %v2431 = vld [vmem:[#allocation17 + $0xc0] sm:$0xff]
    %v2432 = vld [vmem:[#allocation17 + $0xc8] sm:$0xff]
    %v2433 = vld [vmem:[#allocation17 + $0xd0] sm:$0xff]
    %v2434 = vld [vmem:[#allocation17 + $0xd8] sm:$0xff]
    %v2435 = vld [vmem:[#allocation17 + $0xe0] sm:$0xff]
    %v2436 = vld [vmem:[#allocation17 + $0xe8] sm:$0xff]
    %v2437 = vld [vmem:[#allocation17 + $0xf0] sm:$0xff]
    %v2438 = vld [vmem:[#allocation17 + $0xf8] sm:$0xff]
    %v2439 = vld [vmem:[#allocation17 + $0x100] sm:$0xff]
    %v2440 = vld [vmem:[#allocation17 + $0x108] sm:$0xff]
    %v2441 = vld [vmem:[#allocation17 + $0x110] sm:$0xff]
    %v2442 = vld [vmem:[#allocation17 + $0x118] sm:$0xff]
    %v2443 = vld [vmem:[#allocation17 + $0x120] sm:$0xff]
    %v2444 = vld [vmem:[#allocation17 + $0x128] sm:$0xff]
    %v2445 = vld [vmem:[#allocation17 + $0x130] sm:$0xff]
    %v2446 = vld [vmem:[#allocation17 + $0x138] sm:$0xff]
    %v2447 = vld [vmem:[#allocation17 + $0x140] sm:$0xff]
    %v2448 = vld [vmem:[#allocation17 + $0x148] sm:$0xff]
    %v2449 = vld [vmem:[#allocation17 + $0x150] sm:$0xff]
    %v2450 = vld [vmem:[#allocation17 + $0x158] sm:$0xff]
    %v2451 = vld [vmem:[#allocation17 + $0x160] sm:$0xff]
    %v2452 = vld [vmem:[#allocation17 + $0x168] sm:$0xff]
    %v2453 = vld [vmem:[#allocation17 + $0x170] sm:$0xff]
    %v2454 = vld [vmem:[#allocation17 + $0x178] sm:$0xff]
    %v2455 = vpack.c.bf16 %v2406, %v2405
    %v2504 = vunpack.c.l.b16 %v2407
    %v2505 = vunpack.c.h.b16 %v2407
    %v2506 = vunpack.c.l.b16 %v2408
    %v2507 = vunpack.c.h.b16 %v2408
    %v2508 = vunpack.c.l.b16 %v2409
    %v2509 = vunpack.c.h.b16 %v2409
    %v2510 = vunpack.c.l.b16 %v2410
    %v2511 = vunpack.c.h.b16 %v2410
    %v2512 = vunpack.c.l.b16 %v2411
    %v2513 = vunpack.c.h.b16 %v2411
    %v2514 = vunpack.c.l.b16 %v2412
    %v2515 = vunpack.c.h.b16 %v2412
    %v2516 = vunpack.c.l.b16 %v2413
    %v2517 = vunpack.c.h.b16 %v2413
    %v2518 = vunpack.c.l.b16 %v2414
    %v2519 = vunpack.c.h.b16 %v2414
    %v2520 = vunpack.c.l.b16 %v2415
    %v2521 = vunpack.c.h.b16 %v2415
    %v2522 = vunpack.c.l.b16 %v2416
    %v2523 = vunpack.c.h.b16 %v2416
    %v2524 = vunpack.c.l.b16 %v2417
    %v2525 = vunpack.c.h.b16 %v2417
    %v2526 = vunpack.c.l.b16 %v2418
    %v2527 = vunpack.c.h.b16 %v2418
    %v2528 = vunpack.c.l.b16 %v2419
    %v2529 = vunpack.c.h.b16 %v2419
    %v2530 = vunpack.c.l.b16 %v2420
    %v2531 = vunpack.c.h.b16 %v2420
    %v2532 = vunpack.c.l.b16 %v2421
    %v2533 = vunpack.c.h.b16 %v2421
    %v2534 = vunpack.c.l.b16 %v2422
    %v2535 = vunpack.c.h.b16 %v2422
    %v2536 = vunpack.c.l.b16 %v2423
    %v2537 = vunpack.c.h.b16 %v2423
    %v2538 = vunpack.c.l.b16 %v2424
    %v2539 = vunpack.c.h.b16 %v2424
    %v2540 = vunpack.c.l.b16 %v2425
    %v2541 = vunpack.c.h.b16 %v2425
    %v2542 = vunpack.c.l.b16 %v2426
    %v2543 = vunpack.c.h.b16 %v2426
    %v2544 = vunpack.c.l.b16 %v2427
    %v2545 = vunpack.c.h.b16 %v2427
    %v2546 = vunpack.c.l.b16 %v2428
    %v2547 = vunpack.c.h.b16 %v2428
    %v2548 = vunpack.c.l.b16 %v2429
    %v2549 = vunpack.c.h.b16 %v2429
    %v2550 = vunpack.c.l.b16 %v2430
    %v2551 = vunpack.c.h.b16 %v2430
    %v2552 = vunpack.c.l.b16 %v2431
    %v2553 = vunpack.c.h.b16 %v2431
    %v2554 = vunpack.c.l.b16 %v2432
    %v2555 = vunpack.c.h.b16 %v2432
    %v2556 = vunpack.c.l.b16 %v2433
    %v2557 = vunpack.c.h.b16 %v2433
    %v2558 = vunpack.c.l.b16 %v2434
    %v2559 = vunpack.c.h.b16 %v2434
    %v2560 = vunpack.c.l.b16 %v2435
    %v2561 = vunpack.c.h.b16 %v2435
    %v2562 = vunpack.c.l.b16 %v2436
    %v2563 = vunpack.c.h.b16 %v2436
    %v2564 = vunpack.c.l.b16 %v2437
    %v2565 = vunpack.c.h.b16 %v2437
    %v2566 = vunpack.c.l.b16 %v2438
    %v2567 = vunpack.c.h.b16 %v2438
    %v2568 = vunpack.c.l.b16 %v2439
    %v2569 = vunpack.c.h.b16 %v2439
    %v2570 = vunpack.c.l.b16 %v2440
    %v2571 = vunpack.c.h.b16 %v2440
    %v2572 = vunpack.c.l.b16 %v2441
    %v2573 = vunpack.c.h.b16 %v2441
    %v2574 = vunpack.c.l.b16 %v2442
    %v2575 = vunpack.c.h.b16 %v2442
    %v2576 = vunpack.c.l.b16 %v2443
    %v2577 = vunpack.c.h.b16 %v2443
    %v2578 = vunpack.c.l.b16 %v2444
    %v2579 = vunpack.c.h.b16 %v2444
    %v2580 = vunpack.c.l.b16 %v2445
    %v2581 = vunpack.c.h.b16 %v2445
    %v2582 = vunpack.c.l.b16 %v2446
    %v2583 = vunpack.c.h.b16 %v2446
    %v2584 = vunpack.c.l.b16 %v2447
    %v2585 = vunpack.c.h.b16 %v2447
    %v2586 = vunpack.c.l.b16 %v2448
    %v2587 = vunpack.c.h.b16 %v2448
    %v2588 = vunpack.c.l.b16 %v2449
    %v2589 = vunpack.c.h.b16 %v2449
    %v2590 = vunpack.c.l.b16 %v2450
    %v2591 = vunpack.c.h.b16 %v2450
    %v2592 = vunpack.c.l.b16 %v2451
    %v2593 = vunpack.c.h.b16 %v2451
    %v2594 = vunpack.c.l.b16 %v2452
    %v2595 = vunpack.c.h.b16 %v2452
    %v2596 = vunpack.c.l.b16 %v2453
    %v2597 = vunpack.c.h.b16 %v2453
    %v2598 = vunpack.c.l.b16 %v2454
    %v2599 = vunpack.c.h.b16 %v2454
    %v2600 = vpack.c.b16 %v2510, %v2504
    %v2601 = vpack.c.b16 %v2511, %v2505
    %v2602 = vpack.c.b16 %v2512, %v2506
    %v2603 = vpack.c.b16 %v2513, %v2507
    %v2604 = vpack.c.b16 %v2514, %v2508
    %v2605 = vpack.c.b16 %v2515, %v2509
    %v2606 = vpack.c.b16 %v2522, %v2516
    %v2607 = vpack.c.b16 %v2523, %v2517
    %v2608 = vpack.c.b16 %v2524, %v2518
    %v2609 = vpack.c.b16 %v2525, %v2519
    %v2610 = vpack.c.b16 %v2526, %v2520
    %v2611 = vpack.c.b16 %v2527, %v2521
    %v2612 = vpack.c.b16 %v2534, %v2528
    %v2613 = vpack.c.b16 %v2535, %v2529
    %v2614 = vpack.c.b16 %v2536, %v2530
    %v2615 = vpack.c.b16 %v2537, %v2531
    %v2616 = vpack.c.b16 %v2538, %v2532
    %v2617 = vpack.c.b16 %v2539, %v2533
    %v2618 = vpack.c.b16 %v2546, %v2540
    %v2619 = vpack.c.b16 %v2547, %v2541
    %v2620 = vpack.c.b16 %v2548, %v2542
    %v2621 = vpack.c.b16 %v2549, %v2543
    %v2622 = vpack.c.b16 %v2550, %v2544
    %v2623 = vpack.c.b16 %v2551, %v2545
    %v2624 = vpack.c.b16 %v2558, %v2552
    %v2625 = vpack.c.b16 %v2559, %v2553
    %v2626 = vpack.c.b16 %v2560, %v2554
    %v2627 = vpack.c.b16 %v2561, %v2555
    %v2628 = vpack.c.b16 %v2562, %v2556
    %v2629 = vpack.c.b16 %v2563, %v2557
    %v2630 = vpack.c.b16 %v2570, %v2564
    %v2631 = vpack.c.b16 %v2571, %v2565
    %v2632 = vpack.c.b16 %v2572, %v2566
    %v2633 = vpack.c.b16 %v2573, %v2567
    %v2634 = vpack.c.b16 %v2574, %v2568
    %v2635 = vpack.c.b16 %v2575, %v2569
    %v2636 = vpack.c.b16 %v2582, %v2576
    %v2637 = vpack.c.b16 %v2583, %v2577
    %v2638 = vpack.c.b16 %v2584, %v2578
    %v2639 = vpack.c.b16 %v2585, %v2579
    %v2640 = vpack.c.b16 %v2586, %v2580
    %v2641 = vpack.c.b16 %v2587, %v2581
    %v2642 = vpack.c.b16 %v2594, %v2588
    %v2643 = vpack.c.b16 %v2595, %v2589
    %v2644 = vpack.c.b16 %v2596, %v2590
    %v2645 = vpack.c.b16 %v2597, %v2591
    %v2646 = vpack.c.b16 %v2598, %v2592
    %v2647 = vpack.c.b16 %v2599, %v2593
    %2696 = vmatprep.subr.bf16.mxu0 %v2601
    %2697 = vmatpush1.bf16.msra.mxu0 %v2600
    %2698 = vmatprep.subr.bf16.mxu0 %v2607
    %2699 = vmatpush1.bf16.msra.mxu0 %v2606
    %2700 = vmatprep.subr.bf16.mxu0 %v2613
    %2701 = vmatpush1.bf16.msra.mxu0 %v2612
    %2702 = vmatprep.subr.bf16.mxu0 %v2619
    %2703 = vmatpush1.bf16.msra.mxu0 %v2618
    %2704 = vmatprep.subr.bf16.mxu0 %v2625
    %2705 = vmatpush1.bf16.msra.mxu0 %v2624
    %2706 = vmatprep.subr.bf16.mxu0 %v2631
    %2707 = vmatpush1.bf16.msra.mxu0 %v2630
    %2708 = vmatprep.subr.bf16.mxu0 %v2637
    %2709 = vmatpush1.bf16.msra.mxu0 %v2636
    %2710 = vmatprep.subr.bf16.mxu0 %v2643
    %2711 = vmatpush1.bf16.msra.mxu0 %v2642
    %2712 = vmatprep.subr.bf16.mxu0 0
    %2713 = vmatpush1.bf16.msra.mxu0 0
    %2714 = vmatprep.subr.bf16.mxu0 0
    %2715 = vmatpush1.bf16.msra.mxu0 0
    %2716 = vmatprep.subr.bf16.mxu0 0
    %2717 = vmatpush1.bf16.msra.mxu0 0
    %2718 = vmatprep.subr.bf16.mxu0 0
    %2719 = vmatpush1.bf16.msra.mxu0 0
    %2720 = vmatprep.subr.bf16.mxu0 0
    %2721 = vmatpush1.bf16.msra.mxu0 0
    %2722 = vmatprep.subr.bf16.mxu0 0
    %2723 = vmatpush1.bf16.msra.mxu0 0
    %2724 = vmatprep.subr.bf16.mxu0 0
    %2725 = vmatpush1.bf16.msra.mxu0 0
    %2726 = vmatprep.subr.bf16.mxu0 0
    %2727 = vmatpush1.bf16.msra.mxu0 0
    %2728 = vmatprep.mubr.bf16.mxu0 0
    %2729 = vmatmul.mubr.bf16.gmra.mrb[0].mxu0 %v2455
    %v2730 = vpop.f32.mrb[0].mxu0
    %v2731 = vadd.f32 0.0, %v2730
    %v2732 = vpop.f32.mrb[0].mxu0
    %v2733 = vadd.f32 0.0, %v2732
    %v2734 = vpop.f32.mrb[0].mxu0
    %v2735 = vadd.f32 0.0, %v2734
    %v2736 = vpop.f32.mrb[0].mxu0
    %v2737 = vadd.f32 0.0, %v2736
    %2738 = vdwg.mxu0
    %2739 = vmatprep.subr.bf16.mxu0 %v2603
    %2740 = vmatpush1.bf16.msra.mxu0 %v2602
    %2741 = vmatprep.subr.bf16.mxu0 %v2609
    %2742 = vmatpush1.bf16.msra.mxu0 %v2608
    %2743 = vmatprep.subr.bf16.mxu0 %v2615
    %2744 = vmatpush1.bf16.msra.mxu0 %v2614
    %2745 = vmatprep.subr.bf16.mxu0 %v2621
    %2746 = vmatpush1.bf16.msra.mxu0 %v2620
    %2747 = vmatprep.subr.bf16.mxu0 %v2627
    %2748 = vmatpush1.bf16.msra.mxu0 %v2626
    %2749 = vmatprep.subr.bf16.mxu0 %v2633
    %2750 = vmatpush1.bf16.msra.mxu0 %v2632
    %2751 = vmatprep.subr.bf16.mxu0 %v2639
    %2752 = vmatpush1.bf16.msra.mxu0 %v2638
    %2753 = vmatprep.subr.bf16.mxu0 %v2645
    %2754 = vmatpush1.bf16.msra.mxu0 %v2644
    %2755 = vmatprep.subr.bf16.mxu0 0
    %2756 = vmatpush1.bf16.msra.mxu0 0
    %2757 = vmatprep.subr.bf16.mxu0 0
    %2758 = vmatpush1.bf16.msra.mxu0 0
    %2759 = vmatprep.subr.bf16.mxu0 0
    %2760 = vmatpush1.bf16.msra.mxu0 0
    %2761 = vmatprep.subr.bf16.mxu0 0
    %2762 = vmatpush1.bf16.msra.mxu0 0
    %2763 = vmatprep.subr.bf16.mxu0 0
    %2764 = vmatpush1.bf16.msra.mxu0 0
    %2765 = vmatprep.subr.bf16.mxu0 0
    %2766 = vmatpush1.bf16.msra.mxu0 0
    %2767 = vmatprep.subr.bf16.mxu0 0
    %2768 = vmatpush1.bf16.msra.mxu0 0
    %2769 = vmatprep.subr.bf16.mxu0 0
    %2770 = vmatpush1.bf16.msra.mxu0 0
    %2771 = vmatprep.mubr.bf16.mxu0 0
    %2772 = vmatmul.mubr.bf16.gmra.mrb[0].mxu0 %v2455
    %v2773 = vpop.f32.mrb[0].mxu0
    %v2774 = vadd.f32 0.0, %v2773
    %v2775 = vpop.f32.mrb[0].mxu0
    %v2776 = vadd.f32 0.0, %v2775
    %v2777 = vpop.f32.mrb[0].mxu0
    %v2778 = vadd.f32 0.0, %v2777
    %v2779 = vpop.f32.mrb[0].mxu0
    %v2780 = vadd.f32 0.0, %v2779
    %2781 = vdwg.mxu0
    %2782 = vmatprep.subr.bf16.mxu0 %v2605
    %2783 = vmatpush1.bf16.msra.mxu0 %v2604
    %2784 = vmatprep.subr.bf16.mxu0 %v2611
    %2785 = vmatpush1.bf16.msra.mxu0 %v2610
    %2786 = vmatprep.subr.bf16.mxu0 %v2617
    %2787 = vmatpush1.bf16.msra.mxu0 %v2616
    %2788 = vmatprep.subr.bf16.mxu0 %v2623
    %2789 = vmatpush1.bf16.msra.mxu0 %v2622
    %2790 = vmatprep.subr.bf16.mxu0 %v2629
    %2791 = vmatpush1.bf16.msra.mxu0 %v2628
    %2792 = vmatprep.subr.bf16.mxu0 %v2635
    %2793 = vmatpush1.bf16.msra.mxu0 %v2634
    %2794 = vmatprep.subr.bf16.mxu0 %v2641
    %2795 = vmatpush1.bf16.msra.mxu0 %v2640
    %2796 = vmatprep.subr.bf16.mxu0 %v2647
    %2797 = vmatpush1.bf16.msra.mxu0 %v2646
    %2798 = vmatprep.subr.bf16.mxu0 0
    %2799 = vmatpush1.bf16.msra.mxu0 0
    %2800 = vmatprep.subr.bf16.mxu0 0
    %2801 = vmatpush1.bf16.msra.mxu0 0
    %2802 = vmatprep.subr.bf16.mxu0 0
    %2803 = vmatpush1.bf16.msra.mxu0 0
    %2804 = vmatprep.subr.bf16.mxu0 0
    %2805 = vmatpush1.bf16.msra.mxu0 0
    %2806 = vmatprep.subr.bf16.mxu0 0
    %2807 = vmatpush1.bf16.msra.mxu0 0
    %2808 = vmatprep.subr.bf16.mxu0 0
    %2809 = vmatpush1.bf16.msra.mxu0 0
    %2810 = vmatprep.subr.bf16.mxu0 0
    %2811 = vmatpush1.bf16.msra.mxu0 0
    %2812 = vmatprep.subr.bf16.mxu0 0
    %2813 = vmatpush1.bf16.msra.mxu0 0
    %2814 = vmatprep.mubr.bf16.mxu0 0
    %2815 = vmatmul.mubr.bf16.gmra.mrb[0].mxu0 %v2455
    %v2816 = vpop.f32.mrb[0].mxu0
    %v2817 = vadd.f32 0.0, %v2816
    %v2818 = vpop.f32.mrb[0].mxu0
    %v2819 = vadd.f32 0.0, %v2818
    %v2820 = vpop.f32.mrb[0].mxu0
    %v2821 = vadd.f32 0.0, %v2820
    %v2822 = vpop.f32.mrb[0].mxu0
    %v2823 = vadd.f32 0.0, %v2822
    %2824 = vdwg.mxu0
    %v2825 = vxor.u32 %v2731, 2147483648
    %v2826 = vxor.u32 %v2733, 2147483648
    %v2827 = vxor.u32 %v2774, 2147483648
    %v2828 = vxor.u32 %v2735, 2147483648
    %v2829 = vxor.u32 %v2737, 2147483648
    %v2830 = vxor.u32 %v2778, 2147483648
    %v2831 = vmul.f32 %v2825, 1.442695
    %v2832 = vpow.pop %v2831
    %v2833 = vmul.f32 %v2826, 1.442695
    %v2834 = vpow.pop %v2833
    %v2835 = vmul.f32 %v2827, 1.442695
    %v2836 = vpow.pop %v2835
    %v2837 = vmul.f32 %v2828, 1.442695
    %v2838 = vpow.pop %v2837
    %v2839 = vmul.f32 %v2829, 1.442695
    %v2840 = vpow.pop %v2839
    %v2841 = vmul.f32 %v2830, 1.442695
    %v2842 = vpow.pop %v2841
    %v2843 = vadd.f32 %v2832, 1.0
    %v2844 = vadd.f32 %v2834, 1.0
    %v2845 = vadd.f32 %v2836, 1.0
    %v2846 = vadd.f32 %v2838, 1.0
    %v2847 = vadd.f32 %v2840, 1.0
    %v2848 = vadd.f32 %v2842, 1.0
    %v2849 = vrcp.pop %v2843
    %v2850 = vmul.f32 1.0, %v2849
    %v2851 = vrcp.pop %v2844
    %v2852 = vmul.f32 1.0, %v2851
    %v2853 = vrcp.pop %v2845
    %v2854 = vmul.f32 1.0, %v2853
    %v2855 = vrcp.pop %v2846
    %v2856 = vmul.f32 1.0, %v2855
    %v2857 = vrcp.pop %v2847
    %v2858 = vmul.f32 1.0, %v2857
    %v2859 = vrcp.pop %v2848
    %v2860 = vmul.f32 1.0, %v2859
    %v2861 = vmul.f32 %v2731, %v2850
    %v2862 = vmul.f32 %v2733, %v2852
    %v2863 = vmul.f32 %v2774, %v2854
    %v2864 = vmul.f32 %v2735, %v2856
    %v2865 = vmul.f32 %v2737, %v2858
    %v2866 = vmul.f32 %v2778, %v2860
    %v2867 = vmul.f32 %v2861, %v2776
    %v2868 = vmul.f32 %v2862, %v2817
    %v2869 = vmul.f32 %v2863, %v2819
    %v2870 = vmul.f32 %v2864, %v2780
    %v2871 = vmul.f32 %v2865, %v2821
    %v2872 = vmul.f32 %v2866, %v2823
    %v2873 = vld [vmem:[#allocation18] sm:$0xf]
    %v2874 = vld [vmem:[#allocation18 + $0x4] sm:$0xf]
    %v2875 = vld [vmem:[#allocation18 + $0x8] sm:$0xf]
    %v2876 = vld [vmem:[#allocation18 + $0xc] sm:$0xf]
    %v2877 = vld [vmem:[#allocation18 + $0x10] sm:$0xf]
    %v2878 = vld [vmem:[#allocation18 + $0x14] sm:$0xf]
    %v2879 = vld [vmem:[#allocation18 + $0x18] sm:$0xf]
    %v2880 = vld [vmem:[#allocation18 + $0x1c] sm:$0xf]
    %v2881 = vld [vmem:[#allocation18 + $0x20] sm:$0xf]
    %v2882 = vld [vmem:[#allocation18 + $0x24] sm:$0xf]
    %v2883 = vld [vmem:[#allocation18 + $0x28] sm:$0xf]
    %v2884 = vld [vmem:[#allocation18 + $0x2c] sm:$0xf]
    %v2885 = vld [vmem:[#allocation18 + $0x30] sm:$0xf]
    %v2886 = vld [vmem:[#allocation18 + $0x34] sm:$0xf]
    %v2887 = vld [vmem:[#allocation18 + $0x38] sm:$0xf]
    %v2888 = vld [vmem:[#allocation18 + $0x3c] sm:$0xf]
    %v2889 = vld [vmem:[#allocation18 + $0x40] sm:$0xf]
    %v2890 = vld [vmem:[#allocation18 + $0x44] sm:$0xf]
    %v2891 = vld [vmem:[#allocation18 + $0x48] sm:$0xf]
    %v2892 = vld [vmem:[#allocation18 + $0x4c] sm:$0xf]
    %v2893 = vld [vmem:[#allocation18 + $0x50] sm:$0xf]
    %v2894 = vld [vmem:[#allocation18 + $0x54] sm:$0xf]
    %v2895 = vld [vmem:[#allocation18 + $0x58] sm:$0xf]
    %v2896 = vld [vmem:[#allocation18 + $0x5c] sm:$0xf]
    %v2897 = vld [vmem:[#allocation18 + $0x60] sm:$0xf]
    %v2898 = vld [vmem:[#allocation18 + $0x64] sm:$0xf]
    %v2899 = vld [vmem:[#allocation18 + $0x68] sm:$0xf]
    %v2900 = vld [vmem:[#allocation18 + $0x6c] sm:$0xf]
    %v2901 = vld [vmem:[#allocation18 + $0x70] sm:$0xf]
    %v2902 = vld [vmem:[#allocation18 + $0x74] sm:$0xf]
    %v2903 = vld [vmem:[#allocation18 + $0x78] sm:$0xf]
    %v2904 = vld [vmem:[#allocation18 + $0x7c] sm:$0xf]
    %v2905 = vld [vmem:[#allocation18 + $0x80] sm:$0xf]
    %v2906 = vld [vmem:[#allocation18 + $0x84] sm:$0xf]
    %v2907 = vld [vmem:[#allocation18 + $0x88] sm:$0xf]
    %v2908 = vld [vmem:[#allocation18 + $0x8c] sm:$0xf]
    %v2909 = vld [vmem:[#allocation18 + $0x90] sm:$0xf]
    %v2910 = vld [vmem:[#allocation18 + $0x94] sm:$0xf]
    %v2911 = vld [vmem:[#allocation18 + $0x98] sm:$0xf]
    %v2912 = vld [vmem:[#allocation18 + $0x9c] sm:$0xf]
    %v2913 = vld [vmem:[#allocation18 + $0xa0] sm:$0xf]
    %v2914 = vld [vmem:[#allocation18 + $0xa4] sm:$0xf]
    %v2915 = vld [vmem:[#allocation18 + $0xa8] sm:$0xf]
    %v2916 = vld [vmem:[#allocation18 + $0xac] sm:$0xf]
    %v2917 = vld [vmem:[#allocation18 + $0xb0] sm:$0xf]
    %v2918 = vld [vmem:[#allocation18 + $0xb4] sm:$0xf]
    %v2919 = vld [vmem:[#allocation18 + $0xb8] sm:$0xf]
    %v2920 = vld [vmem:[#allocation18 + $0xbc] sm:$0xf]
    %v2921 = vpack.c.bf16 %v2870, %v2867
    %v2922 = vpack.c.bf16 %v2871, %v2868
    %v2923 = vpack.c.bf16 %v2872, %v2869
    %v2972 = vunpack.c.l.b16 %v2873
    %v2973 = vunpack.c.l.b16 %v2874
    %v2974 = vunpack.c.l.b16 %v2875
    %v2975 = vunpack.c.l.b16 %v2876
    %v2976 = vunpack.c.l.b16 %v2877
    %v2977 = vunpack.c.l.b16 %v2878
    %v2978 = vunpack.c.l.b16 %v2879
    %v2979 = vunpack.c.l.b16 %v2880
    %v2980 = vunpack.c.l.b16 %v2881
    %v2981 = vunpack.c.l.b16 %v2882
    %v2982 = vunpack.c.l.b16 %v2883
    %v2983 = vunpack.c.l.b16 %v2884
    %v2984 = vunpack.c.l.b16 %v2885
    %v2985 = vunpack.c.l.b16 %v2886
    %v2986 = vunpack.c.l.b16 %v2887
    %v2987 = vunpack.c.l.b16 %v2888
    %v2988 = vunpack.c.l.b16 %v2889
    %v2989 = vunpack.c.l.b16 %v2890
    %v2990 = vunpack.c.l.b16 %v2891
    %v2991 = vunpack.c.l.b16 %v2892
    %v2992 = vunpack.c.l.b16 %v2893
    %v2993 = vunpack.c.l.b16 %v2894
    %v2994 = vunpack.c.l.b16 %v2895
    %v2995 = vunpack.c.l.b16 %v2896
    %v2996 = vunpack.c.l.b16 %v2897
    %v2997 = vunpack.c.l.b16 %v2898
    %v2998 = vunpack.c.l.b16 %v2899
    %v2999 = vunpack.c.l.b16 %v2900
    %v3000 = vunpack.c.l.b16 %v2901
    %v3001 = vunpack.c.l.b16 %v2902
    %v3002 = vunpack.c.l.b16 %v2903
    %v3003 = vunpack.c.l.b16 %v2904
    %v3004 = vunpack.c.l.b16 %v2905
    %v3005 = vunpack.c.l.b16 %v2906
    %v3006 = vunpack.c.l.b16 %v2907
    %v3007 = vunpack.c.l.b16 %v2908
    %v3008 = vunpack.c.l.b16 %v2909
    %v3009 = vunpack.c.l.b16 %v2910
    %v3010 = vunpack.c.l.b16 %v2911
    %v3011 = vunpack.c.l.b16 %v2912
    %v3012 = vunpack.c.l.b16 %v2913
    %v3013 = vunpack.c.l.b16 %v2914
    %v3014 = vunpack.c.l.b16 %v2915
    %v3015 = vunpack.c.l.b16 %v2916
    %v3016 = vunpack.c.l.b16 %v2917
    %v3017 = vunpack.c.l.b16 %v2918
    %v3018 = vunpack.c.l.b16 %v2919
    %v3019 = vunpack.c.l.b16 %v2920
    %v3020 = vpack.c.b16 %v2973, %v2972
    %v3021 = vpack.c.b16 %v2975, %v2974
    %v3022 = vpack.c.b16 %v2977, %v2976
    %v3023 = vpack.c.b16 %v2979, %v2978
    %v3024 = vpack.c.b16 %v2981, %v2980
    %v3025 = vpack.c.b16 %v2983, %v2982
    %v3026 = vpack.c.b16 %v2985, %v2984
    %v3027 = vpack.c.b16 %v2987, %v2986
    %v3028 = vpack.c.b16 %v2989, %v2988
    %v3029 = vpack.c.b16 %v2991, %v2990
    %v3030 = vpack.c.b16 %v2993, %v2992
    %v3031 = vpack.c.b16 %v2995, %v2994
    %v3032 = vpack.c.b16 %v2997, %v2996
    %v3033 = vpack.c.b16 %v2999, %v2998
    %v3034 = vpack.c.b16 %v3001, %v3000
    %v3035 = vpack.c.b16 %v3003, %v3002
    %v3036 = vpack.c.b16 %v3005, %v3004
    %v3037 = vpack.c.b16 %v3007, %v3006
    %v3038 = vpack.c.b16 %v3009, %v3008
    %v3039 = vpack.c.b16 %v3011, %v3010
    %v3040 = vpack.c.b16 %v3013, %v3012
    %v3041 = vpack.c.b16 %v3015, %v3014
    %v3042 = vpack.c.b16 %v3017, %v3016
    %v3043 = vpack.c.b16 %v3019, %v3018
    %3068 = vmatprep.subr.bf16.mxu0 0
    %3069 = vmatpush1.bf16.msra.mxu0 %v3020
    %3070 = vmatprep.subr.bf16.mxu0 0
    %3071 = vmatpush1.bf16.msra.mxu0 %v3021
    %3072 = vmatprep.subr.bf16.mxu0 0
    %3073 = vmatpush1.bf16.msra.mxu0 %v3022
    %3074 = vmatprep.subr.bf16.mxu0 0
    %3075 = vmatpush1.bf16.msra.mxu0 %v3023
    %3076 = vmatprep.subr.bf16.mxu0 0
    %3077 = vmatpush1.bf16.msra.mxu0 %v3024
    %3078 = vmatprep.subr.bf16.mxu0 0
    %3079 = vmatpush1.bf16.msra.mxu0 %v3025
    %3080 = vmatprep.subr.bf16.mxu0 0
    %3081 = vmatpush1.bf16.msra.mxu0 %v3026
    %3082 = vmatprep.subr.bf16.mxu0 0
    %3083 = vmatpush1.bf16.msra.mxu0 %v3027
    %3084 = vmatprep.subr.bf16.mxu0 0
    %3085 = vmatpush1.bf16.msra.mxu0 %v3028
    %3086 = vmatprep.subr.bf16.mxu0 0
    %3087 = vmatpush1.bf16.msra.mxu0 %v3029
    %3088 = vmatprep.subr.bf16.mxu0 0
    %3089 = vmatpush1.bf16.msra.mxu0 %v3030
    %3090 = vmatprep.subr.bf16.mxu0 0
    %3091 = vmatpush1.bf16.msra.mxu0 %v3031
    %3092 = vmatprep.subr.bf16.mxu0 0
    %3093 = vmatpush1.bf16.msra.mxu0 %v3032
    %3094 = vmatprep.subr.bf16.mxu0 0
    %3095 = vmatpush1.bf16.msra.mxu0 %v3033
    %3096 = vmatprep.subr.bf16.mxu0 0
    %3097 = vmatpush1.bf16.msra.mxu0 %v3034
    %3098 = vmatprep.subr.bf16.mxu0 0
    %3099 = vmatpush1.bf16.msra.mxu0 %v3035
    %3100 = vmatprep.mubr.bf16.mxu0 %v2922
    %3101 = vmatmul.mubr.bf16.gmra.mrb[0].mxu0 %v2921
    %v3102 = vpop.f32.mrb[0].mxu0
    %v3103 = vadd.f32 0.0, %v3102
    %v3104 = vpop.f32.mrb[0].mxu0
    %v3105 = vpop.f32.mrb[0].mxu0
    %v3106 = vadd.f32 0.0, %v3105
    %v3107 = vpop.f32.mrb[0].mxu0
    %3108 = vdwg.mxu0
    %3109 = vmatprep.subr.bf16.mxu0 0
    %3110 = vmatpush1.bf16.msra.mxu0 %v3036
    %3111 = vmatprep.subr.bf16.mxu0 0
    %3112 = vmatpush1.bf16.msra.mxu0 %v3037
    %3113 = vmatprep.subr.bf16.mxu0 0
    %3114 = vmatpush1.bf16.msra.mxu0 %v3038
    %3115 = vmatprep.subr.bf16.mxu0 0
    %3116 = vmatpush1.bf16.msra.mxu0 %v3039
    %3117 = vmatprep.subr.bf16.mxu0 0
    %3118 = vmatpush1.bf16.msra.mxu0 %v3040
    %3119 = vmatprep.subr.bf16.mxu0 0
    %3120 = vmatpush1.bf16.msra.mxu0 %v3041
    %3121 = vmatprep.subr.bf16.mxu0 0
    %3122 = vmatpush1.bf16.msra.mxu0 %v3042
    %3123 = vmatprep.subr.bf16.mxu0 0
    %3124 = vmatpush1.bf16.msra.mxu0 %v3043
    %3125 = vmatprep.subr.bf16.mxu0 0
    %3126 = vmatpush1.bf16.msra.mxu0 0
    %3127 = vmatprep.subr.bf16.mxu0 0
    %3128 = vmatpush1.bf16.msra.mxu0 0
    %3129 = vmatprep.subr.bf16.mxu0 0
    %3130 = vmatpush1.bf16.msra.mxu0 0
    %3131 = vmatprep.subr.bf16.mxu0 0
    %3132 = vmatpush1.bf16.msra.mxu0 0
    %3133 = vmatprep.subr.bf16.mxu0 0
    %3134 = vmatpush1.bf16.msra.mxu0 0
    %3135 = vmatprep.subr.bf16.mxu0 0
    %3136 = vmatpush1.bf16.msra.mxu0 0
    %3137 = vmatprep.subr.bf16.mxu0 0
    %3138 = vmatpush1.bf16.msra.mxu0 0
    %3139 = vmatprep.subr.bf16.mxu0 0
    %3140 = vmatpush1.bf16.msra.mxu0 0
    %3141 = vmatprep.mubr.bf16.mxu0 0
    %3142 = vmatmul.mubr.bf16.gmra.mrb[0].mxu0 %v2923
    %v3143 = vpop.f32.mrb[0].mxu0
    %v3144 = vadd.f32 %v3103, %v3143
    %v3145 = vpop.f32.mrb[0].mxu0
    %v3146 = vpop.f32.mrb[0].mxu0
    %v3147 = vadd.f32 %v3106, %v3146
    %v3148 = vpop.f32.mrb[0].mxu0
    %3149 = vdwg.mxu0
    %v3150 = vmul.f32 %v3144, %v3144
    %v3151 = vmul.f32 %v3147, %v3147
    %3152 = vadd.xlane.f32.xlu0 %v3150
    %v3153 = vpop.xlane.xlu0 %3152
    %3154 = vadd.xlane.f32.xlu0 %v3151
    %v3155 = vpop.xlane.xlu0 %3154
    %v3156 = vmul.f32 %v3153, %v582
    %v3157 = vmul.f32 %v3155, %v582
    %v3158 = vadd.f32 %v3156, 1e-06
    %v3159 = vadd.f32 %v3157, 1e-06
    %v3160 = vrsqrt.pop %v3158
    %v3161 = vrsqrt.pop %v3159
    %v3162 = vmul.f32 %v3144, %v3160
    %v3163 = vmul.f32 %v3147, %v3161
    %v3164 = vlaneseq
    %v3165 = vshrl.u32 %v3164, 7
    %v3166 = vsub.s32 3, %v3165
    %v3167 = vrot.slane %v178, %v3166
    %v3168 = vmul.f32 %v3162, %v3167
    %v3169 = vmul.f32 %v3163, %v3167
    %v3170 = vmul.f32 %v574, %v3168
    %v3171 = vmul.f32 %v575, %v3169
    %v3172 = vadd.f32 %v2383, %v3170
    %v3173 = vadd.f32 %v2384, %v3171
    %3174 = vst [vmem:[#allocation20] sm:$0xff] %v3172
    %3175 = vst [vmem:[#allocation20 + $0x8] sm:$0xff] %v3173
    // Predicated region
    $region94: #{tpu_custom_call.1} parent=1 // pred_check
      _
    $region95: #{tpu_custom_call.1} parent=1 // pred_check_branch
      %3177 = sbr.rel (0) target = $region97
    $region96: #{tpu_custom_call.1} parent=1 // pred_region
      %s3179 = ssub.s32 256, 256
      %3180 = vsyncadd [#allocation5], %s3179
      %s3181 = sshll.u32 [#allocation20], 4
      %s3182 = int_to_ptr.vmem [resolvable:$true] %s3181
      %3187 = dma.vmem_to_hbm [thread:$0]  %s3182, 256, %s13, [#allocation5], 128, 128, 8
    $region97: #{tpu_custom_call.1} parent=1 // pred_fallthru
      _
    // Predicated region
    $region98: #{tpu_custom_call.1} parent=1 // pred_check
      _
    $region99: #{tpu_custom_call.1} parent=1 // pred_check_branch
      %3189 = sbr.rel (0) target = $region101
    $region100: #{tpu_custom_call.1} parent=1 // pred_region
      %3190 = dma.done [#allocation5], 256
    $region101: #{tpu_custom_call.1} parent=1 // pred_fallthru
      _
    %3191 = vsyncpa [#allocation4], 1
    %3192 = vsyncpa [#allocation7], 1
    %3193 = vsyncpa [#allocation10], 1
    %3194 = vsyncpa [#allocation13], 1
    %3195 = vsyncpa [#allocation16], 1
    %3196 = vsyncpa [#allocation19], 1
    %3197 = vsyncpa [#allocation5], 1

</llo_original>
